<compile_context>
chip_gen: v5e
topology: v5e:2x2
jax: 0.10.0
libtpu: 0.0.40
codegen_flags: <defaults>
</compile_context>

<pallas_src>
import jax
import jax.numpy as jnp
from jax.experimental import pallas as pl
from jax.experimental.pallas import tpu as pltpu


def _perm_kernel(perm_ref, z_ref, o_ref):
    # perm_ref: (1, tn) int32 -- source column index for each output column
    # z_ref:    (tm, D)       -- full feature-width (K) row tile of z
    # o_ref:    (tm, tn)
    D = z_ref.shape[1]
    tn = o_ref.shape[1]
    # One-hot selection tile built in-kernel (VPU): onehot[k, c] = (k == perm[c]).
    row_ids = jax.lax.broadcasted_iota(jnp.int32, (D, tn), 0)
    onehot = (row_ids == perm_ref[...]).astype(z_ref.dtype)      # exact 0/1
    # out[:, c] = z[:, perm[c]]  (MXU; exact copy under f32 accumulation).
    o_ref[...] = jnp.dot(
        z_ref[...], onehot, preferred_element_type=jnp.float32
    ).astype(o_ref.dtype)


def _pick_tile(n, candidates):
    for c in candidates:
        if n % c == 0:
            return c
    return n  # block == full array dim is always legal


def permutation_forward(z: jax.Array, perm: jax.Array, *, tm=None, tn=None) -> jax.Array:
    """Pallas equivalent of PermutationLayer.forward: z[:, perm]."""
    B, D = z.shape
    assert perm.shape == (D,)
    perm2d = perm.astype(jnp.int32).reshape(1, D)

    if tm is None:
        tm = _pick_tile(B, (256, 128, 64, 32, 16, 8))
        # Keep the double-buffered full-K z row tile comfortably inside the
        # default scoped VMEM on all generations (v5e 16 MiB, v6e/v7x 32 MiB).
        while tm >= 16 and tm * D * z.dtype.itemsize * 2 > (8 << 20):
            tm //= 2
    if tn is None:
        tn = _pick_tile(D, (512, 256, 128))   # lane-dense output blocks

    grid = (B // tm, D // tn)
    return pl.pallas_call(
        _perm_kernel,
        out_shape=jax.ShapeDtypeStruct((B, D), z.dtype),
        grid=grid,
        in_specs=[
            pl.BlockSpec((1, tn), lambda i, j: (0, j)),   # perm slice for these out cols
            pl.BlockSpec((tm, D), lambda i, j: (i, 0)),   # full-K row tile of z
        ],
        out_specs=pl.BlockSpec((tm, tn), lambda i, j: (i, j)),
        compiler_params=pltpu.CompilerParams(
            dimension_semantics=("parallel", "parallel"),
        ),
    )(perm2d, z)


def permutation_inverse(y: jax.Array, inv_perm: jax.Array, **kw) -> jax.Array:
    # The inverse is the same gather kernel applied with the inverse permutation.
    return permutation_forward(y, inv_perm, **kw)


def make_permutation_params(input_dim: int, key: jax.Array):
    """torch.randperm / argsort buffers; no dense one-hot is ever materialized."""
    perm = jax.random.permutation(key, input_dim).astype(jnp.int32)
    inv_perm = jnp.argsort(perm).astype(jnp.int32)
    return perm, inv_perm


if __name__ == "__main__":
    key = jax.random.PRNGKey(0)
    k_perm, k_z = jax.random.split(key)

    batch, input_dim = 512, 1024          # exercises a (2, 2) grid with tm=256, tn=512
    perm, inv_perm = make_permutation_params(input_dim, k_perm)
    z = jax.random.normal(k_z, (batch, input_dim), dtype=jnp.float32)

    out = jax.block_until_ready(permutation_forward(z, perm))
    ref = z[:, perm]
    assert out.shape == (batch, input_dim)
    assert out.dtype == z.dtype
    assert bool(jnp.all(out == ref)), "Pallas permutation does not match reference gather"

    # Round-trip through the inverse permutation (same kernel, inverse index buffer).
    back = jax.block_until_ready(permutation_inverse(out, inv_perm))
    assert bool(jnp.all(back == z)), "inverse round-trip mismatch"

    print("KERNEL_OK")
</pallas_src>

<mosaic_0001>
module attributes {stable_mosaic.version = 11 : i64} {
  func.func @_perm_kernel(%arg0: i32, %arg1: i32, %arg2: memref<1x512xi32, #tpu.memory_space<vmem>>, %arg3: memref<256x1024xf32, #tpu.memory_space<vmem>>, %arg4: memref<256x512xf32, #tpu.memory_space<vmem>>) attributes {dimension_semantics = [#tpu.dimension_semantics<parallel>, #tpu.dimension_semantics<parallel>], iteration_bounds = array<i64: 2, 2>, scalar_prefetch = 0 : i64, scratch_operands = 0 : i64, tpu.core_type = #tpu.core_type<tc>, window_params = [{transform_indices = @transform_0, window_bounds = array<i64: 1, 512>}, {transform_indices = @transform_1, window_bounds = array<i64: 256, 1024>}, {transform_indices = @transform_2, window_bounds = array<i64: 256, 512>}]} {
    %0 = tpu.iota {dimensions = array<i32: 0>} : vector<1024x512xi32>
    %c0 = arith.constant 0 : index
    %c0_0 = arith.constant 0 : index
    %1 = vector.load %arg2[%c0, %c0_0] : memref<1x512xi32, #tpu.memory_space<vmem>>, vector<1x512xi32>
    %2 = vector.broadcast %1 : vector<1x512xi32> to vector<1024x512xi32>
    %3 = arith.cmpi eq, %0, %2 : vector<1024x512xi32>
    %4 = arith.extui %3 : vector<1024x512xi1> to vector<1024x512xi32>
    %5 = arith.sitofp %4 : vector<1024x512xi32> to vector<1024x512xf32>
    %c0_1 = arith.constant 0 : index
    %c0_2 = arith.constant 0 : index
    %6 = vector.load %arg3[%c0_1, %c0_2] : memref<256x1024xf32, #tpu.memory_space<vmem>>, vector<256x1024xf32>
    %cst = arith.constant dense<0.000000e+00> : vector<256x512xf32>
    %7 = tpu.matmul %6, %5, %cst {dimension_numbers = #tpu.dot_dimension_numbers<[1], [0], [0], [1], [0, 0, 1, 1], [], []>} : vector<256x1024xf32>, vector<1024x512xf32>, vector<256x512xf32> -> vector<256x512xf32>
    %c0_3 = arith.constant 0 : index
    %c0_4 = arith.constant 0 : index
    %8 = vector.load %arg4[%c0_3, %c0_4] : memref<256x512xf32, #tpu.memory_space<vmem>>, vector<256x512xf32>
    tpu.vector_store %arg4[%c0_3, %c0_4], %7 {strides = array<i32>} : memref<256x512xf32, #tpu.memory_space<vmem>>, vector<256x512xf32>,
    return
  }
  func.func @transform_0(%arg0: i32, %arg1: i32) -> (i32, i32) {
    %c0_i32 = arith.constant 0 : i32
    %c0_i32_0 = arith.constant 0 : i32
    return %c0_i32, %arg1 : i32, i32
  }
  func.func @transform_1(%arg0: i32, %arg1: i32) -> (i32, i32) {
    %c0_i32 = arith.constant 0 : i32
    %c0_i32_0 = arith.constant 0 : i32
    return %arg0, %c0_i32 : i32, i32
  }
  func.func @transform_2(%arg0: i32, %arg1: i32) -> (i32, i32) {
    %c0_i32 = arith.constant 0 : i32
    return %arg0, %arg1 : i32, i32
  }
}

</mosaic_0001>

<llo_original>
// kernel: tpu_custom_call.1
$region0: #{tpu_custom_call.1}
  #allocation0 [shape = 'u32[]', space=smem, size = 0x4, offset = 0x4, fixed_abs, tag = 'smem constant byte address 0x4 - core index']
  #allocation1 [shape = 'u32[72,128]{1,0:T(1,128)}', space=vmem, size = 0x9000, scoped, tag = 'internal scratch']
  %s0 = inlined_call_operand.hbm [shape: s32[1,1024], index: 0, kind: input, shape index: {}]
  %s1 = inlined_call_operand.hbm [shape: f32[512,1024], index: 1, kind: input, shape index: {}]
  %s2 = inlined_call_operand.hbm [shape: f32[512,1024], index: 2, kind: output, shape index: {}]
  %s3 = sld [smem:[#allocation0]]
  $region49: #{tpu_custom_call.1} parent=0
    _
  %s5 = ssub.s32 1, %s3
  %s6 = scalar_select 0, %s5, %s3
  $region1: #{tpu_custom_call.1} parent=0
    #allocation2 [shape = 'u8[4096]{0}', space=vmem, size = 0x1000, scoped, tag = 'input window, operand 0']
    #allocation3 [shape = 's32[2]{0}', space=sflag, size = 0x8, scoped, tag = 'scoped memory for tpu_custom_call.1']
    #allocation4 [shape = 's32[2]{0}', space=sflag, size = 0x8, scoped, tag = 'scoped memory for tpu_custom_call.1']
    #allocation5 [shape = 'u8[2097152]{0}', space=vmem, size = 0x200000, scoped, tag = 'input window, operand 1']
    #allocation6 [shape = 's32[2]{0}', space=sflag, size = 0x8, scoped, tag = 'scoped memory for tpu_custom_call.1']
    #allocation7 [shape = 'u8[1048576]{0}', space=vmem, size = 0x100000, scoped, tag = 'output window, operand 0']
    %7 = vsyncpa [#allocation3], 0
    %s8 = scalar_lea.sflag [#allocation3], 1
    %9 = vsyncpa %s8, 0
    %10 = vsyncpa [#allocation6], 0
    %s11 = scalar_lea.sflag [#allocation6], 1
    %12 = vsyncpa %s11, 0
    %13 = vsyncpa [#allocation4], 0
    %s14 = scalar_lea.sflag [#allocation4], 1
    %15 = vsyncpa %s14, 0
    loop: start=0, step=1, limit=6
    $region2: #{tpu_custom_call.1} parent=1 // loop_pre_header
      _
    $region3: #{tpu_custom_call.1} parent=1 // loop_header
      %s17 = sphi 0, %s21
      %p18 = scmp.ge.s32.totalorder %s17, 6
      %s24 = sphi 0, %s36
      %s25 = sphi 0, %s32
      %s26 = sphi 0, %s24
      %s27 = sphi 0, %s25
      %s28 = sphi 0, %s26
      %s29 = sphi 0, %s27
      %s39 = sphi 0, %s41
      %s42 = sphi 0, %s39
      %s43 = sphi 0, %s42
      %s59 = sphi 0, %s43
      %s65 = sphi 0, %s67
      %s68 = sphi 0, %s65
      %s69 = sphi 0, %s68
      %s85 = sphi 0, %s69
      %s93 = sphi 0, %s95
      %s96 = sphi 0, %s93
      %s97 = sphi 0, %s96
      %s113 = sphi 0, %s97
    $region4: #{tpu_custom_call.1} parent=1 // loop_header_branch
      %20 = sbr.rel (%p18) target = $region8
    $region5: #{tpu_custom_call.1} parent=1 // loop_body
      %s22 = ssub.s32 %s17, 1
      %s23 = ssub.s32 %s17, 2
      %s30 = sadd.s32 1, %s25
      %p31 = scmp.ge.s32.totalorder %s30, 2
      %s32 = scalar_select %p31, 0, %s30
      %s33 = sadd.s32 1, %s24
      %s34 = scalar_select %p31, %s33, %s24
      %p35 = scmp.ge.s32.totalorder %s34, 2
      %s36 = scalar_select %p35, 0, %s34
      %s37 = ssub.s32 %s25, %s32
      %p38 = scmp.eq.s32.totalorder %s37, 0
      %s40 = sadd.s32 %s39, 1
      %s41 = scalar_select %p38, %s39, %s40
      %p44 = pneg %p38
      %p45 = scmp.eq.s32.totalorder %s17, 3
      %p46 = por %p44, %p45
      %p47 = scmp.ne.s32.totalorder %s39, %s42
      %p48 = scmp.eq.s32.totalorder %s17, 0
      %p49 = por %p47, %p48
      %p50 = scmp.ne.s32.totalorder %s39, %s42
      %p51 = scmp.eq.s32.totalorder %s22, 3
      %p52 = por %p50, %p51
      %p53 = scmp.ne.s32.totalorder %s42, %s43
      %p54 = scmp.eq.s32.totalorder %s22, 0
      %p55 = por %p53, %p54
      %p56 = scmp.ne.s32.totalorder %s42, %s43
      %p57 = scmp.eq.s32.totalorder %s23, 3
      %p58 = por %p56, %p57
      %p60 = scmp.ne.s32.totalorder %s43, %s59
      %p61 = scmp.eq.s32.totalorder %s23, 0
      %p62 = por %p60, %p61
      %s63 = ssub.s32 %s24, %s36
      %p64 = scmp.eq.s32.totalorder %s63, 0
      %s66 = sadd.s32 %s65, 1
      %s67 = scalar_select %p64, %s65, %s66
      %p70 = pneg %p64
      %p71 = scmp.eq.s32.totalorder %s17, 3
      %p72 = por %p70, %p71
      %p73 = scmp.ne.s32.totalorder %s65, %s68
      %p74 = scmp.eq.s32.totalorder %s17, 0
      %p75 = por %p73, %p74
      %p76 = scmp.ne.s32.totalorder %s65, %s68
      %p77 = scmp.eq.s32.totalorder %s22, 3
      %p78 = por %p76, %p77
      %p79 = scmp.ne.s32.totalorder %s68, %s69
      %p80 = scmp.eq.s32.totalorder %s22, 0
      %p81 = por %p79, %p80
      %p82 = scmp.ne.s32.totalorder %s68, %s69
      %p83 = scmp.eq.s32.totalorder %s23, 3
      %p84 = por %p82, %p83
      %p86 = scmp.ne.s32.totalorder %s69, %s85
      %p87 = scmp.eq.s32.totalorder %s23, 0
      %p88 = por %p86, %p87
      %s89 = ssub.s32 %s24, %s36
      %s90 = ssub.s32 %s25, %s32
      %s91 = sor.u32 %s89, %s90
      %p92 = scmp.eq.s32.totalorder %s91, 0
      %s94 = sadd.s32 %s93, 1
      %s95 = scalar_select %p92, %s93, %s94
      %p98 = pneg %p92
      %p99 = scmp.eq.s32.totalorder %s17, 3
      %p100 = por %p98, %p99
      %p101 = scmp.ne.s32.totalorder %s93, %s96
      %p102 = scmp.eq.s32.totalorder %s17, 0
      %p103 = por %p101, %p102
      %p104 = scmp.ne.s32.totalorder %s93, %s96
      %p105 = scmp.eq.s32.totalorder %s22, 3
      %p106 = por %p104, %p105
      %p107 = scmp.ne.s32.totalorder %s96, %s97
      %p108 = scmp.eq.s32.totalorder %s22, 0
      %p109 = por %p107, %p108
      %p110 = scmp.ne.s32.totalorder %s96, %s97
      %p111 = scmp.eq.s32.totalorder %s23, 3
      %p112 = por %p110, %p111
      %p114 = scmp.ne.s32.totalorder %s97, %s113
      %p115 = scmp.eq.s32.totalorder %s23, 0
      %p116 = por %p114, %p115
      %p117 = scmp.le.s32.totalorder 1, %s17
      %p118 = scmp.lt.s32.totalorder %s17, 5
      %p119 = pnand %p117, %p118
      %p120 = pneg %p119
      // Predicated region
      $region9: #{tpu_custom_call.1} parent=5 // pred_check
        _
      $region10: #{tpu_custom_call.1} parent=5 // pred_check_branch
        %122 = sbr.rel (%p119) target = $region12
      $region11: #{tpu_custom_call.1} parent=5 // pred_region
        %s123 = ssub.s32 %s17, 1
      $region12: #{tpu_custom_call.1} parent=5 // pred_fallthru
        _
      %p124 = scmp.lt.s32.totalorder %s17, 4
      // Predicated region
      $region13: #{tpu_custom_call.1} parent=5 // pred_check
        %p125 = pneg %p124
      $region14: #{tpu_custom_call.1} parent=5 // pred_check_branch
        %127 = sbr.rel (%p125) target = $region16
      $region15: #{tpu_custom_call.1} parent=5 // pred_region
        // Predicated region
        $region17: #{tpu_custom_call.1} parent=15 // pred_check
          %p128 = pneg %p49
        $region18: #{tpu_custom_call.1} parent=15 // pred_check_branch
          %130 = sbr.rel (%p128) target = $region20
        $region19: #{tpu_custom_call.1} parent=15 // pred_region
          %s131 = sand.u32 %s39, 1
          %s132 = scalar_lea.sflag [#allocation3], %s131
          %s133 = sand.u32 %s39, 1
          %s134 = smul.addr %s133, 4
          %s135 = scalar_lea.vmem [#allocation2], %s134
          %s136 = smul.u32 4, %s25
          %138 = vsyncadd %s132, 0
          %s139 = scalar_lea.hbm %s0, %s136
          %s141 = sshll.u32 %s139, 4
          %s142 = int_to_ptr.hbm [resolvable:$true] %s141
          %s143 = sshll.u32 %s135, 4
          %s144 = int_to_ptr.vmem [resolvable:$true] %s143
          %146 = dma.hbm_to_vmem [thread:$0]  %s142, 64, %s144, %s132
        $region20: #{tpu_custom_call.1} parent=15 // pred_fallthru
          _
        // Predicated region
        $region21: #{tpu_custom_call.1} parent=15 // pred_check
          %p147 = pneg %p75
        $region22: #{tpu_custom_call.1} parent=15 // pred_check_branch
          %149 = sbr.rel (%p147) target = $region24
        $region23: #{tpu_custom_call.1} parent=15 // pred_region
          %s150 = sand.u32 %s65, 1
          %s151 = scalar_lea.sflag [#allocation6], %s150
          %s152 = sand.u32 %s65, 1
          %s153 = smul.addr %s152, 2048
          %s154 = scalar_lea.vmem [#allocation5], %s153
          %s155 = smul.u32 32, %s24
          %157 = vsyncadd %s151, 0
          %s158 = smul.addr %s155, 8
          %s159 = smul.addr %s158, 8
          %s160 = scalar_lea.hbm %s1, %s159
          %s161 = sshll.u32 %s160, 4
          %s162 = int_to_ptr.hbm [resolvable:$true] %s161
          %s163 = sshll.u32 %s154, 4
          %s164 = int_to_ptr.vmem [resolvable:$true] %s163
          %169 = dma.hbm_to_vmem [thread:$0]  %s162, 32768, %s164, %s151, 1024, 1024, 64
        $region24: #{tpu_custom_call.1} parent=15 // pred_fallthru
          _
      $region16: #{tpu_custom_call.1} parent=5 // pred_fallthru
        _
      %p170 = scmp.le.s32.totalorder 1, %s17
      %p171 = scmp.lt.s32.totalorder %s17, 5
      %p172 = pnand %p170, %p171
      %p173 = pneg %p172
      // Predicated region
      $region25: #{tpu_custom_call.1} parent=5 // pred_check
        _
      $region26: #{tpu_custom_call.1} parent=5 // pred_check_branch
        %175 = sbr.rel (%p172) target = $region28
      $region27: #{tpu_custom_call.1} parent=5 // pred_region
        %s176 = ssub.s32 %s17, 1
        %s177 = sand.u32 %s42, 1
        %s178 = scalar_lea.sflag [#allocation3], %s177
        %s179 = sand.u32 %s42, 1
        %s180 = smul.addr %s179, 4
        %s181 = scalar_lea.vmem [#allocation2], %s180
        // Predicated region
        $region29: #{tpu_custom_call.1} parent=27 // pred_check
          %p182 = pneg %p55
        $region30: #{tpu_custom_call.1} parent=27 // pred_check_branch
          %184 = sbr.rel (%p182) target = $region32
        $region31: #{tpu_custom_call.1} parent=27 // pred_region
          %186 = dma.done %s178, 64
        $region32: #{tpu_custom_call.1} parent=27 // pred_fallthru
          _
        %s187 = sand.u32 %s68, 1
        %s188 = scalar_lea.sflag [#allocation6], %s187
        %s189 = sand.u32 %s68, 1
        %s190 = smul.addr %s189, 2048
        %s191 = scalar_lea.vmem [#allocation5], %s190
        // Predicated region
        $region33: #{tpu_custom_call.1} parent=27 // pred_check
          %p192 = pneg %p81
        $region34: #{tpu_custom_call.1} parent=27 // pred_check_branch
          %194 = sbr.rel (%p192) target = $region36
        $region35: #{tpu_custom_call.1} parent=27 // pred_region
          %196 = dma.done %s188, 32768
        $region36: #{tpu_custom_call.1} parent=27 // pred_fallthru
          _
        %s197 = sand.u32 %s42, 1
        %s198 = scalar_lea.sflag [#allocation3], %s197
        %s199 = sand.u32 %s42, 1
        %s200 = smul.addr %s199, 4
        %s201 = scalar_lea.vmem [#allocation2], %s200
        %p202 = pneg %p55
        %p203 = pneg %p52
        %s204 = sand.u32 %s68, 1
        %s205 = scalar_lea.sflag [#allocation6], %s204
        %s206 = sand.u32 %s68, 1
        %s207 = smul.addr %s206, 2048
        %s208 = scalar_lea.vmem [#allocation5], %s207
        %p209 = pneg %p81
        %p210 = pneg %p78
        %p211 = pneg %p109
        %p212 = pneg %p106
        %s213 = sand.u32 %s96, 1
        %s214 = scalar_lea.sflag [#allocation4], %s213
        %s215 = sand.u32 %s96, 1
        %s216 = smul.addr %s215, 1024
        %s217 = scalar_lea.vmem [#allocation7], %s216
        %s218 = smul.u32 4, %s27
        %s219 = smul.u32 32, %s26
        %s220 = smul.u32 32, %s26
        %s221 = smul.u32 4, %s27
        %v222 = vlaneseq
        %v223 = vshrl.u32 %v222, 7
        %v224 = vadd.s32 %v223, 8
        %v225 = vadd.s32 %v223, 16
        %v226 = vadd.s32 %v223, 24
        %v227 = vadd.s32 %v223, 32
        %v228 = vadd.s32 %v223, 40
        %v229 = vadd.s32 %v223, 48
        %v230 = vadd.s32 %v223, 56
        %v231 = vadd.s32 %v223, 64
        %v232 = vadd.s32 %v223, 72
        %v233 = vadd.s32 %v223, 80
        %v234 = vadd.s32 %v223, 88
        %v235 = vadd.s32 %v223, 96
        %v236 = vadd.s32 %v223, 104
        %v237 = vadd.s32 %v223, 112
        %v238 = vadd.s32 %v223, 120
        %v239 = vadd.s32 %v223, 128
        %v240 = vadd.s32 %v223, 136
        %v241 = vadd.s32 %v223, 144
        %v242 = vadd.s32 %v223, 152
        %v243 = vadd.s32 %v223, 160
        %v244 = vadd.s32 %v223, 168
        %v245 = vadd.s32 %v223, 176
        %v246 = vadd.s32 %v223, 184
        %v247 = vadd.s32 %v223, 192
        %v248 = vadd.s32 %v223, 200
        %v249 = vadd.s32 %v223, 208
        %v250 = vadd.s32 %v223, 216
        %v251 = vadd.s32 %v223, 224
        %v252 = vadd.s32 %v223, 232
        %v253 = vadd.s32 %v223, 240
        %v254 = vadd.s32 %v223, 248
        %v255 = vadd.s32 %v223, 256
        %v256 = vadd.s32 %v223, 264
        %v257 = vadd.s32 %v223, 272
        %v258 = vadd.s32 %v223, 280
        %v259 = vadd.s32 %v223, 288
        %v260 = vadd.s32 %v223, 296
        %v261 = vadd.s32 %v223, 304
        %v262 = vadd.s32 %v223, 312
        %v263 = vadd.s32 %v223, 320
        %v264 = vadd.s32 %v223, 328
        %v265 = vadd.s32 %v223, 336
        %v266 = vadd.s32 %v223, 344
        %v267 = vadd.s32 %v223, 352
        %v268 = vadd.s32 %v223, 360
        %v269 = vadd.s32 %v223, 368
        %v270 = vadd.s32 %v223, 376
        %v271 = vadd.s32 %v223, 384
        %v272 = vadd.s32 %v223, 392
        %v273 = vadd.s32 %v223, 400
        %v274 = vadd.s32 %v223, 408
        %v275 = vadd.s32 %v223, 416
        %v276 = vadd.s32 %v223, 424
        %v277 = vadd.s32 %v223, 432
        %v278 = vadd.s32 %v223, 440
        %v279 = vadd.s32 %v223, 448
        %v280 = vadd.s32 %v223, 456
        %v281 = vadd.s32 %v223, 464
        %v282 = vadd.s32 %v223, 472
        %v283 = vadd.s32 %v223, 480
        %v284 = vadd.s32 %v223, 488
        %v285 = vadd.s32 %v223, 496
        %v286 = vadd.s32 %v223, 504
        %v287 = vadd.s32 %v223, 512
        %v288 = vadd.s32 %v223, 520
        %v289 = vadd.s32 %v223, 528
        %v290 = vadd.s32 %v223, 536
        %v291 = vadd.s32 %v223, 544
        %v292 = vadd.s32 %v223, 552
        %v293 = vadd.s32 %v223, 560
        %v294 = vadd.s32 %v223, 568
        %v295 = vadd.s32 %v223, 576
        %v296 = vadd.s32 %v223, 584
        %v297 = vadd.s32 %v223, 592
        %v298 = vadd.s32 %v223, 600
        %v299 = vadd.s32 %v223, 608
        %v300 = vadd.s32 %v223, 616
        %v301 = vadd.s32 %v223, 624
        %v302 = vadd.s32 %v223, 632
        %v303 = vadd.s32 %v223, 640
        %v304 = vadd.s32 %v223, 648
        %v305 = vadd.s32 %v223, 656
        %v306 = vadd.s32 %v223, 664
        %v307 = vadd.s32 %v223, 672
        %v308 = vadd.s32 %v223, 680
        %v309 = vadd.s32 %v223, 688
        %v310 = vadd.s32 %v223, 696
        %v311 = vadd.s32 %v223, 704
        %v312 = vadd.s32 %v223, 712
        %v313 = vadd.s32 %v223, 720
        %v314 = vadd.s32 %v223, 728
        %v315 = vadd.s32 %v223, 736
        %v316 = vadd.s32 %v223, 744
        %v317 = vadd.s32 %v223, 752
        %v318 = vadd.s32 %v223, 760
        %v319 = vadd.s32 %v223, 768
        %v320 = vadd.s32 %v223, 776
        %v321 = vadd.s32 %v223, 784
        %v322 = vadd.s32 %v223, 792
        %v323 = vadd.s32 %v223, 800
        %v324 = vadd.s32 %v223, 808
        %v325 = vadd.s32 %v223, 816
        %v326 = vadd.s32 %v223, 824
        %v327 = vadd.s32 %v223, 832
        %v328 = vadd.s32 %v223, 840
        %v329 = vadd.s32 %v223, 848
        %v330 = vadd.s32 %v223, 856
        %v331 = vadd.s32 %v223, 864
        %v332 = vadd.s32 %v223, 872
        %v333 = vadd.s32 %v223, 880
        %v334 = vadd.s32 %v223, 888
        %v335 = vadd.s32 %v223, 896
        %v336 = vadd.s32 %v223, 904
        %v337 = vadd.s32 %v223, 912
        %v338 = vadd.s32 %v223, 920
        %v339 = vadd.s32 %v223, 928
        %v340 = vadd.s32 %v223, 936
        %v341 = vadd.s32 %v223, 944
        %v342 = vadd.s32 %v223, 952
        %v343 = vadd.s32 %v223, 960
        %v344 = vadd.s32 %v223, 968
        %v345 = vadd.s32 %v223, 976
        %v346 = vadd.s32 %v223, 984
        %v347 = vadd.s32 %v223, 992
        %v348 = vadd.s32 %v223, 1000
        %v349 = vadd.s32 %v223, 1008
        %v350 = vadd.s32 %v223, 1016
        %v351 = vld [vmem:[%s181] sm:$0xf]
        %v352 = vperm.slane %v351, 0
        %v353 = vperm.slane %v351, 1
        %v354 = vperm.slane %v351, 2
        %v355 = vperm.slane %v351, 3
        %vm356 = vcmp.eq.s32.totalorder %v223, %v352
        %vm357 = vcmp.eq.s32.totalorder %v223, %v353
        %vm358 = vcmp.eq.s32.totalorder %v223, %v354
        %vm359 = vcmp.eq.s32.totalorder %v223, %v355
        %vm360 = vcmp.eq.s32.totalorder %v224, %v352
        %vm361 = vcmp.eq.s32.totalorder %v224, %v353
        %vm362 = vcmp.eq.s32.totalorder %v224, %v354
        %vm363 = vcmp.eq.s32.totalorder %v224, %v355
        %vm364 = vcmp.eq.s32.totalorder %v225, %v352
        %vm365 = vcmp.eq.s32.totalorder %v225, %v353
        %vm366 = vcmp.eq.s32.totalorder %v225, %v354
        %vm367 = vcmp.eq.s32.totalorder %v225, %v355
        %vm368 = vcmp.eq.s32.totalorder %v226, %v352
        %vm369 = vcmp.eq.s32.totalorder %v226, %v353
        %vm370 = vcmp.eq.s32.totalorder %v226, %v354
        %vm371 = vcmp.eq.s32.totalorder %v226, %v355
        %vm372 = vcmp.eq.s32.totalorder %v227, %v352
        %vm373 = vcmp.eq.s32.totalorder %v227, %v353
        %vm374 = vcmp.eq.s32.totalorder %v227, %v354
        %vm375 = vcmp.eq.s32.totalorder %v227, %v355
        %vm376 = vcmp.eq.s32.totalorder %v228, %v352
        %vm377 = vcmp.eq.s32.totalorder %v228, %v353
        %vm378 = vcmp.eq.s32.totalorder %v228, %v354
        %vm379 = vcmp.eq.s32.totalorder %v228, %v355
        %vm380 = vcmp.eq.s32.totalorder %v229, %v352
        %vm381 = vcmp.eq.s32.totalorder %v229, %v353
        %vm382 = vcmp.eq.s32.totalorder %v229, %v354
        %vm383 = vcmp.eq.s32.totalorder %v229, %v355
        %vm384 = vcmp.eq.s32.totalorder %v230, %v352
        %vm385 = vcmp.eq.s32.totalorder %v230, %v353
        %vm386 = vcmp.eq.s32.totalorder %v230, %v354
        %vm387 = vcmp.eq.s32.totalorder %v230, %v355
        %vm388 = vcmp.eq.s32.totalorder %v231, %v352
        %vm389 = vcmp.eq.s32.totalorder %v231, %v353
        %vm390 = vcmp.eq.s32.totalorder %v231, %v354
        %vm391 = vcmp.eq.s32.totalorder %v231, %v355
        %vm392 = vcmp.eq.s32.totalorder %v232, %v352
        %vm393 = vcmp.eq.s32.totalorder %v232, %v353
        %vm394 = vcmp.eq.s32.totalorder %v232, %v354
        %vm395 = vcmp.eq.s32.totalorder %v232, %v355
        %vm396 = vcmp.eq.s32.totalorder %v233, %v352
        %vm397 = vcmp.eq.s32.totalorder %v233, %v353
        %vm398 = vcmp.eq.s32.totalorder %v233, %v354
        %vm399 = vcmp.eq.s32.totalorder %v233, %v355
        %vm400 = vcmp.eq.s32.totalorder %v234, %v352
        %vm401 = vcmp.eq.s32.totalorder %v234, %v353
        %vm402 = vcmp.eq.s32.totalorder %v234, %v354
        %vm403 = vcmp.eq.s32.totalorder %v234, %v355
        %vm404 = vcmp.eq.s32.totalorder %v235, %v352
        %vm405 = vcmp.eq.s32.totalorder %v235, %v353
        %vm406 = vcmp.eq.s32.totalorder %v235, %v354
        %vm407 = vcmp.eq.s32.totalorder %v235, %v355
        %vm408 = vcmp.eq.s32.totalorder %v236, %v352
        %vm409 = vcmp.eq.s32.totalorder %v236, %v353
        %vm410 = vcmp.eq.s32.totalorder %v236, %v354
        %vm411 = vcmp.eq.s32.totalorder %v236, %v355
        %vm412 = vcmp.eq.s32.totalorder %v237, %v352
        %vm413 = vcmp.eq.s32.totalorder %v237, %v353
        %vm414 = vcmp.eq.s32.totalorder %v237, %v354
        %vm415 = vcmp.eq.s32.totalorder %v237, %v355
        %vm416 = vcmp.eq.s32.totalorder %v238, %v352
        %vm417 = vcmp.eq.s32.totalorder %v238, %v353
        %vm418 = vcmp.eq.s32.totalorder %v238, %v354
        %vm419 = vcmp.eq.s32.totalorder %v238, %v355
        %vm420 = vcmp.eq.s32.totalorder %v239, %v352
        %vm421 = vcmp.eq.s32.totalorder %v239, %v353
        %vm422 = vcmp.eq.s32.totalorder %v239, %v354
        %vm423 = vcmp.eq.s32.totalorder %v239, %v355
        %vm424 = vcmp.eq.s32.totalorder %v240, %v352
        %vm425 = vcmp.eq.s32.totalorder %v240, %v353
        %vm426 = vcmp.eq.s32.totalorder %v240, %v354
        %vm427 = vcmp.eq.s32.totalorder %v240, %v355
        %vm428 = vcmp.eq.s32.totalorder %v241, %v352
        %vm429 = vcmp.eq.s32.totalorder %v241, %v353
        %vm430 = vcmp.eq.s32.totalorder %v241, %v354
        %vm431 = vcmp.eq.s32.totalorder %v241, %v355
        %vm432 = vcmp.eq.s32.totalorder %v242, %v352
        %vm433 = vcmp.eq.s32.totalorder %v242, %v353
        %vm434 = vcmp.eq.s32.totalorder %v242, %v354
        %vm435 = vcmp.eq.s32.totalorder %v242, %v355
        %vm436 = vcmp.eq.s32.totalorder %v243, %v352
        %vm437 = vcmp.eq.s32.totalorder %v243, %v353
        %vm438 = vcmp.eq.s32.totalorder %v243, %v354
        %vm439 = vcmp.eq.s32.totalorder %v243, %v355
        %vm440 = vcmp.eq.s32.totalorder %v244, %v352
        %vm441 = vcmp.eq.s32.totalorder %v244, %v353
        %vm442 = vcmp.eq.s32.totalorder %v244, %v354
        %vm443 = vcmp.eq.s32.totalorder %v244, %v355
        %vm444 = vcmp.eq.s32.totalorder %v245, %v352
        %vm445 = vcmp.eq.s32.totalorder %v245, %v353
        %vm446 = vcmp.eq.s32.totalorder %v245, %v354
        %vm447 = vcmp.eq.s32.totalorder %v245, %v355
        %vm448 = vcmp.eq.s32.totalorder %v246, %v352
        %vm449 = vcmp.eq.s32.totalorder %v246, %v353
        %vm450 = vcmp.eq.s32.totalorder %v246, %v354
        %vm451 = vcmp.eq.s32.totalorder %v246, %v355
        %vm452 = vcmp.eq.s32.totalorder %v247, %v352
        %vm453 = vcmp.eq.s32.totalorder %v247, %v353
        %vm454 = vcmp.eq.s32.totalorder %v247, %v354
        %vm455 = vcmp.eq.s32.totalorder %v247, %v355
        %vm456 = vcmp.eq.s32.totalorder %v248, %v352
        %vm457 = vcmp.eq.s32.totalorder %v248, %v353
        %vm458 = vcmp.eq.s32.totalorder %v248, %v354
        %vm459 = vcmp.eq.s32.totalorder %v248, %v355
        %vm460 = vcmp.eq.s32.totalorder %v249, %v352
        %vm461 = vcmp.eq.s32.totalorder %v249, %v353
        %vm462 = vcmp.eq.s32.totalorder %v249, %v354
        %vm463 = vcmp.eq.s32.totalorder %v249, %v355
        %vm464 = vcmp.eq.s32.totalorder %v250, %v352
        %vm465 = vcmp.eq.s32.totalorder %v250, %v353
        %vm466 = vcmp.eq.s32.totalorder %v250, %v354
        %vm467 = vcmp.eq.s32.totalorder %v250, %v355
        %vm468 = vcmp.eq.s32.totalorder %v251, %v352
        %vm469 = vcmp.eq.s32.totalorder %v251, %v353
        %vm470 = vcmp.eq.s32.totalorder %v251, %v354
        %vm471 = vcmp.eq.s32.totalorder %v251, %v355
        %vm472 = vcmp.eq.s32.totalorder %v252, %v352
        %vm473 = vcmp.eq.s32.totalorder %v252, %v353
        %vm474 = vcmp.eq.s32.totalorder %v252, %v354
        %vm475 = vcmp.eq.s32.totalorder %v252, %v355
        %vm476 = vcmp.eq.s32.totalorder %v253, %v352
        %vm477 = vcmp.eq.s32.totalorder %v253, %v353
        %vm478 = vcmp.eq.s32.totalorder %v253, %v354
        %vm479 = vcmp.eq.s32.totalorder %v253, %v355
        %vm480 = vcmp.eq.s32.totalorder %v254, %v352
        %vm481 = vcmp.eq.s32.totalorder %v254, %v353
        %vm482 = vcmp.eq.s32.totalorder %v254, %v354
        %vm483 = vcmp.eq.s32.totalorder %v254, %v355
        %vm484 = vcmp.eq.s32.totalorder %v255, %v352
        %vm485 = vcmp.eq.s32.totalorder %v255, %v353
        %vm486 = vcmp.eq.s32.totalorder %v255, %v354
        %vm487 = vcmp.eq.s32.totalorder %v255, %v355
        %vm488 = vcmp.eq.s32.totalorder %v256, %v352
        %vm489 = vcmp.eq.s32.totalorder %v256, %v353
        %vm490 = vcmp.eq.s32.totalorder %v256, %v354
        %vm491 = vcmp.eq.s32.totalorder %v256, %v355
        %vm492 = vcmp.eq.s32.totalorder %v257, %v352
        %vm493 = vcmp.eq.s32.totalorder %v257, %v353
        %vm494 = vcmp.eq.s32.totalorder %v257, %v354
        %vm495 = vcmp.eq.s32.totalorder %v257, %v355
        %vm496 = vcmp.eq.s32.totalorder %v258, %v352
        %vm497 = vcmp.eq.s32.totalorder %v258, %v353
        %vm498 = vcmp.eq.s32.totalorder %v258, %v354
        %vm499 = vcmp.eq.s32.totalorder %v258, %v355
        %vm500 = vcmp.eq.s32.totalorder %v259, %v352
        %vm501 = vcmp.eq.s32.totalorder %v259, %v353
        %vm502 = vcmp.eq.s32.totalorder %v259, %v354
        %vm503 = vcmp.eq.s32.totalorder %v259, %v355
        %vm504 = vcmp.eq.s32.totalorder %v260, %v352
        %vm505 = vcmp.eq.s32.totalorder %v260, %v353
        %vm506 = vcmp.eq.s32.totalorder %v260, %v354
        %vm507 = vcmp.eq.s32.totalorder %v260, %v355
        %vm508 = vcmp.eq.s32.totalorder %v261, %v352
        %vm509 = vcmp.eq.s32.totalorder %v261, %v353
        %vm510 = vcmp.eq.s32.totalorder %v261, %v354
        %vm511 = vcmp.eq.s32.totalorder %v261, %v355
        %vm512 = vcmp.eq.s32.totalorder %v262, %v352
        %vm513 = vcmp.eq.s32.totalorder %v262, %v353
        %vm514 = vcmp.eq.s32.totalorder %v262, %v354
        %vm515 = vcmp.eq.s32.totalorder %v262, %v355
        %vm516 = vcmp.eq.s32.totalorder %v263, %v352
        %vm517 = vcmp.eq.s32.totalorder %v263, %v353
        %vm518 = vcmp.eq.s32.totalorder %v263, %v354
        %vm519 = vcmp.eq.s32.totalorder %v263, %v355
        %vm520 = vcmp.eq.s32.totalorder %v264, %v352
        %vm521 = vcmp.eq.s32.totalorder %v264, %v353
        %vm522 = vcmp.eq.s32.totalorder %v264, %v354
        %vm523 = vcmp.eq.s32.totalorder %v264, %v355
        %vm524 = vcmp.eq.s32.totalorder %v265, %v352
        %vm525 = vcmp.eq.s32.totalorder %v265, %v353
        %vm526 = vcmp.eq.s32.totalorder %v265, %v354
        %vm527 = vcmp.eq.s32.totalorder %v265, %v355
        %vm528 = vcmp.eq.s32.totalorder %v266, %v352
        %vm529 = vcmp.eq.s32.totalorder %v266, %v353
        %vm530 = vcmp.eq.s32.totalorder %v266, %v354
        %vm531 = vcmp.eq.s32.totalorder %v266, %v355
        %vm532 = vcmp.eq.s32.totalorder %v267, %v352
        %vm533 = vcmp.eq.s32.totalorder %v267, %v353
        %vm534 = vcmp.eq.s32.totalorder %v267, %v354
        %vm535 = vcmp.eq.s32.totalorder %v267, %v355
        %vm536 = vcmp.eq.s32.totalorder %v268, %v352
        %vm537 = vcmp.eq.s32.totalorder %v268, %v353
        %vm538 = vcmp.eq.s32.totalorder %v268, %v354
        %vm539 = vcmp.eq.s32.totalorder %v268, %v355
        %vm540 = vcmp.eq.s32.totalorder %v269, %v352
        %vm541 = vcmp.eq.s32.totalorder %v269, %v353
        %vm542 = vcmp.eq.s32.totalorder %v269, %v354
        %vm543 = vcmp.eq.s32.totalorder %v269, %v355
        %vm544 = vcmp.eq.s32.totalorder %v270, %v352
        %vm545 = vcmp.eq.s32.totalorder %v270, %v353
        %vm546 = vcmp.eq.s32.totalorder %v270, %v354
        %vm547 = vcmp.eq.s32.totalorder %v270, %v355
        %vm548 = vcmp.eq.s32.totalorder %v271, %v352
        %vm549 = vcmp.eq.s32.totalorder %v271, %v353
        %vm550 = vcmp.eq.s32.totalorder %v271, %v354
        %vm551 = vcmp.eq.s32.totalorder %v271, %v355
        %vm552 = vcmp.eq.s32.totalorder %v272, %v352
        %vm553 = vcmp.eq.s32.totalorder %v272, %v353
        %vm554 = vcmp.eq.s32.totalorder %v272, %v354
        %vm555 = vcmp.eq.s32.totalorder %v272, %v355
        %vm556 = vcmp.eq.s32.totalorder %v273, %v352
        %vm557 = vcmp.eq.s32.totalorder %v273, %v353
        %vm558 = vcmp.eq.s32.totalorder %v273, %v354
        %vm559 = vcmp.eq.s32.totalorder %v273, %v355
        %vm560 = vcmp.eq.s32.totalorder %v274, %v352
        %vm561 = vcmp.eq.s32.totalorder %v274, %v353
        %vm562 = vcmp.eq.s32.totalorder %v274, %v354
        %vm563 = vcmp.eq.s32.totalorder %v274, %v355
        %vm564 = vcmp.eq.s32.totalorder %v275, %v352
        %vm565 = vcmp.eq.s32.totalorder %v275, %v353
        %vm566 = vcmp.eq.s32.totalorder %v275, %v354
        %vm567 = vcmp.eq.s32.totalorder %v275, %v355
        %vm568 = vcmp.eq.s32.totalorder %v276, %v352
        %vm569 = vcmp.eq.s32.totalorder %v276, %v353
        %vm570 = vcmp.eq.s32.totalorder %v276, %v354
        %vm571 = vcmp.eq.s32.totalorder %v276, %v355
        %vm572 = vcmp.eq.s32.totalorder %v277, %v352
        %vm573 = vcmp.eq.s32.totalorder %v277, %v353
        %vm574 = vcmp.eq.s32.totalorder %v277, %v354
        %vm575 = vcmp.eq.s32.totalorder %v277, %v355
        %vm576 = vcmp.eq.s32.totalorder %v278, %v352
        %vm577 = vcmp.eq.s32.totalorder %v278, %v353
        %vm578 = vcmp.eq.s32.totalorder %v278, %v354
        %vm579 = vcmp.eq.s32.totalorder %v278, %v355
        %vm580 = vcmp.eq.s32.totalorder %v279, %v352
        %vm581 = vcmp.eq.s32.totalorder %v279, %v353
        %vm582 = vcmp.eq.s32.totalorder %v279, %v354
        %vm583 = vcmp.eq.s32.totalorder %v279, %v355
        %vm584 = vcmp.eq.s32.totalorder %v280, %v352
        %vm585 = vcmp.eq.s32.totalorder %v280, %v353
        %vm586 = vcmp.eq.s32.totalorder %v280, %v354
        %vm587 = vcmp.eq.s32.totalorder %v280, %v355
        %vm588 = vcmp.eq.s32.totalorder %v281, %v352
        %vm589 = vcmp.eq.s32.totalorder %v281, %v353
        %vm590 = vcmp.eq.s32.totalorder %v281, %v354
        %vm591 = vcmp.eq.s32.totalorder %v281, %v355
        %vm592 = vcmp.eq.s32.totalorder %v282, %v352
        %vm593 = vcmp.eq.s32.totalorder %v282, %v353
        %vm594 = vcmp.eq.s32.totalorder %v282, %v354
        %vm595 = vcmp.eq.s32.totalorder %v282, %v355
        %vm596 = vcmp.eq.s32.totalorder %v283, %v352
        %vm597 = vcmp.eq.s32.totalorder %v283, %v353
        %vm598 = vcmp.eq.s32.totalorder %v283, %v354
        %vm599 = vcmp.eq.s32.totalorder %v283, %v355
        %vm600 = vcmp.eq.s32.totalorder %v284, %v352
        %vm601 = vcmp.eq.s32.totalorder %v284, %v353
        %vm602 = vcmp.eq.s32.totalorder %v284, %v354
        %vm603 = vcmp.eq.s32.totalorder %v284, %v355
        %vm604 = vcmp.eq.s32.totalorder %v285, %v352
        %vm605 = vcmp.eq.s32.totalorder %v285, %v353
        %vm606 = vcmp.eq.s32.totalorder %v285, %v354
        %vm607 = vcmp.eq.s32.totalorder %v285, %v355
        %vm608 = vcmp.eq.s32.totalorder %v286, %v352
        %vm609 = vcmp.eq.s32.totalorder %v286, %v353
        %vm610 = vcmp.eq.s32.totalorder %v286, %v354
        %vm611 = vcmp.eq.s32.totalorder %v286, %v355
        %vm612 = vcmp.eq.s32.totalorder %v287, %v352
        %vm613 = vcmp.eq.s32.totalorder %v287, %v353
        %vm614 = vcmp.eq.s32.totalorder %v287, %v354
        %vm615 = vcmp.eq.s32.totalorder %v287, %v355
        %vm616 = vcmp.eq.s32.totalorder %v288, %v352
        %vm617 = vcmp.eq.s32.totalorder %v288, %v353
        %vm618 = vcmp.eq.s32.totalorder %v288, %v354
        %vm619 = vcmp.eq.s32.totalorder %v288, %v355
        %vm620 = vcmp.eq.s32.totalorder %v289, %v352
        %vm621 = vcmp.eq.s32.totalorder %v289, %v353
        %vm622 = vcmp.eq.s32.totalorder %v289, %v354
        %vm623 = vcmp.eq.s32.totalorder %v289, %v355
        %vm624 = vcmp.eq.s32.totalorder %v290, %v352
        %vm625 = vcmp.eq.s32.totalorder %v290, %v353
        %vm626 = vcmp.eq.s32.totalorder %v290, %v354
        %vm627 = vcmp.eq.s32.totalorder %v290, %v355
        %vm628 = vcmp.eq.s32.totalorder %v291, %v352
        %vm629 = vcmp.eq.s32.totalorder %v291, %v353
        %vm630 = vcmp.eq.s32.totalorder %v291, %v354
        %vm631 = vcmp.eq.s32.totalorder %v291, %v355
        %vm632 = vcmp.eq.s32.totalorder %v292, %v352
        %vm633 = vcmp.eq.s32.totalorder %v292, %v353
        %vm634 = vcmp.eq.s32.totalorder %v292, %v354
        %vm635 = vcmp.eq.s32.totalorder %v292, %v355
        %vm636 = vcmp.eq.s32.totalorder %v293, %v352
        %vm637 = vcmp.eq.s32.totalorder %v293, %v353
        %vm638 = vcmp.eq.s32.totalorder %v293, %v354
        %vm639 = vcmp.eq.s32.totalorder %v293, %v355
        %vm640 = vcmp.eq.s32.totalorder %v294, %v352
        %vm641 = vcmp.eq.s32.totalorder %v294, %v353
        %vm642 = vcmp.eq.s32.totalorder %v294, %v354
        %vm643 = vcmp.eq.s32.totalorder %v294, %v355
        %vm644 = vcmp.eq.s32.totalorder %v295, %v352
        %vm645 = vcmp.eq.s32.totalorder %v295, %v353
        %vm646 = vcmp.eq.s32.totalorder %v295, %v354
        %vm647 = vcmp.eq.s32.totalorder %v295, %v355
        %vm648 = vcmp.eq.s32.totalorder %v296, %v352
        %vm649 = vcmp.eq.s32.totalorder %v296, %v353
        %vm650 = vcmp.eq.s32.totalorder %v296, %v354
        %vm651 = vcmp.eq.s32.totalorder %v296, %v355
        %vm652 = vcmp.eq.s32.totalorder %v297, %v352
        %vm653 = vcmp.eq.s32.totalorder %v297, %v353
        %vm654 = vcmp.eq.s32.totalorder %v297, %v354
        %vm655 = vcmp.eq.s32.totalorder %v297, %v355
        %vm656 = vcmp.eq.s32.totalorder %v298, %v352
        %vm657 = vcmp.eq.s32.totalorder %v298, %v353
        %vm658 = vcmp.eq.s32.totalorder %v298, %v354
        %vm659 = vcmp.eq.s32.totalorder %v298, %v355
        %vm660 = vcmp.eq.s32.totalorder %v299, %v352
        %vm661 = vcmp.eq.s32.totalorder %v299, %v353
        %vm662 = vcmp.eq.s32.totalorder %v299, %v354
        %vm663 = vcmp.eq.s32.totalorder %v299, %v355
        %vm664 = vcmp.eq.s32.totalorder %v300, %v352
        %vm665 = vcmp.eq.s32.totalorder %v300, %v353
        %vm666 = vcmp.eq.s32.totalorder %v300, %v354
        %vm667 = vcmp.eq.s32.totalorder %v300, %v355
        %vm668 = vcmp.eq.s32.totalorder %v301, %v352
        %vm669 = vcmp.eq.s32.totalorder %v301, %v353
        %vm670 = vcmp.eq.s32.totalorder %v301, %v354
        %vm671 = vcmp.eq.s32.totalorder %v301, %v355
        %vm672 = vcmp.eq.s32.totalorder %v302, %v352
        %vm673 = vcmp.eq.s32.totalorder %v302, %v353
        %vm674 = vcmp.eq.s32.totalorder %v302, %v354
        %vm675 = vcmp.eq.s32.totalorder %v302, %v355
        %vm676 = vcmp.eq.s32.totalorder %v303, %v352
        %vm677 = vcmp.eq.s32.totalorder %v303, %v353
        %vm678 = vcmp.eq.s32.totalorder %v303, %v354
        %vm679 = vcmp.eq.s32.totalorder %v303, %v355
        %vm680 = vcmp.eq.s32.totalorder %v304, %v352
        %vm681 = vcmp.eq.s32.totalorder %v304, %v353
        %vm682 = vcmp.eq.s32.totalorder %v304, %v354
        %vm683 = vcmp.eq.s32.totalorder %v304, %v355
        %vm684 = vcmp.eq.s32.totalorder %v305, %v352
        %vm685 = vcmp.eq.s32.totalorder %v305, %v353
        %vm686 = vcmp.eq.s32.totalorder %v305, %v354
        %vm687 = vcmp.eq.s32.totalorder %v305, %v355
        %vm688 = vcmp.eq.s32.totalorder %v306, %v352
        %vm689 = vcmp.eq.s32.totalorder %v306, %v353
        %vm690 = vcmp.eq.s32.totalorder %v306, %v354
        %vm691 = vcmp.eq.s32.totalorder %v306, %v355
        %vm692 = vcmp.eq.s32.totalorder %v307, %v352
        %vm693 = vcmp.eq.s32.totalorder %v307, %v353
        %vm694 = vcmp.eq.s32.totalorder %v307, %v354
        %vm695 = vcmp.eq.s32.totalorder %v307, %v355
        %vm696 = vcmp.eq.s32.totalorder %v308, %v352
        %vm697 = vcmp.eq.s32.totalorder %v308, %v353
        %vm698 = vcmp.eq.s32.totalorder %v308, %v354
        %vm699 = vcmp.eq.s32.totalorder %v308, %v355
        %vm700 = vcmp.eq.s32.totalorder %v309, %v352
        %vm701 = vcmp.eq.s32.totalorder %v309, %v353
        %vm702 = vcmp.eq.s32.totalorder %v309, %v354
        %vm703 = vcmp.eq.s32.totalorder %v309, %v355
        %vm704 = vcmp.eq.s32.totalorder %v310, %v352
        %vm705 = vcmp.eq.s32.totalorder %v310, %v353
        %vm706 = vcmp.eq.s32.totalorder %v310, %v354
        %vm707 = vcmp.eq.s32.totalorder %v310, %v355
        %vm708 = vcmp.eq.s32.totalorder %v311, %v352
        %vm709 = vcmp.eq.s32.totalorder %v311, %v353
        %vm710 = vcmp.eq.s32.totalorder %v311, %v354
        %vm711 = vcmp.eq.s32.totalorder %v311, %v355
        %vm712 = vcmp.eq.s32.totalorder %v312, %v352
        %vm713 = vcmp.eq.s32.totalorder %v312, %v353
        %vm714 = vcmp.eq.s32.totalorder %v312, %v354
        %vm715 = vcmp.eq.s32.totalorder %v312, %v355
        %vm716 = vcmp.eq.s32.totalorder %v313, %v352
        %vm717 = vcmp.eq.s32.totalorder %v313, %v353
        %vm718 = vcmp.eq.s32.totalorder %v313, %v354
        %vm719 = vcmp.eq.s32.totalorder %v313, %v355
        %vm720 = vcmp.eq.s32.totalorder %v314, %v352
        %vm721 = vcmp.eq.s32.totalorder %v314, %v353
        %vm722 = vcmp.eq.s32.totalorder %v314, %v354
        %vm723 = vcmp.eq.s32.totalorder %v314, %v355
        %vm724 = vcmp.eq.s32.totalorder %v315, %v352
        %vm725 = vcmp.eq.s32.totalorder %v315, %v353
        %vm726 = vcmp.eq.s32.totalorder %v315, %v354
        %vm727 = vcmp.eq.s32.totalorder %v315, %v355
        %vm728 = vcmp.eq.s32.totalorder %v316, %v352
        %vm729 = vcmp.eq.s32.totalorder %v316, %v353
        %vm730 = vcmp.eq.s32.totalorder %v316, %v354
        %vm731 = vcmp.eq.s32.totalorder %v316, %v355
        %vm732 = vcmp.eq.s32.totalorder %v317, %v352
        %vm733 = vcmp.eq.s32.totalorder %v317, %v353
        %vm734 = vcmp.eq.s32.totalorder %v317, %v354
        %vm735 = vcmp.eq.s32.totalorder %v317, %v355
        %vm736 = vcmp.eq.s32.totalorder %v318, %v352
        %vm737 = vcmp.eq.s32.totalorder %v318, %v353
        %vm738 = vcmp.eq.s32.totalorder %v318, %v354
        %vm739 = vcmp.eq.s32.totalorder %v318, %v355
        %vm740 = vcmp.eq.s32.totalorder %v319, %v352
        %vm741 = vcmp.eq.s32.totalorder %v319, %v353
        %vm742 = vcmp.eq.s32.totalorder %v319, %v354
        %vm743 = vcmp.eq.s32.totalorder %v319, %v355
        %vm744 = vcmp.eq.s32.totalorder %v320, %v352
        %vm745 = vcmp.eq.s32.totalorder %v320, %v353
        %vm746 = vcmp.eq.s32.totalorder %v320, %v354
        %vm747 = vcmp.eq.s32.totalorder %v320, %v355
        %vm748 = vcmp.eq.s32.totalorder %v321, %v352
        %vm749 = vcmp.eq.s32.totalorder %v321, %v353
        %vm750 = vcmp.eq.s32.totalorder %v321, %v354
        %vm751 = vcmp.eq.s32.totalorder %v321, %v355
        %vm752 = vcmp.eq.s32.totalorder %v322, %v352
        %vm753 = vcmp.eq.s32.totalorder %v322, %v353
        %vm754 = vcmp.eq.s32.totalorder %v322, %v354
        %vm755 = vcmp.eq.s32.totalorder %v322, %v355
        %vm756 = vcmp.eq.s32.totalorder %v323, %v352
        %vm757 = vcmp.eq.s32.totalorder %v323, %v353
        %vm758 = vcmp.eq.s32.totalorder %v323, %v354
        %vm759 = vcmp.eq.s32.totalorder %v323, %v355
        %vm760 = vcmp.eq.s32.totalorder %v324, %v352
        %vm761 = vcmp.eq.s32.totalorder %v324, %v353
        %vm762 = vcmp.eq.s32.totalorder %v324, %v354
        %vm763 = vcmp.eq.s32.totalorder %v324, %v355
        %vm764 = vcmp.eq.s32.totalorder %v325, %v352
        %vm765 = vcmp.eq.s32.totalorder %v325, %v353
        %vm766 = vcmp.eq.s32.totalorder %v325, %v354
        %vm767 = vcmp.eq.s32.totalorder %v325, %v355
        %vm768 = vcmp.eq.s32.totalorder %v326, %v352
        %vm769 = vcmp.eq.s32.totalorder %v326, %v353
        %vm770 = vcmp.eq.s32.totalorder %v326, %v354
        %vm771 = vcmp.eq.s32.totalorder %v326, %v355
        %vm772 = vcmp.eq.s32.totalorder %v327, %v352
        %vm773 = vcmp.eq.s32.totalorder %v327, %v353
        %vm774 = vcmp.eq.s32.totalorder %v327, %v354
        %vm775 = vcmp.eq.s32.totalorder %v327, %v355
        %vm776 = vcmp.eq.s32.totalorder %v328, %v352
        %vm777 = vcmp.eq.s32.totalorder %v328, %v353
        %vm778 = vcmp.eq.s32.totalorder %v328, %v354
        %vm779 = vcmp.eq.s32.totalorder %v328, %v355
        %vm780 = vcmp.eq.s32.totalorder %v329, %v352
        %vm781 = vcmp.eq.s32.totalorder %v329, %v353
        %vm782 = vcmp.eq.s32.totalorder %v329, %v354
        %vm783 = vcmp.eq.s32.totalorder %v329, %v355
        %vm784 = vcmp.eq.s32.totalorder %v330, %v352
        %vm785 = vcmp.eq.s32.totalorder %v330, %v353
        %vm786 = vcmp.eq.s32.totalorder %v330, %v354
        %vm787 = vcmp.eq.s32.totalorder %v330, %v355
        %vm788 = vcmp.eq.s32.totalorder %v331, %v352
        %vm789 = vcmp.eq.s32.totalorder %v331, %v353
        %vm790 = vcmp.eq.s32.totalorder %v331, %v354
        %vm791 = vcmp.eq.s32.totalorder %v331, %v355
        %vm792 = vcmp.eq.s32.totalorder %v332, %v352
        %vm793 = vcmp.eq.s32.totalorder %v332, %v353
        %vm794 = vcmp.eq.s32.totalorder %v332, %v354
        %vm795 = vcmp.eq.s32.totalorder %v332, %v355
        %vm796 = vcmp.eq.s32.totalorder %v333, %v352
        %vm797 = vcmp.eq.s32.totalorder %v333, %v353
        %vm798 = vcmp.eq.s32.totalorder %v333, %v354
        %vm799 = vcmp.eq.s32.totalorder %v333, %v355
        %vm800 = vcmp.eq.s32.totalorder %v334, %v352
        %vm801 = vcmp.eq.s32.totalorder %v334, %v353
        %vm802 = vcmp.eq.s32.totalorder %v334, %v354
        %vm803 = vcmp.eq.s32.totalorder %v334, %v355
        %vm804 = vcmp.eq.s32.totalorder %v335, %v352
        %vm805 = vcmp.eq.s32.totalorder %v335, %v353
        %vm806 = vcmp.eq.s32.totalorder %v335, %v354
        %vm807 = vcmp.eq.s32.totalorder %v335, %v355
        %vm808 = vcmp.eq.s32.totalorder %v336, %v352
        %vm809 = vcmp.eq.s32.totalorder %v336, %v353
        %vm810 = vcmp.eq.s32.totalorder %v336, %v354
        %vm811 = vcmp.eq.s32.totalorder %v336, %v355
        %vm812 = vcmp.eq.s32.totalorder %v337, %v352
        %vm813 = vcmp.eq.s32.totalorder %v337, %v353
        %vm814 = vcmp.eq.s32.totalorder %v337, %v354
        %vm815 = vcmp.eq.s32.totalorder %v337, %v355
        %vm816 = vcmp.eq.s32.totalorder %v338, %v352
        %vm817 = vcmp.eq.s32.totalorder %v338, %v353
        %vm818 = vcmp.eq.s32.totalorder %v338, %v354
        %vm819 = vcmp.eq.s32.totalorder %v338, %v355
        %vm820 = vcmp.eq.s32.totalorder %v339, %v352
        %vm821 = vcmp.eq.s32.totalorder %v339, %v353
        %vm822 = vcmp.eq.s32.totalorder %v339, %v354
        %vm823 = vcmp.eq.s32.totalorder %v339, %v355
        %vm824 = vcmp.eq.s32.totalorder %v340, %v352
        %vm825 = vcmp.eq.s32.totalorder %v340, %v353
        %vm826 = vcmp.eq.s32.totalorder %v340, %v354
        %vm827 = vcmp.eq.s32.totalorder %v340, %v355
        %vm828 = vcmp.eq.s32.totalorder %v341, %v352
        %vm829 = vcmp.eq.s32.totalorder %v341, %v353
        %vm830 = vcmp.eq.s32.totalorder %v341, %v354
        %vm831 = vcmp.eq.s32.totalorder %v341, %v355
        %vm832 = vcmp.eq.s32.totalorder %v342, %v352
        %vm833 = vcmp.eq.s32.totalorder %v342, %v353
        %vm834 = vcmp.eq.s32.totalorder %v342, %v354
        %vm835 = vcmp.eq.s32.totalorder %v342, %v355
        %vm836 = vcmp.eq.s32.totalorder %v343, %v352
        %vm837 = vcmp.eq.s32.totalorder %v343, %v353
        %vm838 = vcmp.eq.s32.totalorder %v343, %v354
        %vm839 = vcmp.eq.s32.totalorder %v343, %v355
        %vm840 = vcmp.eq.s32.totalorder %v344, %v352
        %vm841 = vcmp.eq.s32.totalorder %v344, %v353
        %vm842 = vcmp.eq.s32.totalorder %v344, %v354
        %vm843 = vcmp.eq.s32.totalorder %v344, %v355
        %vm844 = vcmp.eq.s32.totalorder %v345, %v352
        %vm845 = vcmp.eq.s32.totalorder %v345, %v353
        %vm846 = vcmp.eq.s32.totalorder %v345, %v354
        %vm847 = vcmp.eq.s32.totalorder %v345, %v355
        %vm848 = vcmp.eq.s32.totalorder %v346, %v352
        %vm849 = vcmp.eq.s32.totalorder %v346, %v353
        %vm850 = vcmp.eq.s32.totalorder %v346, %v354
        %vm851 = vcmp.eq.s32.totalorder %v346, %v355
        %vm852 = vcmp.eq.s32.totalorder %v347, %v352
        %vm853 = vcmp.eq.s32.totalorder %v347, %v353
        %vm854 = vcmp.eq.s32.totalorder %v347, %v354
        %vm855 = vcmp.eq.s32.totalorder %v347, %v355
        %vm856 = vcmp.eq.s32.totalorder %v348, %v352
        %vm857 = vcmp.eq.s32.totalorder %v348, %v353
        %vm858 = vcmp.eq.s32.totalorder %v348, %v354
        %vm859 = vcmp.eq.s32.totalorder %v348, %v355
        %vm860 = vcmp.eq.s32.totalorder %v349, %v352
        %vm861 = vcmp.eq.s32.totalorder %v349, %v353
        %vm862 = vcmp.eq.s32.totalorder %v349, %v354
        %vm863 = vcmp.eq.s32.totalorder %v349, %v355
        %vm864 = vcmp.eq.s32.totalorder %v350, %v352
        %vm865 = vcmp.eq.s32.totalorder %v350, %v353
        %vm866 = vcmp.eq.s32.totalorder %v350, %v354
        %vm867 = vcmp.eq.s32.totalorder %v350, %v355
        %v868 = vsel %vm356, 1, 0
        %v869 = vsel %vm357, 1, 0
        %v870 = vsel %vm358, 1, 0
        %v871 = vsel %vm359, 1, 0
        %v872 = vsel %vm360, 1, 0
        %v873 = vsel %vm361, 1, 0
        %v874 = vsel %vm362, 1, 0
        %v875 = vsel %vm363, 1, 0
        %v876 = vsel %vm364, 1, 0
        %v877 = vsel %vm365, 1, 0
        %v878 = vsel %vm366, 1, 0
        %v879 = vsel %vm367, 1, 0
        %v880 = vsel %vm368, 1, 0
        %v881 = vsel %vm369, 1, 0
        %v882 = vsel %vm370, 1, 0
        %v883 = vsel %vm371, 1, 0
        %v884 = vsel %vm372, 1, 0
        %v885 = vsel %vm373, 1, 0
        %v886 = vsel %vm374, 1, 0
        %v887 = vsel %vm375, 1, 0
        %v888 = vsel %vm376, 1, 0
        %v889 = vsel %vm377, 1, 0
        %v890 = vsel %vm378, 1, 0
        %v891 = vsel %vm379, 1, 0
        %v892 = vsel %vm380, 1, 0
        %v893 = vsel %vm381, 1, 0
        %v894 = vsel %vm382, 1, 0
        %v895 = vsel %vm383, 1, 0
        %v896 = vsel %vm384, 1, 0
        %v897 = vsel %vm385, 1, 0
        %v898 = vsel %vm386, 1, 0
        %v899 = vsel %vm387, 1, 0
        %v900 = vsel %vm388, 1, 0
        %v901 = vsel %vm389, 1, 0
        %v902 = vsel %vm390, 1, 0
        %v903 = vsel %vm391, 1, 0
        %v904 = vsel %vm392, 1, 0
        %v905 = vsel %vm393, 1, 0
        %v906 = vsel %vm394, 1, 0
        %v907 = vsel %vm395, 1, 0
        %v908 = vsel %vm396, 1, 0
        %v909 = vsel %vm397, 1, 0
        %v910 = vsel %vm398, 1, 0
        %v911 = vsel %vm399, 1, 0
        %v912 = vsel %vm400, 1, 0
        %v913 = vsel %vm401, 1, 0
        %v914 = vsel %vm402, 1, 0
        %v915 = vsel %vm403, 1, 0
        %v916 = vsel %vm404, 1, 0
        %v917 = vsel %vm405, 1, 0
        %v918 = vsel %vm406, 1, 0
        %v919 = vsel %vm407, 1, 0
        %v920 = vsel %vm408, 1, 0
        %v921 = vsel %vm409, 1, 0
        %v922 = vsel %vm410, 1, 0
        %v923 = vsel %vm411, 1, 0
        %v924 = vsel %vm412, 1, 0
        %v925 = vsel %vm413, 1, 0
        %v926 = vsel %vm414, 1, 0
        %v927 = vsel %vm415, 1, 0
        %v928 = vsel %vm416, 1, 0
        %v929 = vsel %vm417, 1, 0
        %v930 = vsel %vm418, 1, 0
        %v931 = vsel %vm419, 1, 0
        %v932 = vsel %vm420, 1, 0
        %v933 = vsel %vm421, 1, 0
        %v934 = vsel %vm422, 1, 0
        %v935 = vsel %vm423, 1, 0
        %v936 = vsel %vm424, 1, 0
        %v937 = vsel %vm425, 1, 0
        %v938 = vsel %vm426, 1, 0
        %v939 = vsel %vm427, 1, 0
        %v940 = vsel %vm428, 1, 0
        %v941 = vsel %vm429, 1, 0
        %v942 = vsel %vm430, 1, 0
        %v943 = vsel %vm431, 1, 0
        %v944 = vsel %vm432, 1, 0
        %v945 = vsel %vm433, 1, 0
        %v946 = vsel %vm434, 1, 0
        %v947 = vsel %vm435, 1, 0
        %v948 = vsel %vm436, 1, 0
        %v949 = vsel %vm437, 1, 0
        %v950 = vsel %vm438, 1, 0
        %v951 = vsel %vm439, 1, 0
        %v952 = vsel %vm440, 1, 0
        %v953 = vsel %vm441, 1, 0
        %v954 = vsel %vm442, 1, 0
        %v955 = vsel %vm443, 1, 0
        %v956 = vsel %vm444, 1, 0
        %v957 = vsel %vm445, 1, 0
        %v958 = vsel %vm446, 1, 0
        %v959 = vsel %vm447, 1, 0
        %v960 = vsel %vm448, 1, 0
        %v961 = vsel %vm449, 1, 0
        %v962 = vsel %vm450, 1, 0
        %v963 = vsel %vm451, 1, 0
        %v964 = vsel %vm452, 1, 0
        %v965 = vsel %vm453, 1, 0
        %v966 = vsel %vm454, 1, 0
        %v967 = vsel %vm455, 1, 0
        %v968 = vsel %vm456, 1, 0
        %v969 = vsel %vm457, 1, 0
        %v970 = vsel %vm458, 1, 0
        %v971 = vsel %vm459, 1, 0
        %v972 = vsel %vm460, 1, 0
        %v973 = vsel %vm461, 1, 0
        %v974 = vsel %vm462, 1, 0
        %v975 = vsel %vm463, 1, 0
        %v976 = vsel %vm464, 1, 0
        %v977 = vsel %vm465, 1, 0
        %v978 = vsel %vm466, 1, 0
        %v979 = vsel %vm467, 1, 0
        %v980 = vsel %vm468, 1, 0
        %v981 = vsel %vm469, 1, 0
        %v982 = vsel %vm470, 1, 0
        %v983 = vsel %vm471, 1, 0
        %v984 = vsel %vm472, 1, 0
        %v985 = vsel %vm473, 1, 0
        %v986 = vsel %vm474, 1, 0
        %v987 = vsel %vm475, 1, 0
        %v988 = vsel %vm476, 1, 0
        %v989 = vsel %vm477, 1, 0
        %v990 = vsel %vm478, 1, 0
        %v991 = vsel %vm479, 1, 0
        %v992 = vsel %vm480, 1, 0
        %v993 = vsel %vm481, 1, 0
        %v994 = vsel %vm482, 1, 0
        %v995 = vsel %vm483, 1, 0
        %v996 = vsel %vm484, 1, 0
        %v997 = vsel %vm485, 1, 0
        %v998 = vsel %vm486, 1, 0
        %v999 = vsel %vm487, 1, 0
        %v1000 = vsel %vm488, 1, 0
        %v1001 = vsel %vm489, 1, 0
        %v1002 = vsel %vm490, 1, 0
        %v1003 = vsel %vm491, 1, 0
        %v1004 = vsel %vm492, 1, 0
        %v1005 = vsel %vm493, 1, 0
        %v1006 = vsel %vm494, 1, 0
        %v1007 = vsel %vm495, 1, 0
        %v1008 = vsel %vm496, 1, 0
        %v1009 = vsel %vm497, 1, 0
        %v1010 = vsel %vm498, 1, 0
        %v1011 = vsel %vm499, 1, 0
        %v1012 = vsel %vm500, 1, 0
        %v1013 = vsel %vm501, 1, 0
        %v1014 = vsel %vm502, 1, 0
        %v1015 = vsel %vm503, 1, 0
        %v1016 = vsel %vm504, 1, 0
        %v1017 = vsel %vm505, 1, 0
        %v1018 = vsel %vm506, 1, 0
        %v1019 = vsel %vm507, 1, 0
        %v1020 = vsel %vm508, 1, 0
        %v1021 = vsel %vm509, 1, 0
        %v1022 = vsel %vm510, 1, 0
        %v1023 = vsel %vm511, 1, 0
        %v1024 = vsel %vm512, 1, 0
        %v1025 = vsel %vm513, 1, 0
        %v1026 = vsel %vm514, 1, 0
        %v1027 = vsel %vm515, 1, 0
        %v1028 = vsel %vm516, 1, 0
        %v1029 = vsel %vm517, 1, 0
        %v1030 = vsel %vm518, 1, 0
        %v1031 = vsel %vm519, 1, 0
        %v1032 = vsel %vm520, 1, 0
        %v1033 = vsel %vm521, 1, 0
        %v1034 = vsel %vm522, 1, 0
        %v1035 = vsel %vm523, 1, 0
        %v1036 = vsel %vm524, 1, 0
        %v1037 = vsel %vm525, 1, 0
        %v1038 = vsel %vm526, 1, 0
        %v1039 = vsel %vm527, 1, 0
        %v1040 = vsel %vm528, 1, 0
        %v1041 = vsel %vm529, 1, 0
        %v1042 = vsel %vm530, 1, 0
        %v1043 = vsel %vm531, 1, 0
        %v1044 = vsel %vm532, 1, 0
        %v1045 = vsel %vm533, 1, 0
        %v1046 = vsel %vm534, 1, 0
        %v1047 = vsel %vm535, 1, 0
        %v1048 = vsel %vm536, 1, 0
        %v1049 = vsel %vm537, 1, 0
        %v1050 = vsel %vm538, 1, 0
        %v1051 = vsel %vm539, 1, 0
        %v1052 = vsel %vm540, 1, 0
        %v1053 = vsel %vm541, 1, 0
        %v1054 = vsel %vm542, 1, 0
        %v1055 = vsel %vm543, 1, 0
        %v1056 = vsel %vm544, 1, 0
        %v1057 = vsel %vm545, 1, 0
        %v1058 = vsel %vm546, 1, 0
        %v1059 = vsel %vm547, 1, 0
        %v1060 = vsel %vm548, 1, 0
        %v1061 = vsel %vm549, 1, 0
        %v1062 = vsel %vm550, 1, 0
        %v1063 = vsel %vm551, 1, 0
        %v1064 = vsel %vm552, 1, 0
        %v1065 = vsel %vm553, 1, 0
        %v1066 = vsel %vm554, 1, 0
        %v1067 = vsel %vm555, 1, 0
        %v1068 = vsel %vm556, 1, 0
        %v1069 = vsel %vm557, 1, 0
        %v1070 = vsel %vm558, 1, 0
        %v1071 = vsel %vm559, 1, 0
        %v1072 = vsel %vm560, 1, 0
        %v1073 = vsel %vm561, 1, 0
        %v1074 = vsel %vm562, 1, 0
        %v1075 = vsel %vm563, 1, 0
        %v1076 = vsel %vm564, 1, 0
        %v1077 = vsel %vm565, 1, 0
        %v1078 = vsel %vm566, 1, 0
        %v1079 = vsel %vm567, 1, 0
        %v1080 = vsel %vm568, 1, 0
        %v1081 = vsel %vm569, 1, 0
        %v1082 = vsel %vm570, 1, 0
        %v1083 = vsel %vm571, 1, 0
        %v1084 = vsel %vm572, 1, 0
        %v1085 = vsel %vm573, 1, 0
        %v1086 = vsel %vm574, 1, 0
        %v1087 = vsel %vm575, 1, 0
        %v1088 = vsel %vm576, 1, 0
        %v1089 = vsel %vm577, 1, 0
        %v1090 = vsel %vm578, 1, 0
        %v1091 = vsel %vm579, 1, 0
        %v1092 = vsel %vm580, 1, 0
        %v1093 = vsel %vm581, 1, 0
        %v1094 = vsel %vm582, 1, 0
        %v1095 = vsel %vm583, 1, 0
        %v1096 = vsel %vm584, 1, 0
        %v1097 = vsel %vm585, 1, 0
        %v1098 = vsel %vm586, 1, 0
        %v1099 = vsel %vm587, 1, 0
        %v1100 = vsel %vm588, 1, 0
        %v1101 = vsel %vm589, 1, 0
        %v1102 = vsel %vm590, 1, 0
        %v1103 = vsel %vm591, 1, 0
        %v1104 = vsel %vm592, 1, 0
        %v1105 = vsel %vm593, 1, 0
        %v1106 = vsel %vm594, 1, 0
        %v1107 = vsel %vm595, 1, 0
        %v1108 = vsel %vm596, 1, 0
        %v1109 = vsel %vm597, 1, 0
        %v1110 = vsel %vm598, 1, 0
        %v1111 = vsel %vm599, 1, 0
        %v1112 = vsel %vm600, 1, 0
        %v1113 = vsel %vm601, 1, 0
        %v1114 = vsel %vm602, 1, 0
        %v1115 = vsel %vm603, 1, 0
        %v1116 = vsel %vm604, 1, 0
        %v1117 = vsel %vm605, 1, 0
        %v1118 = vsel %vm606, 1, 0
        %v1119 = vsel %vm607, 1, 0
        %v1120 = vsel %vm608, 1, 0
        %v1121 = vsel %vm609, 1, 0
        %v1122 = vsel %vm610, 1, 0
        %v1123 = vsel %vm611, 1, 0
        %v1124 = vsel %vm612, 1, 0
        %v1125 = vsel %vm613, 1, 0
        %v1126 = vsel %vm614, 1, 0
        %v1127 = vsel %vm615, 1, 0
        %v1128 = vsel %vm616, 1, 0
        %v1129 = vsel %vm617, 1, 0
        %v1130 = vsel %vm618, 1, 0
        %v1131 = vsel %vm619, 1, 0
        %v1132 = vsel %vm620, 1, 0
        %v1133 = vsel %vm621, 1, 0
        %v1134 = vsel %vm622, 1, 0
        %v1135 = vsel %vm623, 1, 0
        %v1136 = vsel %vm624, 1, 0
        %v1137 = vsel %vm625, 1, 0
        %v1138 = vsel %vm626, 1, 0
        %v1139 = vsel %vm627, 1, 0
        %v1140 = vsel %vm628, 1, 0
        %v1141 = vsel %vm629, 1, 0
        %v1142 = vsel %vm630, 1, 0
        %v1143 = vsel %vm631, 1, 0
        %v1144 = vsel %vm632, 1, 0
        %v1145 = vsel %vm633, 1, 0
        %v1146 = vsel %vm634, 1, 0
        %v1147 = vsel %vm635, 1, 0
        %v1148 = vsel %vm636, 1, 0
        %v1149 = vsel %vm637, 1, 0
        %v1150 = vsel %vm638, 1, 0
        %v1151 = vsel %vm639, 1, 0
        %v1152 = vsel %vm640, 1, 0
        %v1153 = vsel %vm641, 1, 0
        %v1154 = vsel %vm642, 1, 0
        %v1155 = vsel %vm643, 1, 0
        %v1156 = vsel %vm644, 1, 0
        %v1157 = vsel %vm645, 1, 0
        %v1158 = vsel %vm646, 1, 0
        %v1159 = vsel %vm647, 1, 0
        %v1160 = vsel %vm648, 1, 0
        %v1161 = vsel %vm649, 1, 0
        %v1162 = vsel %vm650, 1, 0
        %v1163 = vsel %vm651, 1, 0
        %v1164 = vsel %vm652, 1, 0
        %v1165 = vsel %vm653, 1, 0
        %v1166 = vsel %vm654, 1, 0
        %v1167 = vsel %vm655, 1, 0
        %v1168 = vsel %vm656, 1, 0
        %v1169 = vsel %vm657, 1, 0
        %v1170 = vsel %vm658, 1, 0
        %v1171 = vsel %vm659, 1, 0
        %v1172 = vsel %vm660, 1, 0
        %v1173 = vsel %vm661, 1, 0
        %v1174 = vsel %vm662, 1, 0
        %v1175 = vsel %vm663, 1, 0
        %v1176 = vsel %vm664, 1, 0
        %v1177 = vsel %vm665, 1, 0
        %v1178 = vsel %vm666, 1, 0
        %v1179 = vsel %vm667, 1, 0
        %v1180 = vsel %vm668, 1, 0
        %v1181 = vsel %vm669, 1, 0
        %v1182 = vsel %vm670, 1, 0
        %v1183 = vsel %vm671, 1, 0
        %v1184 = vsel %vm672, 1, 0
        %v1185 = vsel %vm673, 1, 0
        %v1186 = vsel %vm674, 1, 0
        %v1187 = vsel %vm675, 1, 0
        %v1188 = vsel %vm676, 1, 0
        %v1189 = vsel %vm677, 1, 0
        %v1190 = vsel %vm678, 1, 0
        %v1191 = vsel %vm679, 1, 0
        %v1192 = vsel %vm680, 1, 0
        %v1193 = vsel %vm681, 1, 0
        %v1194 = vsel %vm682, 1, 0
        %v1195 = vsel %vm683, 1, 0
        %v1196 = vsel %vm684, 1, 0
        %v1197 = vsel %vm685, 1, 0
        %v1198 = vsel %vm686, 1, 0
        %v1199 = vsel %vm687, 1, 0
        %v1200 = vsel %vm688, 1, 0
        %v1201 = vsel %vm689, 1, 0
        %v1202 = vsel %vm690, 1, 0
        %v1203 = vsel %vm691, 1, 0
        %v1204 = vsel %vm692, 1, 0
        %v1205 = vsel %vm693, 1, 0
        %v1206 = vsel %vm694, 1, 0
        %v1207 = vsel %vm695, 1, 0
        %v1208 = vsel %vm696, 1, 0
        %v1209 = vsel %vm697, 1, 0
        %v1210 = vsel %vm698, 1, 0
        %v1211 = vsel %vm699, 1, 0
        %v1212 = vsel %vm700, 1, 0
        %v1213 = vsel %vm701, 1, 0
        %v1214 = vsel %vm702, 1, 0
        %v1215 = vsel %vm703, 1, 0
        %v1216 = vsel %vm704, 1, 0
        %v1217 = vsel %vm705, 1, 0
        %v1218 = vsel %vm706, 1, 0
        %v1219 = vsel %vm707, 1, 0
        %v1220 = vsel %vm708, 1, 0
        %v1221 = vsel %vm709, 1, 0
        %v1222 = vsel %vm710, 1, 0
        %v1223 = vsel %vm711, 1, 0
        %v1224 = vsel %vm712, 1, 0
        %v1225 = vsel %vm713, 1, 0
        %v1226 = vsel %vm714, 1, 0
        %v1227 = vsel %vm715, 1, 0
        %v1228 = vsel %vm716, 1, 0
        %v1229 = vsel %vm717, 1, 0
        %v1230 = vsel %vm718, 1, 0
        %v1231 = vsel %vm719, 1, 0
        %v1232 = vsel %vm720, 1, 0
        %v1233 = vsel %vm721, 1, 0
        %v1234 = vsel %vm722, 1, 0
        %v1235 = vsel %vm723, 1, 0
        %v1236 = vsel %vm724, 1, 0
        %v1237 = vsel %vm725, 1, 0
        %v1238 = vsel %vm726, 1, 0
        %v1239 = vsel %vm727, 1, 0
        %v1240 = vsel %vm728, 1, 0
        %v1241 = vsel %vm729, 1, 0
        %v1242 = vsel %vm730, 1, 0
        %v1243 = vsel %vm731, 1, 0
        %v1244 = vsel %vm732, 1, 0
        %v1245 = vsel %vm733, 1, 0
        %v1246 = vsel %vm734, 1, 0
        %v1247 = vsel %vm735, 1, 0
        %v1248 = vsel %vm736, 1, 0
        %v1249 = vsel %vm737, 1, 0
        %v1250 = vsel %vm738, 1, 0
        %v1251 = vsel %vm739, 1, 0
        %v1252 = vsel %vm740, 1, 0
        %v1253 = vsel %vm741, 1, 0
        %v1254 = vsel %vm742, 1, 0
        %v1255 = vsel %vm743, 1, 0
        %v1256 = vsel %vm744, 1, 0
        %v1257 = vsel %vm745, 1, 0
        %v1258 = vsel %vm746, 1, 0
        %v1259 = vsel %vm747, 1, 0
        %v1260 = vsel %vm748, 1, 0
        %v1261 = vsel %vm749, 1, 0
        %v1262 = vsel %vm750, 1, 0
        %v1263 = vsel %vm751, 1, 0
        %v1264 = vsel %vm752, 1, 0
        %v1265 = vsel %vm753, 1, 0
        %v1266 = vsel %vm754, 1, 0
        %v1267 = vsel %vm755, 1, 0
        %v1268 = vsel %vm756, 1, 0
        %v1269 = vsel %vm757, 1, 0
        %v1270 = vsel %vm758, 1, 0
        %v1271 = vsel %vm759, 1, 0
        %v1272 = vsel %vm760, 1, 0
        %v1273 = vsel %vm761, 1, 0
        %v1274 = vsel %vm762, 1, 0
        %v1275 = vsel %vm763, 1, 0
        %v1276 = vsel %vm764, 1, 0
        %v1277 = vsel %vm765, 1, 0
        %v1278 = vsel %vm766, 1, 0
        %v1279 = vsel %vm767, 1, 0
        %v1280 = vsel %vm768, 1, 0
        %v1281 = vsel %vm769, 1, 0
        %v1282 = vsel %vm770, 1, 0
        %v1283 = vsel %vm771, 1, 0
        %v1284 = vsel %vm772, 1, 0
        %v1285 = vsel %vm773, 1, 0
        %v1286 = vsel %vm774, 1, 0
        %v1287 = vsel %vm775, 1, 0
        %v1288 = vsel %vm776, 1, 0
        %v1289 = vsel %vm777, 1, 0
        %v1290 = vsel %vm778, 1, 0
        %v1291 = vsel %vm779, 1, 0
        %v1292 = vsel %vm780, 1, 0
        %v1293 = vsel %vm781, 1, 0
        %v1294 = vsel %vm782, 1, 0
        %v1295 = vsel %vm783, 1, 0
        %v1296 = vsel %vm784, 1, 0
        %v1297 = vsel %vm785, 1, 0
        %v1298 = vsel %vm786, 1, 0
        %v1299 = vsel %vm787, 1, 0
        %v1300 = vsel %vm788, 1, 0
        %v1301 = vsel %vm789, 1, 0
        %v1302 = vsel %vm790, 1, 0
        %v1303 = vsel %vm791, 1, 0
        %v1304 = vsel %vm792, 1, 0
        %v1305 = vsel %vm793, 1, 0
        %v1306 = vsel %vm794, 1, 0
        %v1307 = vsel %vm795, 1, 0
        %v1308 = vsel %vm796, 1, 0
        %v1309 = vsel %vm797, 1, 0
        %v1310 = vsel %vm798, 1, 0
        %v1311 = vsel %vm799, 1, 0
        %v1312 = vsel %vm800, 1, 0
        %v1313 = vsel %vm801, 1, 0
        %v1314 = vsel %vm802, 1, 0
        %v1315 = vsel %vm803, 1, 0
        %v1316 = vsel %vm804, 1, 0
        %v1317 = vsel %vm805, 1, 0
        %v1318 = vsel %vm806, 1, 0
        %v1319 = vsel %vm807, 1, 0
        %v1320 = vsel %vm808, 1, 0
        %v1321 = vsel %vm809, 1, 0
        %v1322 = vsel %vm810, 1, 0
        %v1323 = vsel %vm811, 1, 0
        %v1324 = vsel %vm812, 1, 0
        %v1325 = vsel %vm813, 1, 0
        %v1326 = vsel %vm814, 1, 0
        %v1327 = vsel %vm815, 1, 0
        %v1328 = vsel %vm816, 1, 0
        %v1329 = vsel %vm817, 1, 0
        %v1330 = vsel %vm818, 1, 0
        %v1331 = vsel %vm819, 1, 0
        %v1332 = vsel %vm820, 1, 0
        %v1333 = vsel %vm821, 1, 0
        %v1334 = vsel %vm822, 1, 0
        %v1335 = vsel %vm823, 1, 0
        %v1336 = vsel %vm824, 1, 0
        %v1337 = vsel %vm825, 1, 0
        %v1338 = vsel %vm826, 1, 0
        %v1339 = vsel %vm827, 1, 0
        %v1340 = vsel %vm828, 1, 0
        %v1341 = vsel %vm829, 1, 0
        %v1342 = vsel %vm830, 1, 0
        %v1343 = vsel %vm831, 1, 0
        %v1344 = vsel %vm832, 1, 0
        %v1345 = vsel %vm833, 1, 0
        %v1346 = vsel %vm834, 1, 0
        %v1347 = vsel %vm835, 1, 0
        %v1348 = vsel %vm836, 1, 0
        %v1349 = vsel %vm837, 1, 0
        %v1350 = vsel %vm838, 1, 0
        %v1351 = vsel %vm839, 1, 0
        %v1352 = vsel %vm840, 1, 0
        %v1353 = vsel %vm841, 1, 0
        %v1354 = vsel %vm842, 1, 0
        %v1355 = vsel %vm843, 1, 0
        %v1356 = vsel %vm844, 1, 0
        %v1357 = vsel %vm845, 1, 0
        %v1358 = vsel %vm846, 1, 0
        %v1359 = vsel %vm847, 1, 0
        %v1360 = vsel %vm848, 1, 0
        %v1361 = vsel %vm849, 1, 0
        %v1362 = vsel %vm850, 1, 0
        %v1363 = vsel %vm851, 1, 0
        %v1364 = vsel %vm852, 1, 0
        %v1365 = vsel %vm853, 1, 0
        %v1366 = vsel %vm854, 1, 0
        %v1367 = vsel %vm855, 1, 0
        %v1368 = vsel %vm856, 1, 0
        %v1369 = vsel %vm857, 1, 0
        %v1370 = vsel %vm858, 1, 0
        %v1371 = vsel %vm859, 1, 0
        %v1372 = vsel %vm860, 1, 0
        %v1373 = vsel %vm861, 1, 0
        %v1374 = vsel %vm862, 1, 0
        %v1375 = vsel %vm863, 1, 0
        %v1376 = vsel %vm864, 1, 0
        %v1377 = vsel %vm865, 1, 0
        %v1378 = vsel %vm866, 1, 0
        %v1379 = vsel %vm867, 1, 0
        %v1380 = vcvt.s32.f32 %v868
        %v1381 = vcvt.s32.f32 %v869
        %v1382 = vcvt.s32.f32 %v870
        %v1383 = vcvt.s32.f32 %v871
        %v1384 = vcvt.s32.f32 %v872
        %v1385 = vcvt.s32.f32 %v873
        %v1386 = vcvt.s32.f32 %v874
        %v1387 = vcvt.s32.f32 %v875
        %v1388 = vcvt.s32.f32 %v876
        %v1389 = vcvt.s32.f32 %v877
        %v1390 = vcvt.s32.f32 %v878
        %v1391 = vcvt.s32.f32 %v879
        %v1392 = vcvt.s32.f32 %v880
        %v1393 = vcvt.s32.f32 %v881
        %v1394 = vcvt.s32.f32 %v882
        %v1395 = vcvt.s32.f32 %v883
        %v1396 = vcvt.s32.f32 %v884
        %v1397 = vcvt.s32.f32 %v885
        %v1398 = vcvt.s32.f32 %v886
        %v1399 = vcvt.s32.f32 %v887
        %v1400 = vcvt.s32.f32 %v888
        %v1401 = vcvt.s32.f32 %v889
        %v1402 = vcvt.s32.f32 %v890
        %v1403 = vcvt.s32.f32 %v891
        %v1404 = vcvt.s32.f32 %v892
        %v1405 = vcvt.s32.f32 %v893
        %v1406 = vcvt.s32.f32 %v894
        %v1407 = vcvt.s32.f32 %v895
        %v1408 = vcvt.s32.f32 %v896
        %v1409 = vcvt.s32.f32 %v897
        %v1410 = vcvt.s32.f32 %v898
        %v1411 = vcvt.s32.f32 %v899
        %v1412 = vcvt.s32.f32 %v900
        %v1413 = vcvt.s32.f32 %v901
        %v1414 = vcvt.s32.f32 %v902
        %v1415 = vcvt.s32.f32 %v903
        %v1416 = vcvt.s32.f32 %v904
        %v1417 = vcvt.s32.f32 %v905
        %v1418 = vcvt.s32.f32 %v906
        %v1419 = vcvt.s32.f32 %v907
        %v1420 = vcvt.s32.f32 %v908
        %v1421 = vcvt.s32.f32 %v909
        %v1422 = vcvt.s32.f32 %v910
        %v1423 = vcvt.s32.f32 %v911
        %v1424 = vcvt.s32.f32 %v912
        %v1425 = vcvt.s32.f32 %v913
        %v1426 = vcvt.s32.f32 %v914
        %v1427 = vcvt.s32.f32 %v915
        %v1428 = vcvt.s32.f32 %v916
        %v1429 = vcvt.s32.f32 %v917
        %v1430 = vcvt.s32.f32 %v918
        %v1431 = vcvt.s32.f32 %v919
        %v1432 = vcvt.s32.f32 %v920
        %v1433 = vcvt.s32.f32 %v921
        %v1434 = vcvt.s32.f32 %v922
        %v1435 = vcvt.s32.f32 %v923
        %v1436 = vcvt.s32.f32 %v924
        %v1437 = vcvt.s32.f32 %v925
        %v1438 = vcvt.s32.f32 %v926
        %v1439 = vcvt.s32.f32 %v927
        %v1440 = vcvt.s32.f32 %v928
        %v1441 = vcvt.s32.f32 %v929
        %v1442 = vcvt.s32.f32 %v930
        %v1443 = vcvt.s32.f32 %v931
        %v1444 = vcvt.s32.f32 %v932
        %v1445 = vcvt.s32.f32 %v933
        %v1446 = vcvt.s32.f32 %v934
        %v1447 = vcvt.s32.f32 %v935
        %v1448 = vcvt.s32.f32 %v936
        %v1449 = vcvt.s32.f32 %v937
        %v1450 = vcvt.s32.f32 %v938
        %v1451 = vcvt.s32.f32 %v939
        %v1452 = vcvt.s32.f32 %v940
        %v1453 = vcvt.s32.f32 %v941
        %v1454 = vcvt.s32.f32 %v942
        %v1455 = vcvt.s32.f32 %v943
        %v1456 = vcvt.s32.f32 %v944
        %v1457 = vcvt.s32.f32 %v945
        %v1458 = vcvt.s32.f32 %v946
        %v1459 = vcvt.s32.f32 %v947
        %v1460 = vcvt.s32.f32 %v948
        %v1461 = vcvt.s32.f32 %v949
        %v1462 = vcvt.s32.f32 %v950
        %v1463 = vcvt.s32.f32 %v951
        %v1464 = vcvt.s32.f32 %v952
        %v1465 = vcvt.s32.f32 %v953
        %v1466 = vcvt.s32.f32 %v954
        %v1467 = vcvt.s32.f32 %v955
        %v1468 = vcvt.s32.f32 %v956
        %v1469 = vcvt.s32.f32 %v957
        %v1470 = vcvt.s32.f32 %v958
        %v1471 = vcvt.s32.f32 %v959
        %v1472 = vcvt.s32.f32 %v960
        %v1473 = vcvt.s32.f32 %v961
        %v1474 = vcvt.s32.f32 %v962
        %v1475 = vcvt.s32.f32 %v963
        %v1476 = vcvt.s32.f32 %v964
        %v1477 = vcvt.s32.f32 %v965
        %v1478 = vcvt.s32.f32 %v966
        %v1479 = vcvt.s32.f32 %v967
        %v1480 = vcvt.s32.f32 %v968
        %v1481 = vcvt.s32.f32 %v969
        %v1482 = vcvt.s32.f32 %v970
        %v1483 = vcvt.s32.f32 %v971
        %v1484 = vcvt.s32.f32 %v972
        %v1485 = vcvt.s32.f32 %v973
        %v1486 = vcvt.s32.f32 %v974
        %v1487 = vcvt.s32.f32 %v975
        %v1488 = vcvt.s32.f32 %v976
        %v1489 = vcvt.s32.f32 %v977
        %v1490 = vcvt.s32.f32 %v978
        %v1491 = vcvt.s32.f32 %v979
        %v1492 = vcvt.s32.f32 %v980
        %v1493 = vcvt.s32.f32 %v981
        %v1494 = vcvt.s32.f32 %v982
        %v1495 = vcvt.s32.f32 %v983
        %v1496 = vcvt.s32.f32 %v984
        %v1497 = vcvt.s32.f32 %v985
        %v1498 = vcvt.s32.f32 %v986
        %v1499 = vcvt.s32.f32 %v987
        %v1500 = vcvt.s32.f32 %v988
        %v1501 = vcvt.s32.f32 %v989
        %v1502 = vcvt.s32.f32 %v990
        %v1503 = vcvt.s32.f32 %v991
        %v1504 = vcvt.s32.f32 %v992
        %v1505 = vcvt.s32.f32 %v993
        %v1506 = vcvt.s32.f32 %v994
        %v1507 = vcvt.s32.f32 %v995
        %v1508 = vcvt.s32.f32 %v996
        %v1509 = vcvt.s32.f32 %v997
        %v1510 = vcvt.s32.f32 %v998
        %v1511 = vcvt.s32.f32 %v999
        %v1512 = vcvt.s32.f32 %v1000
        %v1513 = vcvt.s32.f32 %v1001
        %v1514 = vcvt.s32.f32 %v1002
        %v1515 = vcvt.s32.f32 %v1003
        %v1516 = vcvt.s32.f32 %v1004
        %v1517 = vcvt.s32.f32 %v1005
        %v1518 = vcvt.s32.f32 %v1006
        %v1519 = vcvt.s32.f32 %v1007
        %v1520 = vcvt.s32.f32 %v1008
        %v1521 = vcvt.s32.f32 %v1009
        %v1522 = vcvt.s32.f32 %v1010
        %v1523 = vcvt.s32.f32 %v1011
        %v1524 = vcvt.s32.f32 %v1012
        %v1525 = vcvt.s32.f32 %v1013
        %v1526 = vcvt.s32.f32 %v1014
        %v1527 = vcvt.s32.f32 %v1015
        %v1528 = vcvt.s32.f32 %v1016
        %v1529 = vcvt.s32.f32 %v1017
        %v1530 = vcvt.s32.f32 %v1018
        %v1531 = vcvt.s32.f32 %v1019
        %v1532 = vcvt.s32.f32 %v1020
        %v1533 = vcvt.s32.f32 %v1021
        %v1534 = vcvt.s32.f32 %v1022
        %v1535 = vcvt.s32.f32 %v1023
        %v1536 = vcvt.s32.f32 %v1024
        %v1537 = vcvt.s32.f32 %v1025
        %v1538 = vcvt.s32.f32 %v1026
        %v1539 = vcvt.s32.f32 %v1027
        %v1540 = vcvt.s32.f32 %v1028
        %v1541 = vcvt.s32.f32 %v1029
        %v1542 = vcvt.s32.f32 %v1030
        %v1543 = vcvt.s32.f32 %v1031
        %v1544 = vcvt.s32.f32 %v1032
        %v1545 = vcvt.s32.f32 %v1033
        %v1546 = vcvt.s32.f32 %v1034
        %v1547 = vcvt.s32.f32 %v1035
        %v1548 = vcvt.s32.f32 %v1036
        %v1549 = vcvt.s32.f32 %v1037
        %v1550 = vcvt.s32.f32 %v1038
        %v1551 = vcvt.s32.f32 %v1039
        %v1552 = vcvt.s32.f32 %v1040
        %v1553 = vcvt.s32.f32 %v1041
        %v1554 = vcvt.s32.f32 %v1042
        %v1555 = vcvt.s32.f32 %v1043
        %v1556 = vcvt.s32.f32 %v1044
        %v1557 = vcvt.s32.f32 %v1045
        %v1558 = vcvt.s32.f32 %v1046
        %v1559 = vcvt.s32.f32 %v1047
        %v1560 = vcvt.s32.f32 %v1048
        %v1561 = vcvt.s32.f32 %v1049
        %v1562 = vcvt.s32.f32 %v1050
        %v1563 = vcvt.s32.f32 %v1051
        %v1564 = vcvt.s32.f32 %v1052
        %v1565 = vcvt.s32.f32 %v1053
        %v1566 = vcvt.s32.f32 %v1054
        %v1567 = vcvt.s32.f32 %v1055
        %v1568 = vcvt.s32.f32 %v1056
        %v1569 = vcvt.s32.f32 %v1057
        %v1570 = vcvt.s32.f32 %v1058
        %v1571 = vcvt.s32.f32 %v1059
        %v1572 = vcvt.s32.f32 %v1060
        %v1573 = vcvt.s32.f32 %v1061
        %v1574 = vcvt.s32.f32 %v1062
        %v1575 = vcvt.s32.f32 %v1063
        %v1576 = vcvt.s32.f32 %v1064
        %v1577 = vcvt.s32.f32 %v1065
        %v1578 = vcvt.s32.f32 %v1066
        %v1579 = vcvt.s32.f32 %v1067
        %v1580 = vcvt.s32.f32 %v1068
        %v1581 = vcvt.s32.f32 %v1069
        %v1582 = vcvt.s32.f32 %v1070
        %v1583 = vcvt.s32.f32 %v1071
        %v1584 = vcvt.s32.f32 %v1072
        %v1585 = vcvt.s32.f32 %v1073
        %v1586 = vcvt.s32.f32 %v1074
        %v1587 = vcvt.s32.f32 %v1075
        %v1588 = vcvt.s32.f32 %v1076
        %v1589 = vcvt.s32.f32 %v1077
        %v1590 = vcvt.s32.f32 %v1078
        %v1591 = vcvt.s32.f32 %v1079
        %v1592 = vcvt.s32.f32 %v1080
        %v1593 = vcvt.s32.f32 %v1081
        %v1594 = vcvt.s32.f32 %v1082
        %v1595 = vcvt.s32.f32 %v1083
        %v1596 = vcvt.s32.f32 %v1084
        %v1597 = vcvt.s32.f32 %v1085
        %v1598 = vcvt.s32.f32 %v1086
        %v1599 = vcvt.s32.f32 %v1087
        %v1600 = vcvt.s32.f32 %v1088
        %v1601 = vcvt.s32.f32 %v1089
        %v1602 = vcvt.s32.f32 %v1090
        %v1603 = vcvt.s32.f32 %v1091
        %v1604 = vcvt.s32.f32 %v1092
        %v1605 = vcvt.s32.f32 %v1093
        %v1606 = vcvt.s32.f32 %v1094
        %v1607 = vcvt.s32.f32 %v1095
        %v1608 = vcvt.s32.f32 %v1096
        %v1609 = vcvt.s32.f32 %v1097
        %v1610 = vcvt.s32.f32 %v1098
        %v1611 = vcvt.s32.f32 %v1099
        %v1612 = vcvt.s32.f32 %v1100
        %v1613 = vcvt.s32.f32 %v1101
        %v1614 = vcvt.s32.f32 %v1102
        %v1615 = vcvt.s32.f32 %v1103
        %v1616 = vcvt.s32.f32 %v1104
        %v1617 = vcvt.s32.f32 %v1105
        %v1618 = vcvt.s32.f32 %v1106
        %v1619 = vcvt.s32.f32 %v1107
        %v1620 = vcvt.s32.f32 %v1108
        %v1621 = vcvt.s32.f32 %v1109
        %v1622 = vcvt.s32.f32 %v1110
        %v1623 = vcvt.s32.f32 %v1111
        %v1624 = vcvt.s32.f32 %v1112
        %v1625 = vcvt.s32.f32 %v1113
        %v1626 = vcvt.s32.f32 %v1114
        %v1627 = vcvt.s32.f32 %v1115
        %v1628 = vcvt.s32.f32 %v1116
        %v1629 = vcvt.s32.f32 %v1117
        %v1630 = vcvt.s32.f32 %v1118
        %v1631 = vcvt.s32.f32 %v1119
        %v1632 = vcvt.s32.f32 %v1120
        %v1633 = vcvt.s32.f32 %v1121
        %v1634 = vcvt.s32.f32 %v1122
        %v1635 = vcvt.s32.f32 %v1123
        %v1636 = vcvt.s32.f32 %v1124
        %v1637 = vcvt.s32.f32 %v1125
        %v1638 = vcvt.s32.f32 %v1126
        %v1639 = vcvt.s32.f32 %v1127
        %v1640 = vcvt.s32.f32 %v1128
        %v1641 = vcvt.s32.f32 %v1129
        %v1642 = vcvt.s32.f32 %v1130
        %v1643 = vcvt.s32.f32 %v1131
        %v1644 = vcvt.s32.f32 %v1132
        %v1645 = vcvt.s32.f32 %v1133
        %v1646 = vcvt.s32.f32 %v1134
        %v1647 = vcvt.s32.f32 %v1135
        %v1648 = vcvt.s32.f32 %v1136
        %v1649 = vcvt.s32.f32 %v1137
        %v1650 = vcvt.s32.f32 %v1138
        %v1651 = vcvt.s32.f32 %v1139
        %v1652 = vcvt.s32.f32 %v1140
        %v1653 = vcvt.s32.f32 %v1141
        %v1654 = vcvt.s32.f32 %v1142
        %v1655 = vcvt.s32.f32 %v1143
        %v1656 = vcvt.s32.f32 %v1144
        %v1657 = vcvt.s32.f32 %v1145
        %v1658 = vcvt.s32.f32 %v1146
        %v1659 = vcvt.s32.f32 %v1147
        %v1660 = vcvt.s32.f32 %v1148
        %v1661 = vcvt.s32.f32 %v1149
        %v1662 = vcvt.s32.f32 %v1150
        %v1663 = vcvt.s32.f32 %v1151
        %v1664 = vcvt.s32.f32 %v1152
        %v1665 = vcvt.s32.f32 %v1153
        %v1666 = vcvt.s32.f32 %v1154
        %v1667 = vcvt.s32.f32 %v1155
        %v1668 = vcvt.s32.f32 %v1156
        %v1669 = vcvt.s32.f32 %v1157
        %v1670 = vcvt.s32.f32 %v1158
        %v1671 = vcvt.s32.f32 %v1159
        %v1672 = vcvt.s32.f32 %v1160
        %v1673 = vcvt.s32.f32 %v1161
        %v1674 = vcvt.s32.f32 %v1162
        %v1675 = vcvt.s32.f32 %v1163
        %v1676 = vcvt.s32.f32 %v1164
        %v1677 = vcvt.s32.f32 %v1165
        %v1678 = vcvt.s32.f32 %v1166
        %v1679 = vcvt.s32.f32 %v1167
        %v1680 = vcvt.s32.f32 %v1168
        %v1681 = vcvt.s32.f32 %v1169
        %v1682 = vcvt.s32.f32 %v1170
        %v1683 = vcvt.s32.f32 %v1171
        %v1684 = vcvt.s32.f32 %v1172
        %v1685 = vcvt.s32.f32 %v1173
        %v1686 = vcvt.s32.f32 %v1174
        %v1687 = vcvt.s32.f32 %v1175
        %v1688 = vcvt.s32.f32 %v1176
        %v1689 = vcvt.s32.f32 %v1177
        %v1690 = vcvt.s32.f32 %v1178
        %v1691 = vcvt.s32.f32 %v1179
        %v1692 = vcvt.s32.f32 %v1180
        %v1693 = vcvt.s32.f32 %v1181
        %v1694 = vcvt.s32.f32 %v1182
        %v1695 = vcvt.s32.f32 %v1183
        %v1696 = vcvt.s32.f32 %v1184
        %v1697 = vcvt.s32.f32 %v1185
        %v1698 = vcvt.s32.f32 %v1186
        %v1699 = vcvt.s32.f32 %v1187
        %v1700 = vcvt.s32.f32 %v1188
        %v1701 = vcvt.s32.f32 %v1189
        %v1702 = vcvt.s32.f32 %v1190
        %v1703 = vcvt.s32.f32 %v1191
        %v1704 = vcvt.s32.f32 %v1192
        %v1705 = vcvt.s32.f32 %v1193
        %v1706 = vcvt.s32.f32 %v1194
        %v1707 = vcvt.s32.f32 %v1195
        %v1708 = vcvt.s32.f32 %v1196
        %v1709 = vcvt.s32.f32 %v1197
        %v1710 = vcvt.s32.f32 %v1198
        %v1711 = vcvt.s32.f32 %v1199
        %v1712 = vcvt.s32.f32 %v1200
        %v1713 = vcvt.s32.f32 %v1201
        %v1714 = vcvt.s32.f32 %v1202
        %v1715 = vcvt.s32.f32 %v1203
        %v1716 = vcvt.s32.f32 %v1204
        %v1717 = vcvt.s32.f32 %v1205
        %v1718 = vcvt.s32.f32 %v1206
        %v1719 = vcvt.s32.f32 %v1207
        %v1720 = vcvt.s32.f32 %v1208
        %v1721 = vcvt.s32.f32 %v1209
        %v1722 = vcvt.s32.f32 %v1210
        %v1723 = vcvt.s32.f32 %v1211
        %v1724 = vcvt.s32.f32 %v1212
        %v1725 = vcvt.s32.f32 %v1213
        %v1726 = vcvt.s32.f32 %v1214
        %v1727 = vcvt.s32.f32 %v1215
        %v1728 = vcvt.s32.f32 %v1216
        %v1729 = vcvt.s32.f32 %v1217
        %v1730 = vcvt.s32.f32 %v1218
        %v1731 = vcvt.s32.f32 %v1219
        %v1732 = vcvt.s32.f32 %v1220
        %v1733 = vcvt.s32.f32 %v1221
        %v1734 = vcvt.s32.f32 %v1222
        %v1735 = vcvt.s32.f32 %v1223
        %v1736 = vcvt.s32.f32 %v1224
        %v1737 = vcvt.s32.f32 %v1225
        %v1738 = vcvt.s32.f32 %v1226
        %v1739 = vcvt.s32.f32 %v1227
        %v1740 = vcvt.s32.f32 %v1228
        %v1741 = vcvt.s32.f32 %v1229
        %v1742 = vcvt.s32.f32 %v1230
        %v1743 = vcvt.s32.f32 %v1231
        %v1744 = vcvt.s32.f32 %v1232
        %v1745 = vcvt.s32.f32 %v1233
        %v1746 = vcvt.s32.f32 %v1234
        %v1747 = vcvt.s32.f32 %v1235
        %v1748 = vcvt.s32.f32 %v1236
        %v1749 = vcvt.s32.f32 %v1237
        %v1750 = vcvt.s32.f32 %v1238
        %v1751 = vcvt.s32.f32 %v1239
        %v1752 = vcvt.s32.f32 %v1240
        %v1753 = vcvt.s32.f32 %v1241
        %v1754 = vcvt.s32.f32 %v1242
        %v1755 = vcvt.s32.f32 %v1243
        %v1756 = vcvt.s32.f32 %v1244
        %v1757 = vcvt.s32.f32 %v1245
        %v1758 = vcvt.s32.f32 %v1246
        %v1759 = vcvt.s32.f32 %v1247
        %v1760 = vcvt.s32.f32 %v1248
        %v1761 = vcvt.s32.f32 %v1249
        %v1762 = vcvt.s32.f32 %v1250
        %v1763 = vcvt.s32.f32 %v1251
        %v1764 = vcvt.s32.f32 %v1252
        %v1765 = vcvt.s32.f32 %v1253
        %v1766 = vcvt.s32.f32 %v1254
        %v1767 = vcvt.s32.f32 %v1255
        %v1768 = vcvt.s32.f32 %v1256
        %v1769 = vcvt.s32.f32 %v1257
        %v1770 = vcvt.s32.f32 %v1258
        %v1771 = vcvt.s32.f32 %v1259
        %v1772 = vcvt.s32.f32 %v1260
        %v1773 = vcvt.s32.f32 %v1261
        %v1774 = vcvt.s32.f32 %v1262
        %v1775 = vcvt.s32.f32 %v1263
        %v1776 = vcvt.s32.f32 %v1264
        %v1777 = vcvt.s32.f32 %v1265
        %v1778 = vcvt.s32.f32 %v1266
        %v1779 = vcvt.s32.f32 %v1267
        %v1780 = vcvt.s32.f32 %v1268
        %v1781 = vcvt.s32.f32 %v1269
        %v1782 = vcvt.s32.f32 %v1270
        %v1783 = vcvt.s32.f32 %v1271
        %v1784 = vcvt.s32.f32 %v1272
        %v1785 = vcvt.s32.f32 %v1273
        %v1786 = vcvt.s32.f32 %v1274
        %v1787 = vcvt.s32.f32 %v1275
        %v1788 = vcvt.s32.f32 %v1276
        %v1789 = vcvt.s32.f32 %v1277
        %v1790 = vcvt.s32.f32 %v1278
        %v1791 = vcvt.s32.f32 %v1279
        %v1792 = vcvt.s32.f32 %v1280
        %v1793 = vcvt.s32.f32 %v1281
        %v1794 = vcvt.s32.f32 %v1282
        %v1795 = vcvt.s32.f32 %v1283
        %v1796 = vcvt.s32.f32 %v1284
        %v1797 = vcvt.s32.f32 %v1285
        %v1798 = vcvt.s32.f32 %v1286
        %v1799 = vcvt.s32.f32 %v1287
        %v1800 = vcvt.s32.f32 %v1288
        %v1801 = vcvt.s32.f32 %v1289
        %v1802 = vcvt.s32.f32 %v1290
        %v1803 = vcvt.s32.f32 %v1291
        %v1804 = vcvt.s32.f32 %v1292
        %v1805 = vcvt.s32.f32 %v1293
        %v1806 = vcvt.s32.f32 %v1294
        %v1807 = vcvt.s32.f32 %v1295
        %v1808 = vcvt.s32.f32 %v1296
        %v1809 = vcvt.s32.f32 %v1297
        %v1810 = vcvt.s32.f32 %v1298
        %v1811 = vcvt.s32.f32 %v1299
        %v1812 = vcvt.s32.f32 %v1300
        %v1813 = vcvt.s32.f32 %v1301
        %v1814 = vcvt.s32.f32 %v1302
        %v1815 = vcvt.s32.f32 %v1303
        %v1816 = vcvt.s32.f32 %v1304
        %v1817 = vcvt.s32.f32 %v1305
        %v1818 = vcvt.s32.f32 %v1306
        %v1819 = vcvt.s32.f32 %v1307
        %v1820 = vcvt.s32.f32 %v1308
        %v1821 = vcvt.s32.f32 %v1309
        %v1822 = vcvt.s32.f32 %v1310
        %v1823 = vcvt.s32.f32 %v1311
        %v1824 = vcvt.s32.f32 %v1312
        %v1825 = vcvt.s32.f32 %v1313
        %v1826 = vcvt.s32.f32 %v1314
        %v1827 = vcvt.s32.f32 %v1315
        %v1828 = vcvt.s32.f32 %v1316
        %v1829 = vcvt.s32.f32 %v1317
        %v1830 = vcvt.s32.f32 %v1318
        %v1831 = vcvt.s32.f32 %v1319
        %v1832 = vcvt.s32.f32 %v1320
        %v1833 = vcvt.s32.f32 %v1321
        %v1834 = vcvt.s32.f32 %v1322
        %v1835 = vcvt.s32.f32 %v1323
        %v1836 = vcvt.s32.f32 %v1324
        %v1837 = vcvt.s32.f32 %v1325
        %v1838 = vcvt.s32.f32 %v1326
        %v1839 = vcvt.s32.f32 %v1327
        %v1840 = vcvt.s32.f32 %v1328
        %v1841 = vcvt.s32.f32 %v1329
        %v1842 = vcvt.s32.f32 %v1330
        %v1843 = vcvt.s32.f32 %v1331
        %v1844 = vcvt.s32.f32 %v1332
        %v1845 = vcvt.s32.f32 %v1333
        %v1846 = vcvt.s32.f32 %v1334
        %v1847 = vcvt.s32.f32 %v1335
        %v1848 = vcvt.s32.f32 %v1336
        %v1849 = vcvt.s32.f32 %v1337
        %v1850 = vcvt.s32.f32 %v1338
        %v1851 = vcvt.s32.f32 %v1339
        %v1852 = vcvt.s32.f32 %v1340
        %v1853 = vcvt.s32.f32 %v1341
        %v1854 = vcvt.s32.f32 %v1342
        %v1855 = vcvt.s32.f32 %v1343
        %v1856 = vcvt.s32.f32 %v1344
        %v1857 = vcvt.s32.f32 %v1345
        %v1858 = vcvt.s32.f32 %v1346
        %v1859 = vcvt.s32.f32 %v1347
        %v1860 = vcvt.s32.f32 %v1348
        %v1861 = vcvt.s32.f32 %v1349
        %v1862 = vcvt.s32.f32 %v1350
        %v1863 = vcvt.s32.f32 %v1351
        %v1864 = vcvt.s32.f32 %v1352
        %v1865 = vcvt.s32.f32 %v1353
        %v1866 = vcvt.s32.f32 %v1354
        %v1867 = vcvt.s32.f32 %v1355
        %v1868 = vcvt.s32.f32 %v1356
        %v1869 = vcvt.s32.f32 %v1357
        %v1870 = vcvt.s32.f32 %v1358
        %v1871 = vcvt.s32.f32 %v1359
        %v1872 = vcvt.s32.f32 %v1360
        %v1873 = vcvt.s32.f32 %v1361
        %v1874 = vcvt.s32.f32 %v1362
        %v1875 = vcvt.s32.f32 %v1363
        %v1876 = vcvt.s32.f32 %v1364
        %v1877 = vcvt.s32.f32 %v1365
        %v1878 = vcvt.s32.f32 %v1366
        %v1879 = vcvt.s32.f32 %v1367
        %v1880 = vcvt.s32.f32 %v1368
        %v1881 = vcvt.s32.f32 %v1369
        %v1882 = vcvt.s32.f32 %v1370
        %v1883 = vcvt.s32.f32 %v1371
        %v1884 = vcvt.s32.f32 %v1372
        %v1885 = vcvt.s32.f32 %v1373
        %v1886 = vcvt.s32.f32 %v1374
        %v1887 = vcvt.s32.f32 %v1375
        %v1888 = vcvt.s32.f32 %v1376
        %v1889 = vcvt.s32.f32 %v1377
        %v1890 = vcvt.s32.f32 %v1378
        %v1891 = vcvt.s32.f32 %v1379
        %v1892 = vld [vmem:[%s191] sm:$0xff]
        %v1893 = vld [vmem:[%s191 + $0x8] sm:$0xff]
        %v1894 = vld [vmem:[%s191 + $0x10] sm:$0xff]
        %v1895 = vld [vmem:[%s191 + $0x18] sm:$0xff]
        %v1896 = vld [vmem:[%s191 + $0x20] sm:$0xff]
        %v1897 = vld [vmem:[%s191 + $0x28] sm:$0xff]
        %v1898 = vld [vmem:[%s191 + $0x30] sm:$0xff]
        %v1899 = vld [vmem:[%s191 + $0x38] sm:$0xff]
        %v1900 = vld [vmem:[%s191 + $0x40] sm:$0xff]
        %v1901 = vld [vmem:[%s191 + $0x48] sm:$0xff]
        %v1902 = vld [vmem:[%s191 + $0x50] sm:$0xff]
        %v1903 = vld [vmem:[%s191 + $0x58] sm:$0xff]
        %v1904 = vld [vmem:[%s191 + $0x60] sm:$0xff]
        %v1905 = vld [vmem:[%s191 + $0x68] sm:$0xff]
        %v1906 = vld [vmem:[%s191 + $0x70] sm:$0xff]
        %v1907 = vld [vmem:[%s191 + $0x78] sm:$0xff]
        %v1908 = vld [vmem:[%s191 + $0x80] sm:$0xff]
        %v1909 = vld [vmem:[%s191 + $0x88] sm:$0xff]
        %v1910 = vld [vmem:[%s191 + $0x90] sm:$0xff]
        %v1911 = vld [vmem:[%s191 + $0x98] sm:$0xff]
        %v1912 = vld [vmem:[%s191 + $0xa0] sm:$0xff]
        %v1913 = vld [vmem:[%s191 + $0xa8] sm:$0xff]
        %v1914 = vld [vmem:[%s191 + $0xb0] sm:$0xff]
        %v1915 = vld [vmem:[%s191 + $0xb8] sm:$0xff]
        %v1916 = vld [vmem:[%s191 + $0xc0] sm:$0xff]
        %v1917 = vld [vmem:[%s191 + $0xc8] sm:$0xff]
        %v1918 = vld [vmem:[%s191 + $0xd0] sm:$0xff]
        %v1919 = vld [vmem:[%s191 + $0xd8] sm:$0xff]
        %v1920 = vld [vmem:[%s191 + $0xe0] sm:$0xff]
        %v1921 = vld [vmem:[%s191 + $0xe8] sm:$0xff]
        %v1922 = vld [vmem:[%s191 + $0xf0] sm:$0xff]
        %v1923 = vld [vmem:[%s191 + $0xf8] sm:$0xff]
        %v1924 = vld [vmem:[%s191 + $0x100] sm:$0xff]
        %v1925 = vld [vmem:[%s191 + $0x108] sm:$0xff]
        %v1926 = vld [vmem:[%s191 + $0x110] sm:$0xff]
        %v1927 = vld [vmem:[%s191 + $0x118] sm:$0xff]
        %v1928 = vld [vmem:[%s191 + $0x120] sm:$0xff]
        %v1929 = vld [vmem:[%s191 + $0x128] sm:$0xff]
        %v1930 = vld [vmem:[%s191 + $0x130] sm:$0xff]
        %v1931 = vld [vmem:[%s191 + $0x138] sm:$0xff]
        %v1932 = vld [vmem:[%s191 + $0x140] sm:$0xff]
        %v1933 = vld [vmem:[%s191 + $0x148] sm:$0xff]
        %v1934 = vld [vmem:[%s191 + $0x150] sm:$0xff]
        %v1935 = vld [vmem:[%s191 + $0x158] sm:$0xff]
        %v1936 = vld [vmem:[%s191 + $0x160] sm:$0xff]
        %v1937 = vld [vmem:[%s191 + $0x168] sm:$0xff]
        %v1938 = vld [vmem:[%s191 + $0x170] sm:$0xff]
        %v1939 = vld [vmem:[%s191 + $0x178] sm:$0xff]
        %v1940 = vld [vmem:[%s191 + $0x180] sm:$0xff]
        %v1941 = vld [vmem:[%s191 + $0x188] sm:$0xff]
        %v1942 = vld [vmem:[%s191 + $0x190] sm:$0xff]
        %v1943 = vld [vmem:[%s191 + $0x198] sm:$0xff]
        %v1944 = vld [vmem:[%s191 + $0x1a0] sm:$0xff]
        %v1945 = vld [vmem:[%s191 + $0x1a8] sm:$0xff]
        %v1946 = vld [vmem:[%s191 + $0x1b0] sm:$0xff]
        %v1947 = vld [vmem:[%s191 + $0x1b8] sm:$0xff]
        %v1948 = vld [vmem:[%s191 + $0x1c0] sm:$0xff]
        %v1949 = vld [vmem:[%s191 + $0x1c8] sm:$0xff]
        %v1950 = vld [vmem:[%s191 + $0x1d0] sm:$0xff]
        %v1951 = vld [vmem:[%s191 + $0x1d8] sm:$0xff]
        %v1952 = vld [vmem:[%s191 + $0x1e0] sm:$0xff]
        %v1953 = vld [vmem:[%s191 + $0x1e8] sm:$0xff]
        %v1954 = vld [vmem:[%s191 + $0x1f0] sm:$0xff]
        %v1955 = vld [vmem:[%s191 + $0x1f8] sm:$0xff]
        %v1956 = vld [vmem:[%s191 + $0x200] sm:$0xff]
        %v1957 = vld [vmem:[%s191 + $0x208] sm:$0xff]
        %v1958 = vld [vmem:[%s191 + $0x210] sm:$0xff]
        %v1959 = vld [vmem:[%s191 + $0x218] sm:$0xff]
        %v1960 = vld [vmem:[%s191 + $0x220] sm:$0xff]
        %v1961 = vld [vmem:[%s191 + $0x228] sm:$0xff]
        %v1962 = vld [vmem:[%s191 + $0x230] sm:$0xff]
        %v1963 = vld [vmem:[%s191 + $0x238] sm:$0xff]
        %v1964 = vld [vmem:[%s191 + $0x240] sm:$0xff]
        %v1965 = vld [vmem:[%s191 + $0x248] sm:$0xff]
        %v1966 = vld [vmem:[%s191 + $0x250] sm:$0xff]
        %v1967 = vld [vmem:[%s191 + $0x258] sm:$0xff]
        %v1968 = vld [vmem:[%s191 + $0x260] sm:$0xff]
        %v1969 = vld [vmem:[%s191 + $0x268] sm:$0xff]
        %v1970 = vld [vmem:[%s191 + $0x270] sm:$0xff]
        %v1971 = vld [vmem:[%s191 + $0x278] sm:$0xff]
        %v1972 = vld [vmem:[%s191 + $0x280] sm:$0xff]
        %v1973 = vld [vmem:[%s191 + $0x288] sm:$0xff]
        %v1974 = vld [vmem:[%s191 + $0x290] sm:$0xff]
        %v1975 = vld [vmem:[%s191 + $0x298] sm:$0xff]
        %v1976 = vld [vmem:[%s191 + $0x2a0] sm:$0xff]
        %v1977 = vld [vmem:[%s191 + $0x2a8] sm:$0xff]
        %v1978 = vld [vmem:[%s191 + $0x2b0] sm:$0xff]
        %v1979 = vld [vmem:[%s191 + $0x2b8] sm:$0xff]
        %v1980 = vld [vmem:[%s191 + $0x2c0] sm:$0xff]
        %v1981 = vld [vmem:[%s191 + $0x2c8] sm:$0xff]
        %v1982 = vld [vmem:[%s191 + $0x2d0] sm:$0xff]
        %v1983 = vld [vmem:[%s191 + $0x2d8] sm:$0xff]
        %v1984 = vld [vmem:[%s191 + $0x2e0] sm:$0xff]
        %v1985 = vld [vmem:[%s191 + $0x2e8] sm:$0xff]
        %v1986 = vld [vmem:[%s191 + $0x2f0] sm:$0xff]
        %v1987 = vld [vmem:[%s191 + $0x2f8] sm:$0xff]
        %v1988 = vld [vmem:[%s191 + $0x300] sm:$0xff]
        %v1989 = vld [vmem:[%s191 + $0x308] sm:$0xff]
        %v1990 = vld [vmem:[%s191 + $0x310] sm:$0xff]
        %v1991 = vld [vmem:[%s191 + $0x318] sm:$0xff]
        %v1992 = vld [vmem:[%s191 + $0x320] sm:$0xff]
        %v1993 = vld [vmem:[%s191 + $0x328] sm:$0xff]
        %v1994 = vld [vmem:[%s191 + $0x330] sm:$0xff]
        %v1995 = vld [vmem:[%s191 + $0x338] sm:$0xff]
        %v1996 = vld [vmem:[%s191 + $0x340] sm:$0xff]
        %v1997 = vld [vmem:[%s191 + $0x348] sm:$0xff]
        %v1998 = vld [vmem:[%s191 + $0x350] sm:$0xff]
        %v1999 = vld [vmem:[%s191 + $0x358] sm:$0xff]
        %v2000 = vld [vmem:[%s191 + $0x360] sm:$0xff]
        %v2001 = vld [vmem:[%s191 + $0x368] sm:$0xff]
        %v2002 = vld [vmem:[%s191 + $0x370] sm:$0xff]
        %v2003 = vld [vmem:[%s191 + $0x378] sm:$0xff]
        %v2004 = vld [vmem:[%s191 + $0x380] sm:$0xff]
        %v2005 = vld [vmem:[%s191 + $0x388] sm:$0xff]
        %v2006 = vld [vmem:[%s191 + $0x390] sm:$0xff]
        %v2007 = vld [vmem:[%s191 + $0x398] sm:$0xff]
        %v2008 = vld [vmem:[%s191 + $0x3a0] sm:$0xff]
        %v2009 = vld [vmem:[%s191 + $0x3a8] sm:$0xff]
        %v2010 = vld [vmem:[%s191 + $0x3b0] sm:$0xff]
        %v2011 = vld [vmem:[%s191 + $0x3b8] sm:$0xff]
        %v2012 = vld [vmem:[%s191 + $0x3c0] sm:$0xff]
        %v2013 = vld [vmem:[%s191 + $0x3c8] sm:$0xff]
        %v2014 = vld [vmem:[%s191 + $0x3d0] sm:$0xff]
        %v2015 = vld [vmem:[%s191 + $0x3d8] sm:$0xff]
        %v2016 = vld [vmem:[%s191 + $0x3e0] sm:$0xff]
        %v2017 = vld [vmem:[%s191 + $0x3e8] sm:$0xff]
        %v2018 = vld [vmem:[%s191 + $0x3f0] sm:$0xff]
        %v2019 = vld [vmem:[%s191 + $0x3f8] sm:$0xff]
        %v2020 = vld [vmem:[%s191 + $0x400] sm:$0xff]
        %v2021 = vld [vmem:[%s191 + $0x408] sm:$0xff]
        %v2022 = vld [vmem:[%s191 + $0x410] sm:$0xff]
        %v2023 = vld [vmem:[%s191 + $0x418] sm:$0xff]
        %v2024 = vld [vmem:[%s191 + $0x420] sm:$0xff]
        %v2025 = vld [vmem:[%s191 + $0x428] sm:$0xff]
        %v2026 = vld [vmem:[%s191 + $0x430] sm:$0xff]
        %v2027 = vld [vmem:[%s191 + $0x438] sm:$0xff]
        %v2028 = vld [vmem:[%s191 + $0x440] sm:$0xff]
        %v2029 = vld [vmem:[%s191 + $0x448] sm:$0xff]
        %v2030 = vld [vmem:[%s191 + $0x450] sm:$0xff]
        %v2031 = vld [vmem:[%s191 + $0x458] sm:$0xff]
        %v2032 = vld [vmem:[%s191 + $0x460] sm:$0xff]
        %v2033 = vld [vmem:[%s191 + $0x468] sm:$0xff]
        %v2034 = vld [vmem:[%s191 + $0x470] sm:$0xff]
        %v2035 = vld [vmem:[%s191 + $0x478] sm:$0xff]
        %v2036 = vld [vmem:[%s191 + $0x480] sm:$0xff]
        %v2037 = vld [vmem:[%s191 + $0x488] sm:$0xff]
        %v2038 = vld [vmem:[%s191 + $0x490] sm:$0xff]
        %v2039 = vld [vmem:[%s191 + $0x498] sm:$0xff]
        %v2040 = vld [vmem:[%s191 + $0x4a0] sm:$0xff]
        %v2041 = vld [vmem:[%s191 + $0x4a8] sm:$0xff]
        %v2042 = vld [vmem:[%s191 + $0x4b0] sm:$0xff]
        %v2043 = vld [vmem:[%s191 + $0x4b8] sm:$0xff]
        %v2044 = vld [vmem:[%s191 + $0x4c0] sm:$0xff]
        %v2045 = vld [vmem:[%s191 + $0x4c8] sm:$0xff]
        %v2046 = vld [vmem:[%s191 + $0x4d0] sm:$0xff]
        %v2047 = vld [vmem:[%s191 + $0x4d8] sm:$0xff]
        %v2048 = vld [vmem:[%s191 + $0x4e0] sm:$0xff]
        %v2049 = vld [vmem:[%s191 + $0x4e8] sm:$0xff]
        %v2050 = vld [vmem:[%s191 + $0x4f0] sm:$0xff]
        %v2051 = vld [vmem:[%s191 + $0x4f8] sm:$0xff]
        %v2052 = vld [vmem:[%s191 + $0x500] sm:$0xff]
        %v2053 = vld [vmem:[%s191 + $0x508] sm:$0xff]
        %v2054 = vld [vmem:[%s191 + $0x510] sm:$0xff]
        %v2055 = vld [vmem:[%s191 + $0x518] sm:$0xff]
        %v2056 = vld [vmem:[%s191 + $0x520] sm:$0xff]
        %v2057 = vld [vmem:[%s191 + $0x528] sm:$0xff]
        %v2058 = vld [vmem:[%s191 + $0x530] sm:$0xff]
        %v2059 = vld [vmem:[%s191 + $0x538] sm:$0xff]
        %v2060 = vld [vmem:[%s191 + $0x540] sm:$0xff]
        %v2061 = vld [vmem:[%s191 + $0x548] sm:$0xff]
        %v2062 = vld [vmem:[%s191 + $0x550] sm:$0xff]
        %v2063 = vld [vmem:[%s191 + $0x558] sm:$0xff]
        %v2064 = vld [vmem:[%s191 + $0x560] sm:$0xff]
        %v2065 = vld [vmem:[%s191 + $0x568] sm:$0xff]
        %v2066 = vld [vmem:[%s191 + $0x570] sm:$0xff]
        %v2067 = vld [vmem:[%s191 + $0x578] sm:$0xff]
        %v2068 = vld [vmem:[%s191 + $0x580] sm:$0xff]
        %v2069 = vld [vmem:[%s191 + $0x588] sm:$0xff]
        %v2070 = vld [vmem:[%s191 + $0x590] sm:$0xff]
        %v2071 = vld [vmem:[%s191 + $0x598] sm:$0xff]
        %v2072 = vld [vmem:[%s191 + $0x5a0] sm:$0xff]
        %v2073 = vld [vmem:[%s191 + $0x5a8] sm:$0xff]
        %v2074 = vld [vmem:[%s191 + $0x5b0] sm:$0xff]
        %v2075 = vld [vmem:[%s191 + $0x5b8] sm:$0xff]
        %v2076 = vld [vmem:[%s191 + $0x5c0] sm:$0xff]
        %v2077 = vld [vmem:[%s191 + $0x5c8] sm:$0xff]
        %v2078 = vld [vmem:[%s191 + $0x5d0] sm:$0xff]
        %v2079 = vld [vmem:[%s191 + $0x5d8] sm:$0xff]
        %v2080 = vld [vmem:[%s191 + $0x5e0] sm:$0xff]
        %v2081 = vld [vmem:[%s191 + $0x5e8] sm:$0xff]
        %v2082 = vld [vmem:[%s191 + $0x5f0] sm:$0xff]
        %v2083 = vld [vmem:[%s191 + $0x5f8] sm:$0xff]
        %v2084 = vld [vmem:[%s191 + $0x600] sm:$0xff]
        %v2085 = vld [vmem:[%s191 + $0x608] sm:$0xff]
        %v2086 = vld [vmem:[%s191 + $0x610] sm:$0xff]
        %v2087 = vld [vmem:[%s191 + $0x618] sm:$0xff]
        %v2088 = vld [vmem:[%s191 + $0x620] sm:$0xff]
        %v2089 = vld [vmem:[%s191 + $0x628] sm:$0xff]
        %v2090 = vld [vmem:[%s191 + $0x630] sm:$0xff]
        %v2091 = vld [vmem:[%s191 + $0x638] sm:$0xff]
        %v2092 = vld [vmem:[%s191 + $0x640] sm:$0xff]
        %v2093 = vld [vmem:[%s191 + $0x648] sm:$0xff]
        %v2094 = vld [vmem:[%s191 + $0x650] sm:$0xff]
        %v2095 = vld [vmem:[%s191 + $0x658] sm:$0xff]
        %v2096 = vld [vmem:[%s191 + $0x660] sm:$0xff]
        %v2097 = vld [vmem:[%s191 + $0x668] sm:$0xff]
        %v2098 = vld [vmem:[%s191 + $0x670] sm:$0xff]
        %v2099 = vld [vmem:[%s191 + $0x678] sm:$0xff]
        %v2100 = vld [vmem:[%s191 + $0x680] sm:$0xff]
        %v2101 = vld [vmem:[%s191 + $0x688] sm:$0xff]
        %v2102 = vld [vmem:[%s191 + $0x690] sm:$0xff]
        %v2103 = vld [vmem:[%s191 + $0x698] sm:$0xff]
        %v2104 = vld [vmem:[%s191 + $0x6a0] sm:$0xff]
        %v2105 = vld [vmem:[%s191 + $0x6a8] sm:$0xff]
        %v2106 = vld [vmem:[%s191 + $0x6b0] sm:$0xff]
        %v2107 = vld [vmem:[%s191 + $0x6b8] sm:$0xff]
        %v2108 = vld [vmem:[%s191 + $0x6c0] sm:$0xff]
        %v2109 = vld [vmem:[%s191 + $0x6c8] sm:$0xff]
        %v2110 = vld [vmem:[%s191 + $0x6d0] sm:$0xff]
        %v2111 = vld [vmem:[%s191 + $0x6d8] sm:$0xff]
        %v2112 = vld [vmem:[%s191 + $0x6e0] sm:$0xff]
        %v2113 = vld [vmem:[%s191 + $0x6e8] sm:$0xff]
        %v2114 = vld [vmem:[%s191 + $0x6f0] sm:$0xff]
        %v2115 = vld [vmem:[%s191 + $0x6f8] sm:$0xff]
        %v2116 = vld [vmem:[%s191 + $0x700] sm:$0xff]
        %v2117 = vld [vmem:[%s191 + $0x708] sm:$0xff]
        %v2118 = vld [vmem:[%s191 + $0x710] sm:$0xff]
        %v2119 = vld [vmem:[%s191 + $0x718] sm:$0xff]
        %v2120 = vld [vmem:[%s191 + $0x720] sm:$0xff]
        %v2121 = vld [vmem:[%s191 + $0x728] sm:$0xff]
        %v2122 = vld [vmem:[%s191 + $0x730] sm:$0xff]
        %v2123 = vld [vmem:[%s191 + $0x738] sm:$0xff]
        %v2124 = vld [vmem:[%s191 + $0x740] sm:$0xff]
        %v2125 = vld [vmem:[%s191 + $0x748] sm:$0xff]
        %v2126 = vld [vmem:[%s191 + $0x750] sm:$0xff]
        %v2127 = vld [vmem:[%s191 + $0x758] sm:$0xff]
        %v2128 = vld [vmem:[%s191 + $0x760] sm:$0xff]
        %v2129 = vld [vmem:[%s191 + $0x768] sm:$0xff]
        %v2130 = vld [vmem:[%s191 + $0x770] sm:$0xff]
        %v2131 = vld [vmem:[%s191 + $0x778] sm:$0xff]
        %v2132 = vld [vmem:[%s191 + $0x780] sm:$0xff]
        %v2133 = vld [vmem:[%s191 + $0x788] sm:$0xff]
        %v2134 = vld [vmem:[%s191 + $0x790] sm:$0xff]
        %v2135 = vld [vmem:[%s191 + $0x798] sm:$0xff]
        %v2136 = vld [vmem:[%s191 + $0x7a0] sm:$0xff]
        %v2137 = vld [vmem:[%s191 + $0x7a8] sm:$0xff]
        %v2138 = vld [vmem:[%s191 + $0x7b0] sm:$0xff]
        %v2139 = vld [vmem:[%s191 + $0x7b8] sm:$0xff]
        %v2140 = vld [vmem:[%s191 + $0x7c0] sm:$0xff]
        %v2141 = vld [vmem:[%s191 + $0x7c8] sm:$0xff]
        %v2142 = vld [vmem:[%s191 + $0x7d0] sm:$0xff]
        %v2143 = vld [vmem:[%s191 + $0x7d8] sm:$0xff]
        %v2144 = vld [vmem:[%s191 + $0x7e0] sm:$0xff]
        %v2145 = vld [vmem:[%s191 + $0x7e8] sm:$0xff]
        %v2146 = vld [vmem:[%s191 + $0x7f0] sm:$0xff]
        %v2147 = vld [vmem:[%s191 + $0x7f8] sm:$0xff]
        %2148 = vmatpush.msra.mxu0 %v1440
        %2149 = vmatpush.msra.mxu0 %v1436
        %2150 = vmatpush.msra.mxu0 %v1432
        %2151 = vmatpush.msra.mxu0 %v1428
        %2152 = vmatpush.msra.mxu0 %v1424
        %2153 = vmatpush.msra.mxu0 %v1420
        %2154 = vmatpush.msra.mxu0 %v1416
        %2155 = vmatpush.msra.mxu0 %v1412
        %2156 = vmatpush.msra.mxu0 %v1408
        %2157 = vmatpush.msra.mxu0 %v1404
        %2158 = vmatpush.msra.mxu0 %v1400
        %2159 = vmatpush.msra.mxu0 %v1396
        %2160 = vmatpush.msra.mxu0 %v1392
        %2161 = vmatpush.msra.mxu0 %v1388
        %2162 = vmatpush.msra.mxu0 %v1384
        %2163 = vmatpush.msra.mxu0 %v1380
        %2164 = vmatmul.f32.gmra.mxu0 %v1892
        %v2165 = vpop.f32.mrf.mxu0
        %v2166 = vadd.f32 0.0, %v2165
        %2167 = vmatmul.f32.gmra.mxu0 %v1900
        %v2168 = vpop.f32.mrf.mxu0
        %v2169 = vadd.f32 0.0, %v2168
        %2170 = vmatmul.f32.gmra.mxu0 %v1908
        %v2171 = vpop.f32.mrf.mxu0
        %v2172 = vadd.f32 0.0, %v2171
        %2173 = vmatmul.f32.gmra.mxu0 %v1916
        %v2174 = vpop.f32.mrf.mxu0
        %v2175 = vadd.f32 0.0, %v2174
        %2176 = vmatmul.f32.gmra.mxu0 %v1924
        %v2177 = vpop.f32.mrf.mxu0
        %v2178 = vadd.f32 0.0, %v2177
        %2179 = vmatmul.f32.gmra.mxu0 %v1932
        %v2180 = vpop.f32.mrf.mxu0
        %v2181 = vadd.f32 0.0, %v2180
        %2182 = vmatmul.f32.gmra.mxu0 %v1940
        %v2183 = vpop.f32.mrf.mxu0
        %v2184 = vadd.f32 0.0, %v2183
        %2185 = vmatmul.f32.gmra.mxu0 %v1948
        %v2186 = vpop.f32.mrf.mxu0
        %v2187 = vadd.f32 0.0, %v2186
        %2188 = vmatmul.f32.gmra.mxu0 %v1956
        %v2189 = vpop.f32.mrf.mxu0
        %v2190 = vadd.f32 0.0, %v2189
        %2191 = vmatmul.f32.gmra.mxu0 %v1964
        %v2192 = vpop.f32.mrf.mxu0
        %v2193 = vadd.f32 0.0, %v2192
        %2194 = vmatmul.f32.gmra.mxu0 %v1972
        %v2195 = vpop.f32.mrf.mxu0
        %v2196 = vadd.f32 0.0, %v2195
        %2197 = vmatmul.f32.gmra.mxu0 %v1980
        %v2198 = vpop.f32.mrf.mxu0
        %v2199 = vadd.f32 0.0, %v2198
        %2200 = vmatmul.f32.gmra.mxu0 %v1988
        %v2201 = vpop.f32.mrf.mxu0
        %v2202 = vadd.f32 0.0, %v2201
        %2203 = vmatmul.f32.gmra.mxu0 %v1996
        %v2204 = vpop.f32.mrf.mxu0
        %v2205 = vadd.f32 0.0, %v2204
        %2206 = vmatmul.f32.gmra.mxu0 %v2004
        %v2207 = vpop.f32.mrf.mxu0
        %v2208 = vadd.f32 0.0, %v2207
        %2209 = vmatmul.f32.gmra.mxu0 %v2012
        %v2210 = vpop.f32.mrf.mxu0
        %v2211 = vadd.f32 0.0, %v2210
        %2212 = vmatmul.f32.gmra.mxu0 %v2020
        %v2213 = vpop.f32.mrf.mxu0
        %v2214 = vadd.f32 0.0, %v2213
        %2215 = vmatmul.f32.gmra.mxu0 %v2028
        %v2216 = vpop.f32.mrf.mxu0
        %v2217 = vadd.f32 0.0, %v2216
        %2218 = vmatmul.f32.gmra.mxu0 %v2036
        %v2219 = vpop.f32.mrf.mxu0
        %v2220 = vadd.f32 0.0, %v2219
        %2221 = vmatmul.f32.gmra.mxu0 %v2044
        %v2222 = vpop.f32.mrf.mxu0
        %v2223 = vadd.f32 0.0, %v2222
        %2224 = vmatmul.f32.gmra.mxu0 %v2052
        %v2225 = vpop.f32.mrf.mxu0
        %v2226 = vadd.f32 0.0, %v2225
        %2227 = vmatmul.f32.gmra.mxu0 %v2060
        %v2228 = vpop.f32.mrf.mxu0
        %v2229 = vadd.f32 0.0, %v2228
        %2230 = vmatmul.f32.gmra.mxu0 %v2068
        %v2231 = vpop.f32.mrf.mxu0
        %v2232 = vadd.f32 0.0, %v2231
        %2233 = vmatmul.f32.gmra.mxu0 %v2076
        %v2234 = vpop.f32.mrf.mxu0
        %v2235 = vadd.f32 0.0, %v2234
        %2236 = vmatmul.f32.gmra.mxu0 %v2084
        %v2237 = vpop.f32.mrf.mxu0
        %v2238 = vadd.f32 0.0, %v2237
        %2239 = vmatmul.f32.gmra.mxu0 %v2092
        %v2240 = vpop.f32.mrf.mxu0
        %v2241 = vadd.f32 0.0, %v2240
        %2242 = vmatmul.f32.gmra.mxu0 %v2100
        %v2243 = vpop.f32.mrf.mxu0
        %v2244 = vadd.f32 0.0, %v2243
        %2245 = vmatmul.f32.gmra.mxu0 %v2108
        %v2246 = vpop.f32.mrf.mxu0
        %v2247 = vadd.f32 0.0, %v2246
        %2248 = vmatmul.f32.gmra.mxu0 %v2116
        %v2249 = vpop.f32.mrf.mxu0
        %v2250 = vadd.f32 0.0, %v2249
        %2251 = vmatmul.f32.gmra.mxu0 %v2124
        %v2252 = vpop.f32.mrf.mxu0
        %v2253 = vadd.f32 0.0, %v2252
        %2254 = vmatmul.f32.gmra.mxu0 %v2132
        %v2255 = vpop.f32.mrf.mxu0
        %v2256 = vadd.f32 0.0, %v2255
        %2257 = vmatmul.f32.gmra.mxu0 %v2140
        %v2258 = vpop.f32.mrf.mxu0
        %v2259 = vadd.f32 0.0, %v2258
        %2260 = vdwg.mxu0
        %2261 = vmatpush.msra.mxu0 %v1504
        %2262 = vmatpush.msra.mxu0 %v1500
        %2263 = vmatpush.msra.mxu0 %v1496
        %2264 = vmatpush.msra.mxu0 %v1492
        %2265 = vmatpush.msra.mxu0 %v1488
        %2266 = vmatpush.msra.mxu0 %v1484
        %2267 = vmatpush.msra.mxu0 %v1480
        %2268 = vmatpush.msra.mxu0 %v1476
        %2269 = vmatpush.msra.mxu0 %v1472
        %2270 = vmatpush.msra.mxu0 %v1468
        %2271 = vmatpush.msra.mxu0 %v1464
        %2272 = vmatpush.msra.mxu0 %v1460
        %2273 = vmatpush.msra.mxu0 %v1456
        %2274 = vmatpush.msra.mxu0 %v1452
        %2275 = vmatpush.msra.mxu0 %v1448
        %2276 = vmatpush.msra.mxu0 %v1444
        %2277 = vmatmul.f32.gmra.mxu0 %v1893
        %v2278 = vpop.f32.mrf.mxu0
        %v2279 = vadd.f32 %v2166, %v2278
        %2280 = vmatmul.f32.gmra.mxu0 %v1901
        %v2281 = vpop.f32.mrf.mxu0
        %v2282 = vadd.f32 %v2169, %v2281
        %2283 = vmatmul.f32.gmra.mxu0 %v1909
        %v2284 = vpop.f32.mrf.mxu0
        %v2285 = vadd.f32 %v2172, %v2284
        %2286 = vmatmul.f32.gmra.mxu0 %v1917
        %v2287 = vpop.f32.mrf.mxu0
        %v2288 = vadd.f32 %v2175, %v2287
        %2289 = vmatmul.f32.gmra.mxu0 %v1925
        %v2290 = vpop.f32.mrf.mxu0
        %v2291 = vadd.f32 %v2178, %v2290
        %2292 = vmatmul.f32.gmra.mxu0 %v1933
        %v2293 = vpop.f32.mrf.mxu0
        %v2294 = vadd.f32 %v2181, %v2293
        %2295 = vmatmul.f32.gmra.mxu0 %v1941
        %v2296 = vpop.f32.mrf.mxu0
        %v2297 = vadd.f32 %v2184, %v2296
        %2298 = vmatmul.f32.gmra.mxu0 %v1949
        %v2299 = vpop.f32.mrf.mxu0
        %v2300 = vadd.f32 %v2187, %v2299
        %2301 = vmatmul.f32.gmra.mxu0 %v1957
        %v2302 = vpop.f32.mrf.mxu0
        %v2303 = vadd.f32 %v2190, %v2302
        %2304 = vmatmul.f32.gmra.mxu0 %v1965
        %v2305 = vpop.f32.mrf.mxu0
        %v2306 = vadd.f32 %v2193, %v2305
        %2307 = vmatmul.f32.gmra.mxu0 %v1973
        %v2308 = vpop.f32.mrf.mxu0
        %v2309 = vadd.f32 %v2196, %v2308
        %2310 = vmatmul.f32.gmra.mxu0 %v1981
        %v2311 = vpop.f32.mrf.mxu0
        %v2312 = vadd.f32 %v2199, %v2311
        %2313 = vmatmul.f32.gmra.mxu0 %v1989
        %v2314 = vpop.f32.mrf.mxu0
        %v2315 = vadd.f32 %v2202, %v2314
        %2316 = vmatmul.f32.gmra.mxu0 %v1997
        %v2317 = vpop.f32.mrf.mxu0
        %v2318 = vadd.f32 %v2205, %v2317
        %2319 = vmatmul.f32.gmra.mxu0 %v2005
        %v2320 = vpop.f32.mrf.mxu0
        %v2321 = vadd.f32 %v2208, %v2320
        %2322 = vmatmul.f32.gmra.mxu0 %v2013
        %v2323 = vpop.f32.mrf.mxu0
        %v2324 = vadd.f32 %v2211, %v2323
        %2325 = vmatmul.f32.gmra.mxu0 %v2021
        %v2326 = vpop.f32.mrf.mxu0
        %v2327 = vadd.f32 %v2214, %v2326
        %2328 = vmatmul.f32.gmra.mxu0 %v2029
        %v2329 = vpop.f32.mrf.mxu0
        %v2330 = vadd.f32 %v2217, %v2329
        %2331 = vmatmul.f32.gmra.mxu0 %v2037
        %v2332 = vpop.f32.mrf.mxu0
        %v2333 = vadd.f32 %v2220, %v2332
        %2334 = vmatmul.f32.gmra.mxu0 %v2045
        %v2335 = vpop.f32.mrf.mxu0
        %v2336 = vadd.f32 %v2223, %v2335
        %2337 = vmatmul.f32.gmra.mxu0 %v2053
        %v2338 = vpop.f32.mrf.mxu0
        %v2339 = vadd.f32 %v2226, %v2338
        %2340 = vmatmul.f32.gmra.mxu0 %v2061
        %v2341 = vpop.f32.mrf.mxu0
        %v2342 = vadd.f32 %v2229, %v2341
        %2343 = vmatmul.f32.gmra.mxu0 %v2069
        %v2344 = vpop.f32.mrf.mxu0
        %v2345 = vadd.f32 %v2232, %v2344
        %2346 = vmatmul.f32.gmra.mxu0 %v2077
        %v2347 = vpop.f32.mrf.mxu0
        %v2348 = vadd.f32 %v2235, %v2347
        %2349 = vmatmul.f32.gmra.mxu0 %v2085
        %v2350 = vpop.f32.mrf.mxu0
        %v2351 = vadd.f32 %v2238, %v2350
        %2352 = vmatmul.f32.gmra.mxu0 %v2093
        %v2353 = vpop.f32.mrf.mxu0
        %v2354 = vadd.f32 %v2241, %v2353
        %2355 = vmatmul.f32.gmra.mxu0 %v2101
        %v2356 = vpop.f32.mrf.mxu0
        %v2357 = vadd.f32 %v2244, %v2356
        %2358 = vmatmul.f32.gmra.mxu0 %v2109
        %v2359 = vpop.f32.mrf.mxu0
        %v2360 = vadd.f32 %v2247, %v2359
        %2361 = vmatmul.f32.gmra.mxu0 %v2117
        %v2362 = vpop.f32.mrf.mxu0
        %v2363 = vadd.f32 %v2250, %v2362
        %2364 = vmatmul.f32.gmra.mxu0 %v2125
        %v2365 = vpop.f32.mrf.mxu0
        %v2366 = vadd.f32 %v2253, %v2365
        %2367 = vmatmul.f32.gmra.mxu0 %v2133
        %v2368 = vpop.f32.mrf.mxu0
        %v2369 = vadd.f32 %v2256, %v2368
        %2370 = vmatmul.f32.gmra.mxu0 %v2141
        %v2371 = vpop.f32.mrf.mxu0
        %v2372 = vadd.f32 %v2259, %v2371
        %2373 = vdwg.mxu0
        %2374 = vmatpush.msra.mxu0 %v1568
        %2375 = vmatpush.msra.mxu0 %v1564
        %2376 = vmatpush.msra.mxu0 %v1560
        %2377 = vmatpush.msra.mxu0 %v1556
        %2378 = vmatpush.msra.mxu0 %v1552
        %2379 = vmatpush.msra.mxu0 %v1548
        %2380 = vmatpush.msra.mxu0 %v1544
        %2381 = vmatpush.msra.mxu0 %v1540
        %2382 = vmatpush.msra.mxu0 %v1536
        %2383 = vmatpush.msra.mxu0 %v1532
        %2384 = vmatpush.msra.mxu0 %v1528
        %2385 = vmatpush.msra.mxu0 %v1524
        %2386 = vmatpush.msra.mxu0 %v1520
        %2387 = vmatpush.msra.mxu0 %v1516
        %2388 = vmatpush.msra.mxu0 %v1512
        %2389 = vmatpush.msra.mxu0 %v1508
        %2390 = vmatmul.f32.gmra.mxu0 %v1894
        %v2391 = vpop.f32.mrf.mxu0
        %v2392 = vadd.f32 %v2279, %v2391
        %2393 = vmatmul.f32.gmra.mxu0 %v1902
        %v2394 = vpop.f32.mrf.mxu0
        %v2395 = vadd.f32 %v2282, %v2394
        %2396 = vmatmul.f32.gmra.mxu0 %v1910
        %v2397 = vpop.f32.mrf.mxu0
        %v2398 = vadd.f32 %v2285, %v2397
        %2399 = vmatmul.f32.gmra.mxu0 %v1918
        %v2400 = vpop.f32.mrf.mxu0
        %v2401 = vadd.f32 %v2288, %v2400
        %2402 = vmatmul.f32.gmra.mxu0 %v1926
        %v2403 = vpop.f32.mrf.mxu0
        %v2404 = vadd.f32 %v2291, %v2403
        %2405 = vmatmul.f32.gmra.mxu0 %v1934
        %v2406 = vpop.f32.mrf.mxu0
        %v2407 = vadd.f32 %v2294, %v2406
        %2408 = vmatmul.f32.gmra.mxu0 %v1942
        %v2409 = vpop.f32.mrf.mxu0
        %v2410 = vadd.f32 %v2297, %v2409
        %2411 = vmatmul.f32.gmra.mxu0 %v1950
        %v2412 = vpop.f32.mrf.mxu0
        %v2413 = vadd.f32 %v2300, %v2412
        %2414 = vmatmul.f32.gmra.mxu0 %v1958
        %v2415 = vpop.f32.mrf.mxu0
        %v2416 = vadd.f32 %v2303, %v2415
        %2417 = vmatmul.f32.gmra.mxu0 %v1966
        %v2418 = vpop.f32.mrf.mxu0
        %v2419 = vadd.f32 %v2306, %v2418
        %2420 = vmatmul.f32.gmra.mxu0 %v1974
        %v2421 = vpop.f32.mrf.mxu0
        %v2422 = vadd.f32 %v2309, %v2421
        %2423 = vmatmul.f32.gmra.mxu0 %v1982
        %v2424 = vpop.f32.mrf.mxu0
        %v2425 = vadd.f32 %v2312, %v2424
        %2426 = vmatmul.f32.gmra.mxu0 %v1990
        %v2427 = vpop.f32.mrf.mxu0
        %v2428 = vadd.f32 %v2315, %v2427
        %2429 = vmatmul.f32.gmra.mxu0 %v1998
        %v2430 = vpop.f32.mrf.mxu0
        %v2431 = vadd.f32 %v2318, %v2430
        %2432 = vmatmul.f32.gmra.mxu0 %v2006
        %v2433 = vpop.f32.mrf.mxu0
        %v2434 = vadd.f32 %v2321, %v2433
        %2435 = vmatmul.f32.gmra.mxu0 %v2014
        %v2436 = vpop.f32.mrf.mxu0
        %v2437 = vadd.f32 %v2324, %v2436
        %2438 = vmatmul.f32.gmra.mxu0 %v2022
        %v2439 = vpop.f32.mrf.mxu0
        %v2440 = vadd.f32 %v2327, %v2439
        %2441 = vmatmul.f32.gmra.mxu0 %v2030
        %v2442 = vpop.f32.mrf.mxu0
        %v2443 = vadd.f32 %v2330, %v2442
        %2444 = vmatmul.f32.gmra.mxu0 %v2038
        %v2445 = vpop.f32.mrf.mxu0
        %v2446 = vadd.f32 %v2333, %v2445
        %2447 = vmatmul.f32.gmra.mxu0 %v2046
        %v2448 = vpop.f32.mrf.mxu0
        %v2449 = vadd.f32 %v2336, %v2448
        %2450 = vmatmul.f32.gmra.mxu0 %v2054
        %v2451 = vpop.f32.mrf.mxu0
        %v2452 = vadd.f32 %v2339, %v2451
        %2453 = vmatmul.f32.gmra.mxu0 %v2062
        %v2454 = vpop.f32.mrf.mxu0
        %v2455 = vadd.f32 %v2342, %v2454
        %2456 = vmatmul.f32.gmra.mxu0 %v2070
        %v2457 = vpop.f32.mrf.mxu0
        %v2458 = vadd.f32 %v2345, %v2457
        %2459 = vmatmul.f32.gmra.mxu0 %v2078
        %v2460 = vpop.f32.mrf.mxu0
        %v2461 = vadd.f32 %v2348, %v2460
        %2462 = vmatmul.f32.gmra.mxu0 %v2086
        %v2463 = vpop.f32.mrf.mxu0
        %v2464 = vadd.f32 %v2351, %v2463
        %2465 = vmatmul.f32.gmra.mxu0 %v2094
        %v2466 = vpop.f32.mrf.mxu0
        %v2467 = vadd.f32 %v2354, %v2466
        %2468 = vmatmul.f32.gmra.mxu0 %v2102
        %v2469 = vpop.f32.mrf.mxu0
        %v2470 = vadd.f32 %v2357, %v2469
        %2471 = vmatmul.f32.gmra.mxu0 %v2110
        %v2472 = vpop.f32.mrf.mxu0
        %v2473 = vadd.f32 %v2360, %v2472
        %2474 = vmatmul.f32.gmra.mxu0 %v2118
        %v2475 = vpop.f32.mrf.mxu0
        %v2476 = vadd.f32 %v2363, %v2475
        %2477 = vmatmul.f32.gmra.mxu0 %v2126
        %v2478 = vpop.f32.mrf.mxu0
        %v2479 = vadd.f32 %v2366, %v2478
        %2480 = vmatmul.f32.gmra.mxu0 %v2134
        %v2481 = vpop.f32.mrf.mxu0
        %v2482 = vadd.f32 %v2369, %v2481
        %2483 = vmatmul.f32.gmra.mxu0 %v2142
        %v2484 = vpop.f32.mrf.mxu0
        %v2485 = vadd.f32 %v2372, %v2484
        %2486 = vdwg.mxu0
        %2487 = vmatpush.msra.mxu0 %v1632
        %2488 = vmatpush.msra.mxu0 %v1628
        %2489 = vmatpush.msra.mxu0 %v1624
        %2490 = vmatpush.msra.mxu0 %v1620
        %2491 = vmatpush.msra.mxu0 %v1616
        %2492 = vmatpush.msra.mxu0 %v1612
        %2493 = vmatpush.msra.mxu0 %v1608
        %2494 = vmatpush.msra.mxu0 %v1604
        %2495 = vmatpush.msra.mxu0 %v1600
        %2496 = vmatpush.msra.mxu0 %v1596
        %2497 = vmatpush.msra.mxu0 %v1592
        %2498 = vmatpush.msra.mxu0 %v1588
        %2499 = vmatpush.msra.mxu0 %v1584
        %2500 = vmatpush.msra.mxu0 %v1580
        %2501 = vmatpush.msra.mxu0 %v1576
        %2502 = vmatpush.msra.mxu0 %v1572
        %2503 = vmatmul.f32.gmra.mxu0 %v1895
        %v2504 = vpop.f32.mrf.mxu0
        %v2505 = vadd.f32 %v2392, %v2504
        %2506 = vmatmul.f32.gmra.mxu0 %v1903
        %v2507 = vpop.f32.mrf.mxu0
        %v2508 = vadd.f32 %v2395, %v2507
        %2509 = vmatmul.f32.gmra.mxu0 %v1911
        %v2510 = vpop.f32.mrf.mxu0
        %v2511 = vadd.f32 %v2398, %v2510
        %2512 = vmatmul.f32.gmra.mxu0 %v1919
        %v2513 = vpop.f32.mrf.mxu0
        %v2514 = vadd.f32 %v2401, %v2513
        %2515 = vmatmul.f32.gmra.mxu0 %v1927
        %v2516 = vpop.f32.mrf.mxu0
        %v2517 = vadd.f32 %v2404, %v2516
        %2518 = vmatmul.f32.gmra.mxu0 %v1935
        %v2519 = vpop.f32.mrf.mxu0
        %v2520 = vadd.f32 %v2407, %v2519
        %2521 = vmatmul.f32.gmra.mxu0 %v1943
        %v2522 = vpop.f32.mrf.mxu0
        %v2523 = vadd.f32 %v2410, %v2522
        %2524 = vmatmul.f32.gmra.mxu0 %v1951
        %v2525 = vpop.f32.mrf.mxu0
        %v2526 = vadd.f32 %v2413, %v2525
        %2527 = vmatmul.f32.gmra.mxu0 %v1959
        %v2528 = vpop.f32.mrf.mxu0
        %v2529 = vadd.f32 %v2416, %v2528
        %2530 = vmatmul.f32.gmra.mxu0 %v1967
        %v2531 = vpop.f32.mrf.mxu0
        %v2532 = vadd.f32 %v2419, %v2531
        %2533 = vmatmul.f32.gmra.mxu0 %v1975
        %v2534 = vpop.f32.mrf.mxu0
        %v2535 = vadd.f32 %v2422, %v2534
        %2536 = vmatmul.f32.gmra.mxu0 %v1983
        %v2537 = vpop.f32.mrf.mxu0
        %v2538 = vadd.f32 %v2425, %v2537
        %2539 = vmatmul.f32.gmra.mxu0 %v1991
        %v2540 = vpop.f32.mrf.mxu0
        %v2541 = vadd.f32 %v2428, %v2540
        %2542 = vmatmul.f32.gmra.mxu0 %v1999
        %v2543 = vpop.f32.mrf.mxu0
        %v2544 = vadd.f32 %v2431, %v2543
        %2545 = vmatmul.f32.gmra.mxu0 %v2007
        %v2546 = vpop.f32.mrf.mxu0
        %v2547 = vadd.f32 %v2434, %v2546
        %2548 = vmatmul.f32.gmra.mxu0 %v2015
        %v2549 = vpop.f32.mrf.mxu0
        %v2550 = vadd.f32 %v2437, %v2549
        %2551 = vmatmul.f32.gmra.mxu0 %v2023
        %v2552 = vpop.f32.mrf.mxu0
        %v2553 = vadd.f32 %v2440, %v2552
        %2554 = vmatmul.f32.gmra.mxu0 %v2031
        %v2555 = vpop.f32.mrf.mxu0
        %v2556 = vadd.f32 %v2443, %v2555
        %2557 = vmatmul.f32.gmra.mxu0 %v2039
        %v2558 = vpop.f32.mrf.mxu0
        %v2559 = vadd.f32 %v2446, %v2558
        %2560 = vmatmul.f32.gmra.mxu0 %v2047
        %v2561 = vpop.f32.mrf.mxu0
        %v2562 = vadd.f32 %v2449, %v2561
        %2563 = vmatmul.f32.gmra.mxu0 %v2055
        %v2564 = vpop.f32.mrf.mxu0
        %v2565 = vadd.f32 %v2452, %v2564
        %2566 = vmatmul.f32.gmra.mxu0 %v2063
        %v2567 = vpop.f32.mrf.mxu0
        %v2568 = vadd.f32 %v2455, %v2567
        %2569 = vmatmul.f32.gmra.mxu0 %v2071
        %v2570 = vpop.f32.mrf.mxu0
        %v2571 = vadd.f32 %v2458, %v2570
        %2572 = vmatmul.f32.gmra.mxu0 %v2079
        %v2573 = vpop.f32.mrf.mxu0
        %v2574 = vadd.f32 %v2461, %v2573
        %2575 = vmatmul.f32.gmra.mxu0 %v2087
        %v2576 = vpop.f32.mrf.mxu0
        %v2577 = vadd.f32 %v2464, %v2576
        %2578 = vmatmul.f32.gmra.mxu0 %v2095
        %v2579 = vpop.f32.mrf.mxu0
        %v2580 = vadd.f32 %v2467, %v2579
        %2581 = vmatmul.f32.gmra.mxu0 %v2103
        %v2582 = vpop.f32.mrf.mxu0
        %v2583 = vadd.f32 %v2470, %v2582
        %2584 = vmatmul.f32.gmra.mxu0 %v2111
        %v2585 = vpop.f32.mrf.mxu0
        %v2586 = vadd.f32 %v2473, %v2585
        %2587 = vmatmul.f32.gmra.mxu0 %v2119
        %v2588 = vpop.f32.mrf.mxu0
        %v2589 = vadd.f32 %v2476, %v2588
        %2590 = vmatmul.f32.gmra.mxu0 %v2127
        %v2591 = vpop.f32.mrf.mxu0
        %v2592 = vadd.f32 %v2479, %v2591
        %2593 = vmatmul.f32.gmra.mxu0 %v2135
        %v2594 = vpop.f32.mrf.mxu0
        %v2595 = vadd.f32 %v2482, %v2594
        %2596 = vmatmul.f32.gmra.mxu0 %v2143
        %v2597 = vpop.f32.mrf.mxu0
        %v2598 = vadd.f32 %v2485, %v2597
        %2599 = vdwg.mxu0
        %2600 = vmatpush.msra.mxu0 %v1696
        %2601 = vmatpush.msra.mxu0 %v1692
        %2602 = vmatpush.msra.mxu0 %v1688
        %2603 = vmatpush.msra.mxu0 %v1684
        %2604 = vmatpush.msra.mxu0 %v1680
        %2605 = vmatpush.msra.mxu0 %v1676
        %2606 = vmatpush.msra.mxu0 %v1672
        %2607 = vmatpush.msra.mxu0 %v1668
        %2608 = vmatpush.msra.mxu0 %v1664
        %2609 = vmatpush.msra.mxu0 %v1660
        %2610 = vmatpush.msra.mxu0 %v1656
        %2611 = vmatpush.msra.mxu0 %v1652
        %2612 = vmatpush.msra.mxu0 %v1648
        %2613 = vmatpush.msra.mxu0 %v1644
        %2614 = vmatpush.msra.mxu0 %v1640
        %2615 = vmatpush.msra.mxu0 %v1636
        %2616 = vmatmul.f32.gmra.mxu0 %v1896
        %v2617 = vpop.f32.mrf.mxu0
        %v2618 = vadd.f32 %v2505, %v2617
        %2619 = vmatmul.f32.gmra.mxu0 %v1904
        %v2620 = vpop.f32.mrf.mxu0
        %v2621 = vadd.f32 %v2508, %v2620
        %2622 = vmatmul.f32.gmra.mxu0 %v1912
        %v2623 = vpop.f32.mrf.mxu0
        %v2624 = vadd.f32 %v2511, %v2623
        %2625 = vmatmul.f32.gmra.mxu0 %v1920
        %v2626 = vpop.f32.mrf.mxu0
        %v2627 = vadd.f32 %v2514, %v2626
        %2628 = vmatmul.f32.gmra.mxu0 %v1928
        %v2629 = vpop.f32.mrf.mxu0
        %v2630 = vadd.f32 %v2517, %v2629
        %2631 = vmatmul.f32.gmra.mxu0 %v1936
        %v2632 = vpop.f32.mrf.mxu0
        %v2633 = vadd.f32 %v2520, %v2632
        %2634 = vmatmul.f32.gmra.mxu0 %v1944
        %v2635 = vpop.f32.mrf.mxu0
        %v2636 = vadd.f32 %v2523, %v2635
        %2637 = vmatmul.f32.gmra.mxu0 %v1952
        %v2638 = vpop.f32.mrf.mxu0
        %v2639 = vadd.f32 %v2526, %v2638
        %2640 = vmatmul.f32.gmra.mxu0 %v1960
        %v2641 = vpop.f32.mrf.mxu0
        %v2642 = vadd.f32 %v2529, %v2641
        %2643 = vmatmul.f32.gmra.mxu0 %v1968
        %v2644 = vpop.f32.mrf.mxu0
        %v2645 = vadd.f32 %v2532, %v2644
        %2646 = vmatmul.f32.gmra.mxu0 %v1976
        %v2647 = vpop.f32.mrf.mxu0
        %v2648 = vadd.f32 %v2535, %v2647
        %2649 = vmatmul.f32.gmra.mxu0 %v1984
        %v2650 = vpop.f32.mrf.mxu0
        %v2651 = vadd.f32 %v2538, %v2650
        %2652 = vmatmul.f32.gmra.mxu0 %v1992
        %v2653 = vpop.f32.mrf.mxu0
        %v2654 = vadd.f32 %v2541, %v2653
        %2655 = vmatmul.f32.gmra.mxu0 %v2000
        %v2656 = vpop.f32.mrf.mxu0
        %v2657 = vadd.f32 %v2544, %v2656
        %2658 = vmatmul.f32.gmra.mxu0 %v2008
        %v2659 = vpop.f32.mrf.mxu0
        %v2660 = vadd.f32 %v2547, %v2659
        %2661 = vmatmul.f32.gmra.mxu0 %v2016
        %v2662 = vpop.f32.mrf.mxu0
        %v2663 = vadd.f32 %v2550, %v2662
        %2664 = vmatmul.f32.gmra.mxu0 %v2024
        %v2665 = vpop.f32.mrf.mxu0
        %v2666 = vadd.f32 %v2553, %v2665
        %2667 = vmatmul.f32.gmra.mxu0 %v2032
        %v2668 = vpop.f32.mrf.mxu0
        %v2669 = vadd.f32 %v2556, %v2668
        %2670 = vmatmul.f32.gmra.mxu0 %v2040
        %v2671 = vpop.f32.mrf.mxu0
        %v2672 = vadd.f32 %v2559, %v2671
        %2673 = vmatmul.f32.gmra.mxu0 %v2048
        %v2674 = vpop.f32.mrf.mxu0
        %v2675 = vadd.f32 %v2562, %v2674
        %2676 = vmatmul.f32.gmra.mxu0 %v2056
        %v2677 = vpop.f32.mrf.mxu0
        %v2678 = vadd.f32 %v2565, %v2677
        %2679 = vmatmul.f32.gmra.mxu0 %v2064
        %v2680 = vpop.f32.mrf.mxu0
        %v2681 = vadd.f32 %v2568, %v2680
        %2682 = vmatmul.f32.gmra.mxu0 %v2072
        %v2683 = vpop.f32.mrf.mxu0
        %v2684 = vadd.f32 %v2571, %v2683
        %2685 = vmatmul.f32.gmra.mxu0 %v2080
        %v2686 = vpop.f32.mrf.mxu0
        %v2687 = vadd.f32 %v2574, %v2686
        %2688 = vmatmul.f32.gmra.mxu0 %v2088
        %v2689 = vpop.f32.mrf.mxu0
        %v2690 = vadd.f32 %v2577, %v2689
        %2691 = vmatmul.f32.gmra.mxu0 %v2096
        %v2692 = vpop.f32.mrf.mxu0
        %v2693 = vadd.f32 %v2580, %v2692
        %2694 = vmatmul.f32.gmra.mxu0 %v2104
        %v2695 = vpop.f32.mrf.mxu0
        %v2696 = vadd.f32 %v2583, %v2695
        %2697 = vmatmul.f32.gmra.mxu0 %v2112
        %v2698 = vpop.f32.mrf.mxu0
        %v2699 = vadd.f32 %v2586, %v2698
        %2700 = vmatmul.f32.gmra.mxu0 %v2120
        %v2701 = vpop.f32.mrf.mxu0
        %v2702 = vadd.f32 %v2589, %v2701
        %2703 = vmatmul.f32.gmra.mxu0 %v2128
        %v2704 = vpop.f32.mrf.mxu0
        %v2705 = vadd.f32 %v2592, %v2704
        %2706 = vmatmul.f32.gmra.mxu0 %v2136
        %v2707 = vpop.f32.mrf.mxu0
        %v2708 = vadd.f32 %v2595, %v2707
        %2709 = vmatmul.f32.gmra.mxu0 %v2144
        %v2710 = vpop.f32.mrf.mxu0
        %v2711 = vadd.f32 %v2598, %v2710
        %2712 = vdwg.mxu0
        %2713 = vmatpush.msra.mxu0 %v1760
        %2714 = vmatpush.msra.mxu0 %v1756
        %2715 = vmatpush.msra.mxu0 %v1752
        %2716 = vmatpush.msra.mxu0 %v1748
        %2717 = vmatpush.msra.mxu0 %v1744
        %2718 = vmatpush.msra.mxu0 %v1740
        %2719 = vmatpush.msra.mxu0 %v1736
        %2720 = vmatpush.msra.mxu0 %v1732
        %2721 = vmatpush.msra.mxu0 %v1728
        %2722 = vmatpush.msra.mxu0 %v1724
        %2723 = vmatpush.msra.mxu0 %v1720
        %2724 = vmatpush.msra.mxu0 %v1716
        %2725 = vmatpush.msra.mxu0 %v1712
        %2726 = vmatpush.msra.mxu0 %v1708
        %2727 = vmatpush.msra.mxu0 %v1704
        %2728 = vmatpush.msra.mxu0 %v1700
        %2729 = vmatmul.f32.gmra.mxu0 %v1897
        %v2730 = vpop.f32.mrf.mxu0
        %v2731 = vadd.f32 %v2618, %v2730
        %2732 = vmatmul.f32.gmra.mxu0 %v1905
        %v2733 = vpop.f32.mrf.mxu0
        %v2734 = vadd.f32 %v2621, %v2733
        %2735 = vmatmul.f32.gmra.mxu0 %v1913
        %v2736 = vpop.f32.mrf.mxu0
        %v2737 = vadd.f32 %v2624, %v2736
        %2738 = vmatmul.f32.gmra.mxu0 %v1921
        %v2739 = vpop.f32.mrf.mxu0
        %v2740 = vadd.f32 %v2627, %v2739
        %2741 = vmatmul.f32.gmra.mxu0 %v1929
        %v2742 = vpop.f32.mrf.mxu0
        %v2743 = vadd.f32 %v2630, %v2742
        %2744 = vmatmul.f32.gmra.mxu0 %v1937
        %v2745 = vpop.f32.mrf.mxu0
        %v2746 = vadd.f32 %v2633, %v2745
        %2747 = vmatmul.f32.gmra.mxu0 %v1945
        %v2748 = vpop.f32.mrf.mxu0
        %v2749 = vadd.f32 %v2636, %v2748
        %2750 = vmatmul.f32.gmra.mxu0 %v1953
        %v2751 = vpop.f32.mrf.mxu0
        %v2752 = vadd.f32 %v2639, %v2751
        %2753 = vmatmul.f32.gmra.mxu0 %v1961
        %v2754 = vpop.f32.mrf.mxu0
        %v2755 = vadd.f32 %v2642, %v2754
        %2756 = vmatmul.f32.gmra.mxu0 %v1969
        %v2757 = vpop.f32.mrf.mxu0
        %v2758 = vadd.f32 %v2645, %v2757
        %2759 = vmatmul.f32.gmra.mxu0 %v1977
        %v2760 = vpop.f32.mrf.mxu0
        %v2761 = vadd.f32 %v2648, %v2760
        %2762 = vmatmul.f32.gmra.mxu0 %v1985
        %v2763 = vpop.f32.mrf.mxu0
        %v2764 = vadd.f32 %v2651, %v2763
        %2765 = vmatmul.f32.gmra.mxu0 %v1993
        %v2766 = vpop.f32.mrf.mxu0
        %v2767 = vadd.f32 %v2654, %v2766
        %2768 = vmatmul.f32.gmra.mxu0 %v2001
        %v2769 = vpop.f32.mrf.mxu0
        %v2770 = vadd.f32 %v2657, %v2769
        %2771 = vmatmul.f32.gmra.mxu0 %v2009
        %v2772 = vpop.f32.mrf.mxu0
        %v2773 = vadd.f32 %v2660, %v2772
        %2774 = vmatmul.f32.gmra.mxu0 %v2017
        %v2775 = vpop.f32.mrf.mxu0
        %v2776 = vadd.f32 %v2663, %v2775
        %2777 = vmatmul.f32.gmra.mxu0 %v2025
        %v2778 = vpop.f32.mrf.mxu0
        %v2779 = vadd.f32 %v2666, %v2778
        %2780 = vmatmul.f32.gmra.mxu0 %v2033
        %v2781 = vpop.f32.mrf.mxu0
        %v2782 = vadd.f32 %v2669, %v2781
        %2783 = vmatmul.f32.gmra.mxu0 %v2041
        %v2784 = vpop.f32.mrf.mxu0
        %v2785 = vadd.f32 %v2672, %v2784
        %2786 = vmatmul.f32.gmra.mxu0 %v2049
        %v2787 = vpop.f32.mrf.mxu0
        %v2788 = vadd.f32 %v2675, %v2787
        %2789 = vmatmul.f32.gmra.mxu0 %v2057
        %v2790 = vpop.f32.mrf.mxu0
        %v2791 = vadd.f32 %v2678, %v2790
        %2792 = vmatmul.f32.gmra.mxu0 %v2065
        %v2793 = vpop.f32.mrf.mxu0
        %v2794 = vadd.f32 %v2681, %v2793
        %2795 = vmatmul.f32.gmra.mxu0 %v2073
        %v2796 = vpop.f32.mrf.mxu0
        %v2797 = vadd.f32 %v2684, %v2796
        %2798 = vmatmul.f32.gmra.mxu0 %v2081
        %v2799 = vpop.f32.mrf.mxu0
        %v2800 = vadd.f32 %v2687, %v2799
        %2801 = vmatmul.f32.gmra.mxu0 %v2089
        %v2802 = vpop.f32.mrf.mxu0
        %v2803 = vadd.f32 %v2690, %v2802
        %2804 = vmatmul.f32.gmra.mxu0 %v2097
        %v2805 = vpop.f32.mrf.mxu0
        %v2806 = vadd.f32 %v2693, %v2805
        %2807 = vmatmul.f32.gmra.mxu0 %v2105
        %v2808 = vpop.f32.mrf.mxu0
        %v2809 = vadd.f32 %v2696, %v2808
        %2810 = vmatmul.f32.gmra.mxu0 %v2113
        %v2811 = vpop.f32.mrf.mxu0
        %v2812 = vadd.f32 %v2699, %v2811
        %2813 = vmatmul.f32.gmra.mxu0 %v2121
        %v2814 = vpop.f32.mrf.mxu0
        %v2815 = vadd.f32 %v2702, %v2814
        %2816 = vmatmul.f32.gmra.mxu0 %v2129
        %v2817 = vpop.f32.mrf.mxu0
        %v2818 = vadd.f32 %v2705, %v2817
        %2819 = vmatmul.f32.gmra.mxu0 %v2137
        %v2820 = vpop.f32.mrf.mxu0
        %v2821 = vadd.f32 %v2708, %v2820
        %2822 = vmatmul.f32.gmra.mxu0 %v2145
        %v2823 = vpop.f32.mrf.mxu0
        %v2824 = vadd.f32 %v2711, %v2823
        %2825 = vdwg.mxu0
        %2826 = vmatpush.msra.mxu0 %v1824
        %2827 = vmatpush.msra.mxu0 %v1820
        %2828 = vmatpush.msra.mxu0 %v1816
        %2829 = vmatpush.msra.mxu0 %v1812
        %2830 = vmatpush.msra.mxu0 %v1808
        %2831 = vmatpush.msra.mxu0 %v1804
        %2832 = vmatpush.msra.mxu0 %v1800
        %2833 = vmatpush.msra.mxu0 %v1796
        %2834 = vmatpush.msra.mxu0 %v1792
        %2835 = vmatpush.msra.mxu0 %v1788
        %2836 = vmatpush.msra.mxu0 %v1784
        %2837 = vmatpush.msra.mxu0 %v1780
        %2838 = vmatpush.msra.mxu0 %v1776
        %2839 = vmatpush.msra.mxu0 %v1772
        %2840 = vmatpush.msra.mxu0 %v1768
        %2841 = vmatpush.msra.mxu0 %v1764
        %2842 = vmatmul.f32.gmra.mxu0 %v1898
        %v2843 = vpop.f32.mrf.mxu0
        %v2844 = vadd.f32 %v2731, %v2843
        %2845 = vmatmul.f32.gmra.mxu0 %v1906
        %v2846 = vpop.f32.mrf.mxu0
        %v2847 = vadd.f32 %v2734, %v2846
        %2848 = vmatmul.f32.gmra.mxu0 %v1914
        %v2849 = vpop.f32.mrf.mxu0
        %v2850 = vadd.f32 %v2737, %v2849
        %2851 = vmatmul.f32.gmra.mxu0 %v1922
        %v2852 = vpop.f32.mrf.mxu0
        %v2853 = vadd.f32 %v2740, %v2852
        %2854 = vmatmul.f32.gmra.mxu0 %v1930
        %v2855 = vpop.f32.mrf.mxu0
        %v2856 = vadd.f32 %v2743, %v2855
        %2857 = vmatmul.f32.gmra.mxu0 %v1938
        %v2858 = vpop.f32.mrf.mxu0
        %v2859 = vadd.f32 %v2746, %v2858
        %2860 = vmatmul.f32.gmra.mxu0 %v1946
        %v2861 = vpop.f32.mrf.mxu0
        %v2862 = vadd.f32 %v2749, %v2861
        %2863 = vmatmul.f32.gmra.mxu0 %v1954
        %v2864 = vpop.f32.mrf.mxu0
        %v2865 = vadd.f32 %v2752, %v2864
        %2866 = vmatmul.f32.gmra.mxu0 %v1962
        %v2867 = vpop.f32.mrf.mxu0
        %v2868 = vadd.f32 %v2755, %v2867
        %2869 = vmatmul.f32.gmra.mxu0 %v1970
        %v2870 = vpop.f32.mrf.mxu0
        %v2871 = vadd.f32 %v2758, %v2870
        %2872 = vmatmul.f32.gmra.mxu0 %v1978
        %v2873 = vpop.f32.mrf.mxu0
        %v2874 = vadd.f32 %v2761, %v2873
        %2875 = vmatmul.f32.gmra.mxu0 %v1986
        %v2876 = vpop.f32.mrf.mxu0
        %v2877 = vadd.f32 %v2764, %v2876
        %2878 = vmatmul.f32.gmra.mxu0 %v1994
        %v2879 = vpop.f32.mrf.mxu0
        %v2880 = vadd.f32 %v2767, %v2879
        %2881 = vmatmul.f32.gmra.mxu0 %v2002
        %v2882 = vpop.f32.mrf.mxu0
        %v2883 = vadd.f32 %v2770, %v2882
        %2884 = vmatmul.f32.gmra.mxu0 %v2010
        %v2885 = vpop.f32.mrf.mxu0
        %v2886 = vadd.f32 %v2773, %v2885
        %2887 = vmatmul.f32.gmra.mxu0 %v2018
        %v2888 = vpop.f32.mrf.mxu0
        %v2889 = vadd.f32 %v2776, %v2888
        %2890 = vmatmul.f32.gmra.mxu0 %v2026
        %v2891 = vpop.f32.mrf.mxu0
        %v2892 = vadd.f32 %v2779, %v2891
        %2893 = vmatmul.f32.gmra.mxu0 %v2034
        %v2894 = vpop.f32.mrf.mxu0
        %v2895 = vadd.f32 %v2782, %v2894
        %2896 = vmatmul.f32.gmra.mxu0 %v2042
        %v2897 = vpop.f32.mrf.mxu0
        %v2898 = vadd.f32 %v2785, %v2897
        %2899 = vmatmul.f32.gmra.mxu0 %v2050
        %v2900 = vpop.f32.mrf.mxu0
        %v2901 = vadd.f32 %v2788, %v2900
        %2902 = vmatmul.f32.gmra.mxu0 %v2058
        %v2903 = vpop.f32.mrf.mxu0
        %v2904 = vadd.f32 %v2791, %v2903
        %2905 = vmatmul.f32.gmra.mxu0 %v2066
        %v2906 = vpop.f32.mrf.mxu0
        %v2907 = vadd.f32 %v2794, %v2906
        %2908 = vmatmul.f32.gmra.mxu0 %v2074
        %v2909 = vpop.f32.mrf.mxu0
        %v2910 = vadd.f32 %v2797, %v2909
        %2911 = vmatmul.f32.gmra.mxu0 %v2082
        %v2912 = vpop.f32.mrf.mxu0
        %v2913 = vadd.f32 %v2800, %v2912
        %2914 = vmatmul.f32.gmra.mxu0 %v2090
        %v2915 = vpop.f32.mrf.mxu0
        %v2916 = vadd.f32 %v2803, %v2915
        %2917 = vmatmul.f32.gmra.mxu0 %v2098
        %v2918 = vpop.f32.mrf.mxu0
        %v2919 = vadd.f32 %v2806, %v2918
        %2920 = vmatmul.f32.gmra.mxu0 %v2106
        %v2921 = vpop.f32.mrf.mxu0
        %v2922 = vadd.f32 %v2809, %v2921
        %2923 = vmatmul.f32.gmra.mxu0 %v2114
        %v2924 = vpop.f32.mrf.mxu0
        %v2925 = vadd.f32 %v2812, %v2924
        %2926 = vmatmul.f32.gmra.mxu0 %v2122
        %v2927 = vpop.f32.mrf.mxu0
        %v2928 = vadd.f32 %v2815, %v2927
        %2929 = vmatmul.f32.gmra.mxu0 %v2130
        %v2930 = vpop.f32.mrf.mxu0
        %v2931 = vadd.f32 %v2818, %v2930
        %2932 = vmatmul.f32.gmra.mxu0 %v2138
        %v2933 = vpop.f32.mrf.mxu0
        %v2934 = vadd.f32 %v2821, %v2933
        %2935 = vmatmul.f32.gmra.mxu0 %v2146
        %v2936 = vpop.f32.mrf.mxu0
        %v2937 = vadd.f32 %v2824, %v2936
        %2938 = vdwg.mxu0
        %2939 = vmatpush.msra.mxu0 %v1888
        %2940 = vmatpush.msra.mxu0 %v1884
        %2941 = vmatpush.msra.mxu0 %v1880
        %2942 = vmatpush.msra.mxu0 %v1876
        %2943 = vmatpush.msra.mxu0 %v1872
        %2944 = vmatpush.msra.mxu0 %v1868
        %2945 = vmatpush.msra.mxu0 %v1864
        %2946 = vmatpush.msra.mxu0 %v1860
        %2947 = vmatpush.msra.mxu0 %v1856
        %2948 = vmatpush.msra.mxu0 %v1852
        %2949 = vmatpush.msra.mxu0 %v1848
        %2950 = vmatpush.msra.mxu0 %v1844
        %2951 = vmatpush.msra.mxu0 %v1840
        %2952 = vmatpush.msra.mxu0 %v1836
        %2953 = vmatpush.msra.mxu0 %v1832
        %2954 = vmatpush.msra.mxu0 %v1828
        %2955 = vmatmul.f32.gmra.mxu0 %v1899
        %v2956 = vpop.f32.mrf.mxu0
        %v2957 = vadd.f32 %v2844, %v2956
        %2958 = vmatmul.f32.gmra.mxu0 %v1907
        %v2959 = vpop.f32.mrf.mxu0
        %v2960 = vadd.f32 %v2847, %v2959
        %2961 = vmatmul.f32.gmra.mxu0 %v1915
        %v2962 = vpop.f32.mrf.mxu0
        %v2963 = vadd.f32 %v2850, %v2962
        %2964 = vmatmul.f32.gmra.mxu0 %v1923
        %v2965 = vpop.f32.mrf.mxu0
        %v2966 = vadd.f32 %v2853, %v2965
        %2967 = vmatmul.f32.gmra.mxu0 %v1931
        %v2968 = vpop.f32.mrf.mxu0
        %v2969 = vadd.f32 %v2856, %v2968
        %2970 = vmatmul.f32.gmra.mxu0 %v1939
        %v2971 = vpop.f32.mrf.mxu0
        %v2972 = vadd.f32 %v2859, %v2971
        %2973 = vmatmul.f32.gmra.mxu0 %v1947
        %v2974 = vpop.f32.mrf.mxu0
        %v2975 = vadd.f32 %v2862, %v2974
        %2976 = vmatmul.f32.gmra.mxu0 %v1955
        %v2977 = vpop.f32.mrf.mxu0
        %v2978 = vadd.f32 %v2865, %v2977
        %2979 = vmatmul.f32.gmra.mxu0 %v1963
        %v2980 = vpop.f32.mrf.mxu0
        %v2981 = vadd.f32 %v2868, %v2980
        %2982 = vmatmul.f32.gmra.mxu0 %v1971
        %v2983 = vpop.f32.mrf.mxu0
        %v2984 = vadd.f32 %v2871, %v2983
        %2985 = vmatmul.f32.gmra.mxu0 %v1979
        %v2986 = vpop.f32.mrf.mxu0
        %v2987 = vadd.f32 %v2874, %v2986
        %2988 = vmatmul.f32.gmra.mxu0 %v1987
        %v2989 = vpop.f32.mrf.mxu0
        %v2990 = vadd.f32 %v2877, %v2989
        %2991 = vmatmul.f32.gmra.mxu0 %v1995
        %v2992 = vpop.f32.mrf.mxu0
        %v2993 = vadd.f32 %v2880, %v2992
        %2994 = vmatmul.f32.gmra.mxu0 %v2003
        %v2995 = vpop.f32.mrf.mxu0
        %v2996 = vadd.f32 %v2883, %v2995
        %2997 = vmatmul.f32.gmra.mxu0 %v2011
        %v2998 = vpop.f32.mrf.mxu0
        %v2999 = vadd.f32 %v2886, %v2998
        %3000 = vmatmul.f32.gmra.mxu0 %v2019
        %v3001 = vpop.f32.mrf.mxu0
        %v3002 = vadd.f32 %v2889, %v3001
        %3003 = vmatmul.f32.gmra.mxu0 %v2027
        %v3004 = vpop.f32.mrf.mxu0
        %v3005 = vadd.f32 %v2892, %v3004
        %3006 = vmatmul.f32.gmra.mxu0 %v2035
        %v3007 = vpop.f32.mrf.mxu0
        %v3008 = vadd.f32 %v2895, %v3007
        %3009 = vmatmul.f32.gmra.mxu0 %v2043
        %v3010 = vpop.f32.mrf.mxu0
        %v3011 = vadd.f32 %v2898, %v3010
        %3012 = vmatmul.f32.gmra.mxu0 %v2051
        %v3013 = vpop.f32.mrf.mxu0
        %v3014 = vadd.f32 %v2901, %v3013
        %3015 = vmatmul.f32.gmra.mxu0 %v2059
        %v3016 = vpop.f32.mrf.mxu0
        %v3017 = vadd.f32 %v2904, %v3016
        %3018 = vmatmul.f32.gmra.mxu0 %v2067
        %v3019 = vpop.f32.mrf.mxu0
        %v3020 = vadd.f32 %v2907, %v3019
        %3021 = vmatmul.f32.gmra.mxu0 %v2075
        %v3022 = vpop.f32.mrf.mxu0
        %v3023 = vadd.f32 %v2910, %v3022
        %3024 = vmatmul.f32.gmra.mxu0 %v2083
        %v3025 = vpop.f32.mrf.mxu0
        %v3026 = vadd.f32 %v2913, %v3025
        %3027 = vmatmul.f32.gmra.mxu0 %v2091
        %v3028 = vpop.f32.mrf.mxu0
        %v3029 = vadd.f32 %v2916, %v3028
        %3030 = vmatmul.f32.gmra.mxu0 %v2099
        %v3031 = vpop.f32.mrf.mxu0
        %v3032 = vadd.f32 %v2919, %v3031
        %3033 = vmatmul.f32.gmra.mxu0 %v2107
        %v3034 = vpop.f32.mrf.mxu0
        %v3035 = vadd.f32 %v2922, %v3034
        %3036 = vmatmul.f32.gmra.mxu0 %v2115
        %v3037 = vpop.f32.mrf.mxu0
        %v3038 = vadd.f32 %v2925, %v3037
        %3039 = vmatmul.f32.gmra.mxu0 %v2123
        %v3040 = vpop.f32.mrf.mxu0
        %v3041 = vadd.f32 %v2928, %v3040
        %3042 = vmatmul.f32.gmra.mxu0 %v2131
        %v3043 = vpop.f32.mrf.mxu0
        %v3044 = vadd.f32 %v2931, %v3043
        %3045 = vmatmul.f32.gmra.mxu0 %v2139
        %v3046 = vpop.f32.mrf.mxu0
        %v3047 = vadd.f32 %v2934, %v3046
        %3048 = vmatmul.f32.gmra.mxu0 %v2147
        %v3049 = vpop.f32.mrf.mxu0
        %v3050 = vadd.f32 %v2937, %v3049
        %3051 = vdwg.mxu0
        %3052 = vmatpush.msra.mxu0 %v1441
        %3053 = vmatpush.msra.mxu0 %v1437
        %3054 = vmatpush.msra.mxu0 %v1433
        %3055 = vmatpush.msra.mxu0 %v1429
        %3056 = vmatpush.msra.mxu0 %v1425
        %3057 = vmatpush.msra.mxu0 %v1421
        %3058 = vmatpush.msra.mxu0 %v1417
        %3059 = vmatpush.msra.mxu0 %v1413
        %3060 = vmatpush.msra.mxu0 %v1409
        %3061 = vmatpush.msra.mxu0 %v1405
        %3062 = vmatpush.msra.mxu0 %v1401
        %3063 = vmatpush.msra.mxu0 %v1397
        %3064 = vmatpush.msra.mxu0 %v1393
        %3065 = vmatpush.msra.mxu0 %v1389
        %3066 = vmatpush.msra.mxu0 %v1385
        %3067 = vmatpush.msra.mxu0 %v1381
        %3068 = vmatmul.f32.gmra.mxu0 %v1892
        %v3069 = vpop.f32.mrf.mxu0
        %v3070 = vadd.f32 0.0, %v3069
        %3071 = vmatmul.f32.gmra.mxu0 %v1900
        %v3072 = vpop.f32.mrf.mxu0
        %v3073 = vadd.f32 0.0, %v3072
        %3074 = vmatmul.f32.gmra.mxu0 %v1908
        %v3075 = vpop.f32.mrf.mxu0
        %v3076 = vadd.f32 0.0, %v3075
        %3077 = vmatmul.f32.gmra.mxu0 %v1916
        %v3078 = vpop.f32.mrf.mxu0
        %v3079 = vadd.f32 0.0, %v3078
        %3080 = vmatmul.f32.gmra.mxu0 %v1924
        %v3081 = vpop.f32.mrf.mxu0
        %v3082 = vadd.f32 0.0, %v3081
        %3083 = vmatmul.f32.gmra.mxu0 %v1932
        %v3084 = vpop.f32.mrf.mxu0
        %v3085 = vadd.f32 0.0, %v3084
        %3086 = vmatmul.f32.gmra.mxu0 %v1940
        %v3087 = vpop.f32.mrf.mxu0
        %v3088 = vadd.f32 0.0, %v3087
        %3089 = vmatmul.f32.gmra.mxu0 %v1948
        %v3090 = vpop.f32.mrf.mxu0
        %v3091 = vadd.f32 0.0, %v3090
        %3092 = vmatmul.f32.gmra.mxu0 %v1956
        %v3093 = vpop.f32.mrf.mxu0
        %v3094 = vadd.f32 0.0, %v3093
        %3095 = vmatmul.f32.gmra.mxu0 %v1964
        %v3096 = vpop.f32.mrf.mxu0
        %v3097 = vadd.f32 0.0, %v3096
        %3098 = vmatmul.f32.gmra.mxu0 %v1972
        %v3099 = vpop.f32.mrf.mxu0
        %v3100 = vadd.f32 0.0, %v3099
        %3101 = vmatmul.f32.gmra.mxu0 %v1980
        %v3102 = vpop.f32.mrf.mxu0
        %v3103 = vadd.f32 0.0, %v3102
        %3104 = vmatmul.f32.gmra.mxu0 %v1988
        %v3105 = vpop.f32.mrf.mxu0
        %v3106 = vadd.f32 0.0, %v3105
        %3107 = vmatmul.f32.gmra.mxu0 %v1996
        %v3108 = vpop.f32.mrf.mxu0
        %v3109 = vadd.f32 0.0, %v3108
        %3110 = vmatmul.f32.gmra.mxu0 %v2004
        %v3111 = vpop.f32.mrf.mxu0
        %v3112 = vadd.f32 0.0, %v3111
        %3113 = vmatmul.f32.gmra.mxu0 %v2012
        %v3114 = vpop.f32.mrf.mxu0
        %v3115 = vadd.f32 0.0, %v3114
        %3116 = vmatmul.f32.gmra.mxu0 %v2020
        %v3117 = vpop.f32.mrf.mxu0
        %v3118 = vadd.f32 0.0, %v3117
        %3119 = vmatmul.f32.gmra.mxu0 %v2028
        %v3120 = vpop.f32.mrf.mxu0
        %v3121 = vadd.f32 0.0, %v3120
        %3122 = vmatmul.f32.gmra.mxu0 %v2036
        %v3123 = vpop.f32.mrf.mxu0
        %v3124 = vadd.f32 0.0, %v3123
        %3125 = vmatmul.f32.gmra.mxu0 %v2044
        %v3126 = vpop.f32.mrf.mxu0
        %v3127 = vadd.f32 0.0, %v3126
        %3128 = vmatmul.f32.gmra.mxu0 %v2052
        %v3129 = vpop.f32.mrf.mxu0
        %v3130 = vadd.f32 0.0, %v3129
        %3131 = vmatmul.f32.gmra.mxu0 %v2060
        %v3132 = vpop.f32.mrf.mxu0
        %v3133 = vadd.f32 0.0, %v3132
        %3134 = vmatmul.f32.gmra.mxu0 %v2068
        %v3135 = vpop.f32.mrf.mxu0
        %v3136 = vadd.f32 0.0, %v3135
        %3137 = vmatmul.f32.gmra.mxu0 %v2076
        %v3138 = vpop.f32.mrf.mxu0
        %v3139 = vadd.f32 0.0, %v3138
        %3140 = vmatmul.f32.gmra.mxu0 %v2084
        %v3141 = vpop.f32.mrf.mxu0
        %v3142 = vadd.f32 0.0, %v3141
        %3143 = vmatmul.f32.gmra.mxu0 %v2092
        %v3144 = vpop.f32.mrf.mxu0
        %v3145 = vadd.f32 0.0, %v3144
        %3146 = vmatmul.f32.gmra.mxu0 %v2100
        %v3147 = vpop.f32.mrf.mxu0
        %v3148 = vadd.f32 0.0, %v3147
        %3149 = vmatmul.f32.gmra.mxu0 %v2108
        %v3150 = vpop.f32.mrf.mxu0
        %v3151 = vadd.f32 0.0, %v3150
        %3152 = vmatmul.f32.gmra.mxu0 %v2116
        %v3153 = vpop.f32.mrf.mxu0
        %v3154 = vadd.f32 0.0, %v3153
        %3155 = vmatmul.f32.gmra.mxu0 %v2124
        %v3156 = vpop.f32.mrf.mxu0
        %v3157 = vadd.f32 0.0, %v3156
        %3158 = vmatmul.f32.gmra.mxu0 %v2132
        %v3159 = vpop.f32.mrf.mxu0
        %v3160 = vadd.f32 0.0, %v3159
        %3161 = vmatmul.f32.gmra.mxu0 %v2140
        %v3162 = vpop.f32.mrf.mxu0
        %v3163 = vadd.f32 0.0, %v3162
        %3164 = vdwg.mxu0
        %3165 = vmatpush.msra.mxu0 %v1505
        %3166 = vmatpush.msra.mxu0 %v1501
        %3167 = vmatpush.msra.mxu0 %v1497
        %3168 = vmatpush.msra.mxu0 %v1493
        %3169 = vmatpush.msra.mxu0 %v1489
        %3170 = vmatpush.msra.mxu0 %v1485
        %3171 = vmatpush.msra.mxu0 %v1481
        %3172 = vmatpush.msra.mxu0 %v1477
        %3173 = vmatpush.msra.mxu0 %v1473
        %3174 = vmatpush.msra.mxu0 %v1469
        %3175 = vmatpush.msra.mxu0 %v1465
        %3176 = vmatpush.msra.mxu0 %v1461
        %3177 = vmatpush.msra.mxu0 %v1457
        %3178 = vmatpush.msra.mxu0 %v1453
        %3179 = vmatpush.msra.mxu0 %v1449
        %3180 = vmatpush.msra.mxu0 %v1445
        %3181 = vmatmul.f32.gmra.mxu0 %v1893
        %v3182 = vpop.f32.mrf.mxu0
        %v3183 = vadd.f32 %v3070, %v3182
        %3184 = vmatmul.f32.gmra.mxu0 %v1901
        %v3185 = vpop.f32.mrf.mxu0
        %v3186 = vadd.f32 %v3073, %v3185
        %3187 = vmatmul.f32.gmra.mxu0 %v1909
        %v3188 = vpop.f32.mrf.mxu0
        %v3189 = vadd.f32 %v3076, %v3188
        %3190 = vmatmul.f32.gmra.mxu0 %v1917
        %v3191 = vpop.f32.mrf.mxu0
        %v3192 = vadd.f32 %v3079, %v3191
        %3193 = vmatmul.f32.gmra.mxu0 %v1925
        %v3194 = vpop.f32.mrf.mxu0
        %v3195 = vadd.f32 %v3082, %v3194
        %3196 = vmatmul.f32.gmra.mxu0 %v1933
        %v3197 = vpop.f32.mrf.mxu0
        %v3198 = vadd.f32 %v3085, %v3197
        %3199 = vmatmul.f32.gmra.mxu0 %v1941
        %v3200 = vpop.f32.mrf.mxu0
        %v3201 = vadd.f32 %v3088, %v3200
        %3202 = vmatmul.f32.gmra.mxu0 %v1949
        %v3203 = vpop.f32.mrf.mxu0
        %v3204 = vadd.f32 %v3091, %v3203
        %3205 = vmatmul.f32.gmra.mxu0 %v1957
        %v3206 = vpop.f32.mrf.mxu0
        %v3207 = vadd.f32 %v3094, %v3206
        %3208 = vmatmul.f32.gmra.mxu0 %v1965
        %v3209 = vpop.f32.mrf.mxu0
        %v3210 = vadd.f32 %v3097, %v3209
        %3211 = vmatmul.f32.gmra.mxu0 %v1973
        %v3212 = vpop.f32.mrf.mxu0
        %v3213 = vadd.f32 %v3100, %v3212
        %3214 = vmatmul.f32.gmra.mxu0 %v1981
        %v3215 = vpop.f32.mrf.mxu0
        %v3216 = vadd.f32 %v3103, %v3215
        %3217 = vmatmul.f32.gmra.mxu0 %v1989
        %v3218 = vpop.f32.mrf.mxu0
        %v3219 = vadd.f32 %v3106, %v3218
        %3220 = vmatmul.f32.gmra.mxu0 %v1997
        %v3221 = vpop.f32.mrf.mxu0
        %v3222 = vadd.f32 %v3109, %v3221
        %3223 = vmatmul.f32.gmra.mxu0 %v2005
        %v3224 = vpop.f32.mrf.mxu0
        %v3225 = vadd.f32 %v3112, %v3224
        %3226 = vmatmul.f32.gmra.mxu0 %v2013
        %v3227 = vpop.f32.mrf.mxu0
        %v3228 = vadd.f32 %v3115, %v3227
        %3229 = vmatmul.f32.gmra.mxu0 %v2021
        %v3230 = vpop.f32.mrf.mxu0
        %v3231 = vadd.f32 %v3118, %v3230
        %3232 = vmatmul.f32.gmra.mxu0 %v2029
        %v3233 = vpop.f32.mrf.mxu0
        %v3234 = vadd.f32 %v3121, %v3233
        %3235 = vmatmul.f32.gmra.mxu0 %v2037
        %v3236 = vpop.f32.mrf.mxu0
        %v3237 = vadd.f32 %v3124, %v3236
        %3238 = vmatmul.f32.gmra.mxu0 %v2045
        %v3239 = vpop.f32.mrf.mxu0
        %v3240 = vadd.f32 %v3127, %v3239
        %3241 = vmatmul.f32.gmra.mxu0 %v2053
        %v3242 = vpop.f32.mrf.mxu0
        %v3243 = vadd.f32 %v3130, %v3242
        %3244 = vmatmul.f32.gmra.mxu0 %v2061
        %v3245 = vpop.f32.mrf.mxu0
        %v3246 = vadd.f32 %v3133, %v3245
        %3247 = vmatmul.f32.gmra.mxu0 %v2069
        %v3248 = vpop.f32.mrf.mxu0
        %v3249 = vadd.f32 %v3136, %v3248
        %3250 = vmatmul.f32.gmra.mxu0 %v2077
        %v3251 = vpop.f32.mrf.mxu0
        %v3252 = vadd.f32 %v3139, %v3251
        %3253 = vmatmul.f32.gmra.mxu0 %v2085
        %v3254 = vpop.f32.mrf.mxu0
        %v3255 = vadd.f32 %v3142, %v3254
        %3256 = vmatmul.f32.gmra.mxu0 %v2093
        %v3257 = vpop.f32.mrf.mxu0
        %v3258 = vadd.f32 %v3145, %v3257
        %3259 = vmatmul.f32.gmra.mxu0 %v2101
        %v3260 = vpop.f32.mrf.mxu0
        %v3261 = vadd.f32 %v3148, %v3260
        %3262 = vmatmul.f32.gmra.mxu0 %v2109
        %v3263 = vpop.f32.mrf.mxu0
        %v3264 = vadd.f32 %v3151, %v3263
        %3265 = vmatmul.f32.gmra.mxu0 %v2117
        %v3266 = vpop.f32.mrf.mxu0
        %v3267 = vadd.f32 %v3154, %v3266
        %3268 = vmatmul.f32.gmra.mxu0 %v2125
        %v3269 = vpop.f32.mrf.mxu0
        %v3270 = vadd.f32 %v3157, %v3269
        %3271 = vmatmul.f32.gmra.mxu0 %v2133
        %v3272 = vpop.f32.mrf.mxu0
        %v3273 = vadd.f32 %v3160, %v3272
        %3274 = vmatmul.f32.gmra.mxu0 %v2141
        %v3275 = vpop.f32.mrf.mxu0
        %v3276 = vadd.f32 %v3163, %v3275
        %3277 = vdwg.mxu0
        %3278 = vmatpush.msra.mxu0 %v1569
        %3279 = vmatpush.msra.mxu0 %v1565
        %3280 = vmatpush.msra.mxu0 %v1561
        %3281 = vmatpush.msra.mxu0 %v1557
        %3282 = vmatpush.msra.mxu0 %v1553
        %3283 = vmatpush.msra.mxu0 %v1549
        %3284 = vmatpush.msra.mxu0 %v1545
        %3285 = vmatpush.msra.mxu0 %v1541
        %3286 = vmatpush.msra.mxu0 %v1537
        %3287 = vmatpush.msra.mxu0 %v1533
        %3288 = vmatpush.msra.mxu0 %v1529
        %3289 = vmatpush.msra.mxu0 %v1525
        %3290 = vmatpush.msra.mxu0 %v1521
        %3291 = vmatpush.msra.mxu0 %v1517
        %3292 = vmatpush.msra.mxu0 %v1513
        %3293 = vmatpush.msra.mxu0 %v1509
        %3294 = vmatmul.f32.gmra.mxu0 %v1894
        %v3295 = vpop.f32.mrf.mxu0
        %v3296 = vadd.f32 %v3183, %v3295
        %3297 = vmatmul.f32.gmra.mxu0 %v1902
        %v3298 = vpop.f32.mrf.mxu0
        %v3299 = vadd.f32 %v3186, %v3298
        %3300 = vmatmul.f32.gmra.mxu0 %v1910
        %v3301 = vpop.f32.mrf.mxu0
        %v3302 = vadd.f32 %v3189, %v3301
        %3303 = vmatmul.f32.gmra.mxu0 %v1918
        %v3304 = vpop.f32.mrf.mxu0
        %v3305 = vadd.f32 %v3192, %v3304
        %3306 = vmatmul.f32.gmra.mxu0 %v1926
        %v3307 = vpop.f32.mrf.mxu0
        %v3308 = vadd.f32 %v3195, %v3307
        %3309 = vmatmul.f32.gmra.mxu0 %v1934
        %v3310 = vpop.f32.mrf.mxu0
        %v3311 = vadd.f32 %v3198, %v3310
        %3312 = vmatmul.f32.gmra.mxu0 %v1942
        %v3313 = vpop.f32.mrf.mxu0
        %v3314 = vadd.f32 %v3201, %v3313
        %3315 = vmatmul.f32.gmra.mxu0 %v1950
        %v3316 = vpop.f32.mrf.mxu0
        %v3317 = vadd.f32 %v3204, %v3316
        %3318 = vmatmul.f32.gmra.mxu0 %v1958
        %v3319 = vpop.f32.mrf.mxu0
        %v3320 = vadd.f32 %v3207, %v3319
        %3321 = vmatmul.f32.gmra.mxu0 %v1966
        %v3322 = vpop.f32.mrf.mxu0
        %v3323 = vadd.f32 %v3210, %v3322
        %3324 = vmatmul.f32.gmra.mxu0 %v1974
        %v3325 = vpop.f32.mrf.mxu0
        %v3326 = vadd.f32 %v3213, %v3325
        %3327 = vmatmul.f32.gmra.mxu0 %v1982
        %v3328 = vpop.f32.mrf.mxu0
        %v3329 = vadd.f32 %v3216, %v3328
        %3330 = vmatmul.f32.gmra.mxu0 %v1990
        %v3331 = vpop.f32.mrf.mxu0
        %v3332 = vadd.f32 %v3219, %v3331
        %3333 = vmatmul.f32.gmra.mxu0 %v1998
        %v3334 = vpop.f32.mrf.mxu0
        %v3335 = vadd.f32 %v3222, %v3334
        %3336 = vmatmul.f32.gmra.mxu0 %v2006
        %v3337 = vpop.f32.mrf.mxu0
        %v3338 = vadd.f32 %v3225, %v3337
        %3339 = vmatmul.f32.gmra.mxu0 %v2014
        %v3340 = vpop.f32.mrf.mxu0
        %v3341 = vadd.f32 %v3228, %v3340
        %3342 = vmatmul.f32.gmra.mxu0 %v2022
        %v3343 = vpop.f32.mrf.mxu0
        %v3344 = vadd.f32 %v3231, %v3343
        %3345 = vmatmul.f32.gmra.mxu0 %v2030
        %v3346 = vpop.f32.mrf.mxu0
        %v3347 = vadd.f32 %v3234, %v3346
        %3348 = vmatmul.f32.gmra.mxu0 %v2038
        %v3349 = vpop.f32.mrf.mxu0
        %v3350 = vadd.f32 %v3237, %v3349
        %3351 = vmatmul.f32.gmra.mxu0 %v2046
        %v3352 = vpop.f32.mrf.mxu0
        %v3353 = vadd.f32 %v3240, %v3352
        %3354 = vmatmul.f32.gmra.mxu0 %v2054
        %v3355 = vpop.f32.mrf.mxu0
        %v3356 = vadd.f32 %v3243, %v3355
        %3357 = vmatmul.f32.gmra.mxu0 %v2062
        %v3358 = vpop.f32.mrf.mxu0
        %v3359 = vadd.f32 %v3246, %v3358
        %3360 = vmatmul.f32.gmra.mxu0 %v2070
        %v3361 = vpop.f32.mrf.mxu0
        %v3362 = vadd.f32 %v3249, %v3361
        %3363 = vmatmul.f32.gmra.mxu0 %v2078
        %v3364 = vpop.f32.mrf.mxu0
        %v3365 = vadd.f32 %v3252, %v3364
        %3366 = vmatmul.f32.gmra.mxu0 %v2086
        %v3367 = vpop.f32.mrf.mxu0
        %v3368 = vadd.f32 %v3255, %v3367
        %3369 = vmatmul.f32.gmra.mxu0 %v2094
        %v3370 = vpop.f32.mrf.mxu0
        %v3371 = vadd.f32 %v3258, %v3370
        %3372 = vmatmul.f32.gmra.mxu0 %v2102
        %v3373 = vpop.f32.mrf.mxu0
        %v3374 = vadd.f32 %v3261, %v3373
        %3375 = vmatmul.f32.gmra.mxu0 %v2110
        %v3376 = vpop.f32.mrf.mxu0
        %v3377 = vadd.f32 %v3264, %v3376
        %3378 = vmatmul.f32.gmra.mxu0 %v2118
        %v3379 = vpop.f32.mrf.mxu0
        %v3380 = vadd.f32 %v3267, %v3379
        %3381 = vmatmul.f32.gmra.mxu0 %v2126
        %v3382 = vpop.f32.mrf.mxu0
        %v3383 = vadd.f32 %v3270, %v3382
        %3384 = vmatmul.f32.gmra.mxu0 %v2134
        %v3385 = vpop.f32.mrf.mxu0
        %v3386 = vadd.f32 %v3273, %v3385
        %3387 = vmatmul.f32.gmra.mxu0 %v2142
        %v3388 = vpop.f32.mrf.mxu0
        %v3389 = vadd.f32 %v3276, %v3388
        %3390 = vdwg.mxu0
        %3391 = vmatpush.msra.mxu0 %v1633
        %3392 = vmatpush.msra.mxu0 %v1629
        %3393 = vmatpush.msra.mxu0 %v1625
        %3394 = vmatpush.msra.mxu0 %v1621
        %3395 = vmatpush.msra.mxu0 %v1617
        %3396 = vmatpush.msra.mxu0 %v1613
        %3397 = vmatpush.msra.mxu0 %v1609
        %3398 = vmatpush.msra.mxu0 %v1605
        %3399 = vmatpush.msra.mxu0 %v1601
        %3400 = vmatpush.msra.mxu0 %v1597
        %3401 = vmatpush.msra.mxu0 %v1593
        %3402 = vmatpush.msra.mxu0 %v1589
        %3403 = vmatpush.msra.mxu0 %v1585
        %3404 = vmatpush.msra.mxu0 %v1581
        %3405 = vmatpush.msra.mxu0 %v1577
        %3406 = vmatpush.msra.mxu0 %v1573
        %3407 = vmatmul.f32.gmra.mxu0 %v1895
        %v3408 = vpop.f32.mrf.mxu0
        %v3409 = vadd.f32 %v3296, %v3408
        %3410 = vmatmul.f32.gmra.mxu0 %v1903
        %v3411 = vpop.f32.mrf.mxu0
        %v3412 = vadd.f32 %v3299, %v3411
        %3413 = vmatmul.f32.gmra.mxu0 %v1911
        %v3414 = vpop.f32.mrf.mxu0
        %v3415 = vadd.f32 %v3302, %v3414
        %3416 = vmatmul.f32.gmra.mxu0 %v1919
        %v3417 = vpop.f32.mrf.mxu0
        %v3418 = vadd.f32 %v3305, %v3417
        %3419 = vmatmul.f32.gmra.mxu0 %v1927
        %v3420 = vpop.f32.mrf.mxu0
        %v3421 = vadd.f32 %v3308, %v3420
        %3422 = vmatmul.f32.gmra.mxu0 %v1935
        %v3423 = vpop.f32.mrf.mxu0
        %v3424 = vadd.f32 %v3311, %v3423
        %3425 = vmatmul.f32.gmra.mxu0 %v1943
        %v3426 = vpop.f32.mrf.mxu0
        %v3427 = vadd.f32 %v3314, %v3426
        %3428 = vmatmul.f32.gmra.mxu0 %v1951
        %v3429 = vpop.f32.mrf.mxu0
        %v3430 = vadd.f32 %v3317, %v3429
        %3431 = vmatmul.f32.gmra.mxu0 %v1959
        %v3432 = vpop.f32.mrf.mxu0
        %v3433 = vadd.f32 %v3320, %v3432
        %3434 = vmatmul.f32.gmra.mxu0 %v1967
        %v3435 = vpop.f32.mrf.mxu0
        %v3436 = vadd.f32 %v3323, %v3435
        %3437 = vmatmul.f32.gmra.mxu0 %v1975
        %v3438 = vpop.f32.mrf.mxu0
        %v3439 = vadd.f32 %v3326, %v3438
        %3440 = vmatmul.f32.gmra.mxu0 %v1983
        %v3441 = vpop.f32.mrf.mxu0
        %v3442 = vadd.f32 %v3329, %v3441
        %3443 = vmatmul.f32.gmra.mxu0 %v1991
        %v3444 = vpop.f32.mrf.mxu0
        %v3445 = vadd.f32 %v3332, %v3444
        %3446 = vmatmul.f32.gmra.mxu0 %v1999
        %v3447 = vpop.f32.mrf.mxu0
        %v3448 = vadd.f32 %v3335, %v3447
        %3449 = vmatmul.f32.gmra.mxu0 %v2007
        %v3450 = vpop.f32.mrf.mxu0
        %v3451 = vadd.f32 %v3338, %v3450
        %3452 = vmatmul.f32.gmra.mxu0 %v2015
        %v3453 = vpop.f32.mrf.mxu0
        %v3454 = vadd.f32 %v3341, %v3453
        %3455 = vmatmul.f32.gmra.mxu0 %v2023
        %v3456 = vpop.f32.mrf.mxu0
        %v3457 = vadd.f32 %v3344, %v3456
        %3458 = vmatmul.f32.gmra.mxu0 %v2031
        %v3459 = vpop.f32.mrf.mxu0
        %v3460 = vadd.f32 %v3347, %v3459
        %3461 = vmatmul.f32.gmra.mxu0 %v2039
        %v3462 = vpop.f32.mrf.mxu0
        %v3463 = vadd.f32 %v3350, %v3462
        %3464 = vmatmul.f32.gmra.mxu0 %v2047
        %v3465 = vpop.f32.mrf.mxu0
        %v3466 = vadd.f32 %v3353, %v3465
        %3467 = vmatmul.f32.gmra.mxu0 %v2055
        %v3468 = vpop.f32.mrf.mxu0
        %v3469 = vadd.f32 %v3356, %v3468
        %3470 = vmatmul.f32.gmra.mxu0 %v2063
        %v3471 = vpop.f32.mrf.mxu0
        %v3472 = vadd.f32 %v3359, %v3471
        %3473 = vmatmul.f32.gmra.mxu0 %v2071
        %v3474 = vpop.f32.mrf.mxu0
        %v3475 = vadd.f32 %v3362, %v3474
        %3476 = vmatmul.f32.gmra.mxu0 %v2079
        %v3477 = vpop.f32.mrf.mxu0
        %v3478 = vadd.f32 %v3365, %v3477
        %3479 = vmatmul.f32.gmra.mxu0 %v2087
        %v3480 = vpop.f32.mrf.mxu0
        %v3481 = vadd.f32 %v3368, %v3480
        %3482 = vmatmul.f32.gmra.mxu0 %v2095
        %v3483 = vpop.f32.mrf.mxu0
        %v3484 = vadd.f32 %v3371, %v3483
        %3485 = vmatmul.f32.gmra.mxu0 %v2103
        %v3486 = vpop.f32.mrf.mxu0
        %v3487 = vadd.f32 %v3374, %v3486
        %3488 = vmatmul.f32.gmra.mxu0 %v2111
        %v3489 = vpop.f32.mrf.mxu0
        %v3490 = vadd.f32 %v3377, %v3489
        %3491 = vmatmul.f32.gmra.mxu0 %v2119
        %v3492 = vpop.f32.mrf.mxu0
        %v3493 = vadd.f32 %v3380, %v3492
        %3494 = vmatmul.f32.gmra.mxu0 %v2127
        %v3495 = vpop.f32.mrf.mxu0
        %v3496 = vadd.f32 %v3383, %v3495
        %3497 = vmatmul.f32.gmra.mxu0 %v2135
        %v3498 = vpop.f32.mrf.mxu0
        %v3499 = vadd.f32 %v3386, %v3498
        %3500 = vmatmul.f32.gmra.mxu0 %v2143
        %v3501 = vpop.f32.mrf.mxu0
        %v3502 = vadd.f32 %v3389, %v3501
        %3503 = vdwg.mxu0
        %3504 = vmatpush.msra.mxu0 %v1697
        %3505 = vmatpush.msra.mxu0 %v1693
        %3506 = vmatpush.msra.mxu0 %v1689
        %3507 = vmatpush.msra.mxu0 %v1685
        %3508 = vmatpush.msra.mxu0 %v1681
        %3509 = vmatpush.msra.mxu0 %v1677
        %3510 = vmatpush.msra.mxu0 %v1673
        %3511 = vmatpush.msra.mxu0 %v1669
        %3512 = vmatpush.msra.mxu0 %v1665
        %3513 = vmatpush.msra.mxu0 %v1661
        %3514 = vmatpush.msra.mxu0 %v1657
        %3515 = vmatpush.msra.mxu0 %v1653
        %3516 = vmatpush.msra.mxu0 %v1649
        %3517 = vmatpush.msra.mxu0 %v1645
        %3518 = vmatpush.msra.mxu0 %v1641
        %3519 = vmatpush.msra.mxu0 %v1637
        %3520 = vmatmul.f32.gmra.mxu0 %v1896
        %v3521 = vpop.f32.mrf.mxu0
        %v3522 = vadd.f32 %v3409, %v3521
        %3523 = vmatmul.f32.gmra.mxu0 %v1904
        %v3524 = vpop.f32.mrf.mxu0
        %v3525 = vadd.f32 %v3412, %v3524
        %3526 = vmatmul.f32.gmra.mxu0 %v1912
        %v3527 = vpop.f32.mrf.mxu0
        %v3528 = vadd.f32 %v3415, %v3527
        %3529 = vmatmul.f32.gmra.mxu0 %v1920
        %v3530 = vpop.f32.mrf.mxu0
        %v3531 = vadd.f32 %v3418, %v3530
        %3532 = vmatmul.f32.gmra.mxu0 %v1928
        %v3533 = vpop.f32.mrf.mxu0
        %v3534 = vadd.f32 %v3421, %v3533
        %3535 = vmatmul.f32.gmra.mxu0 %v1936
        %v3536 = vpop.f32.mrf.mxu0
        %v3537 = vadd.f32 %v3424, %v3536
        %3538 = vmatmul.f32.gmra.mxu0 %v1944
        %v3539 = vpop.f32.mrf.mxu0
        %v3540 = vadd.f32 %v3427, %v3539
        %3541 = vmatmul.f32.gmra.mxu0 %v1952
        %v3542 = vpop.f32.mrf.mxu0
        %v3543 = vadd.f32 %v3430, %v3542
        %3544 = vmatmul.f32.gmra.mxu0 %v1960
        %v3545 = vpop.f32.mrf.mxu0
        %v3546 = vadd.f32 %v3433, %v3545
        %3547 = vmatmul.f32.gmra.mxu0 %v1968
        %v3548 = vpop.f32.mrf.mxu0
        %v3549 = vadd.f32 %v3436, %v3548
        %3550 = vmatmul.f32.gmra.mxu0 %v1976
        %v3551 = vpop.f32.mrf.mxu0
        %v3552 = vadd.f32 %v3439, %v3551
        %3553 = vmatmul.f32.gmra.mxu0 %v1984
        %v3554 = vpop.f32.mrf.mxu0
        %v3555 = vadd.f32 %v3442, %v3554
        %3556 = vmatmul.f32.gmra.mxu0 %v1992
        %v3557 = vpop.f32.mrf.mxu0
        %v3558 = vadd.f32 %v3445, %v3557
        %3559 = vmatmul.f32.gmra.mxu0 %v2000
        %v3560 = vpop.f32.mrf.mxu0
        %v3561 = vadd.f32 %v3448, %v3560
        %3562 = vmatmul.f32.gmra.mxu0 %v2008
        %v3563 = vpop.f32.mrf.mxu0
        %v3564 = vadd.f32 %v3451, %v3563
        %3565 = vmatmul.f32.gmra.mxu0 %v2016
        %v3566 = vpop.f32.mrf.mxu0
        %v3567 = vadd.f32 %v3454, %v3566
        %3568 = vmatmul.f32.gmra.mxu0 %v2024
        %v3569 = vpop.f32.mrf.mxu0
        %v3570 = vadd.f32 %v3457, %v3569
        %3571 = vmatmul.f32.gmra.mxu0 %v2032
        %v3572 = vpop.f32.mrf.mxu0
        %v3573 = vadd.f32 %v3460, %v3572
        %3574 = vmatmul.f32.gmra.mxu0 %v2040
        %v3575 = vpop.f32.mrf.mxu0
        %v3576 = vadd.f32 %v3463, %v3575
        %3577 = vmatmul.f32.gmra.mxu0 %v2048
        %v3578 = vpop.f32.mrf.mxu0
        %v3579 = vadd.f32 %v3466, %v3578
        %3580 = vmatmul.f32.gmra.mxu0 %v2056
        %v3581 = vpop.f32.mrf.mxu0
        %v3582 = vadd.f32 %v3469, %v3581
        %3583 = vmatmul.f32.gmra.mxu0 %v2064
        %v3584 = vpop.f32.mrf.mxu0
        %v3585 = vadd.f32 %v3472, %v3584
        %3586 = vmatmul.f32.gmra.mxu0 %v2072
        %v3587 = vpop.f32.mrf.mxu0
        %v3588 = vadd.f32 %v3475, %v3587
        %3589 = vmatmul.f32.gmra.mxu0 %v2080
        %v3590 = vpop.f32.mrf.mxu0
        %v3591 = vadd.f32 %v3478, %v3590
        %3592 = vmatmul.f32.gmra.mxu0 %v2088
        %v3593 = vpop.f32.mrf.mxu0
        %v3594 = vadd.f32 %v3481, %v3593
        %3595 = vmatmul.f32.gmra.mxu0 %v2096
        %v3596 = vpop.f32.mrf.mxu0
        %v3597 = vadd.f32 %v3484, %v3596
        %3598 = vmatmul.f32.gmra.mxu0 %v2104
        %v3599 = vpop.f32.mrf.mxu0
        %v3600 = vadd.f32 %v3487, %v3599
        %3601 = vmatmul.f32.gmra.mxu0 %v2112
        %v3602 = vpop.f32.mrf.mxu0
        %v3603 = vadd.f32 %v3490, %v3602
        %3604 = vmatmul.f32.gmra.mxu0 %v2120
        %v3605 = vpop.f32.mrf.mxu0
        %v3606 = vadd.f32 %v3493, %v3605
        %3607 = vmatmul.f32.gmra.mxu0 %v2128
        %v3608 = vpop.f32.mrf.mxu0
        %v3609 = vadd.f32 %v3496, %v3608
        %3610 = vmatmul.f32.gmra.mxu0 %v2136
        %v3611 = vpop.f32.mrf.mxu0
        %v3612 = vadd.f32 %v3499, %v3611
        %3613 = vmatmul.f32.gmra.mxu0 %v2144
        %v3614 = vpop.f32.mrf.mxu0
        %v3615 = vadd.f32 %v3502, %v3614
        %3616 = vdwg.mxu0
        %3617 = vmatpush.msra.mxu0 %v1761
        %3618 = vmatpush.msra.mxu0 %v1757
        %3619 = vmatpush.msra.mxu0 %v1753
        %3620 = vmatpush.msra.mxu0 %v1749
        %3621 = vmatpush.msra.mxu0 %v1745
        %3622 = vmatpush.msra.mxu0 %v1741
        %3623 = vmatpush.msra.mxu0 %v1737
        %3624 = vmatpush.msra.mxu0 %v1733
        %3625 = vmatpush.msra.mxu0 %v1729
        %3626 = vmatpush.msra.mxu0 %v1725
        %3627 = vmatpush.msra.mxu0 %v1721
        %3628 = vmatpush.msra.mxu0 %v1717
        %3629 = vmatpush.msra.mxu0 %v1713
        %3630 = vmatpush.msra.mxu0 %v1709
        %3631 = vmatpush.msra.mxu0 %v1705
        %3632 = vmatpush.msra.mxu0 %v1701
        %3633 = vmatmul.f32.gmra.mxu0 %v1897
        %v3634 = vpop.f32.mrf.mxu0
        %v3635 = vadd.f32 %v3522, %v3634
        %3636 = vmatmul.f32.gmra.mxu0 %v1905
        %v3637 = vpop.f32.mrf.mxu0
        %v3638 = vadd.f32 %v3525, %v3637
        %3639 = vmatmul.f32.gmra.mxu0 %v1913
        %v3640 = vpop.f32.mrf.mxu0
        %v3641 = vadd.f32 %v3528, %v3640
        %3642 = vmatmul.f32.gmra.mxu0 %v1921
        %v3643 = vpop.f32.mrf.mxu0
        %v3644 = vadd.f32 %v3531, %v3643
        %3645 = vmatmul.f32.gmra.mxu0 %v1929
        %v3646 = vpop.f32.mrf.mxu0
        %v3647 = vadd.f32 %v3534, %v3646
        %3648 = vmatmul.f32.gmra.mxu0 %v1937
        %v3649 = vpop.f32.mrf.mxu0
        %v3650 = vadd.f32 %v3537, %v3649
        %3651 = vmatmul.f32.gmra.mxu0 %v1945
        %v3652 = vpop.f32.mrf.mxu0
        %v3653 = vadd.f32 %v3540, %v3652
        %3654 = vmatmul.f32.gmra.mxu0 %v1953
        %v3655 = vpop.f32.mrf.mxu0
        %v3656 = vadd.f32 %v3543, %v3655
        %3657 = vmatmul.f32.gmra.mxu0 %v1961
        %v3658 = vpop.f32.mrf.mxu0
        %v3659 = vadd.f32 %v3546, %v3658
        %3660 = vmatmul.f32.gmra.mxu0 %v1969
        %v3661 = vpop.f32.mrf.mxu0
        %v3662 = vadd.f32 %v3549, %v3661
        %3663 = vmatmul.f32.gmra.mxu0 %v1977
        %v3664 = vpop.f32.mrf.mxu0
        %v3665 = vadd.f32 %v3552, %v3664
        %3666 = vmatmul.f32.gmra.mxu0 %v1985
        %v3667 = vpop.f32.mrf.mxu0
        %v3668 = vadd.f32 %v3555, %v3667
        %3669 = vmatmul.f32.gmra.mxu0 %v1993
        %v3670 = vpop.f32.mrf.mxu0
        %v3671 = vadd.f32 %v3558, %v3670
        %3672 = vmatmul.f32.gmra.mxu0 %v2001
        %v3673 = vpop.f32.mrf.mxu0
        %v3674 = vadd.f32 %v3561, %v3673
        %3675 = vmatmul.f32.gmra.mxu0 %v2009
        %v3676 = vpop.f32.mrf.mxu0
        %v3677 = vadd.f32 %v3564, %v3676
        %3678 = vmatmul.f32.gmra.mxu0 %v2017
        %v3679 = vpop.f32.mrf.mxu0
        %v3680 = vadd.f32 %v3567, %v3679
        %3681 = vmatmul.f32.gmra.mxu0 %v2025
        %v3682 = vpop.f32.mrf.mxu0
        %v3683 = vadd.f32 %v3570, %v3682
        %3684 = vmatmul.f32.gmra.mxu0 %v2033
        %v3685 = vpop.f32.mrf.mxu0
        %v3686 = vadd.f32 %v3573, %v3685
        %3687 = vmatmul.f32.gmra.mxu0 %v2041
        %v3688 = vpop.f32.mrf.mxu0
        %v3689 = vadd.f32 %v3576, %v3688
        %3690 = vmatmul.f32.gmra.mxu0 %v2049
        %v3691 = vpop.f32.mrf.mxu0
        %v3692 = vadd.f32 %v3579, %v3691
        %3693 = vmatmul.f32.gmra.mxu0 %v2057
        %v3694 = vpop.f32.mrf.mxu0
        %v3695 = vadd.f32 %v3582, %v3694
        %3696 = vmatmul.f32.gmra.mxu0 %v2065
        %v3697 = vpop.f32.mrf.mxu0
        %v3698 = vadd.f32 %v3585, %v3697
        %3699 = vmatmul.f32.gmra.mxu0 %v2073
        %v3700 = vpop.f32.mrf.mxu0
        %v3701 = vadd.f32 %v3588, %v3700
        %3702 = vmatmul.f32.gmra.mxu0 %v2081
        %v3703 = vpop.f32.mrf.mxu0
        %v3704 = vadd.f32 %v3591, %v3703
        %3705 = vmatmul.f32.gmra.mxu0 %v2089
        %v3706 = vpop.f32.mrf.mxu0
        %v3707 = vadd.f32 %v3594, %v3706
        %3708 = vmatmul.f32.gmra.mxu0 %v2097
        %v3709 = vpop.f32.mrf.mxu0
        %v3710 = vadd.f32 %v3597, %v3709
        %3711 = vmatmul.f32.gmra.mxu0 %v2105
        %v3712 = vpop.f32.mrf.mxu0
        %v3713 = vadd.f32 %v3600, %v3712
        %3714 = vmatmul.f32.gmra.mxu0 %v2113
        %v3715 = vpop.f32.mrf.mxu0
        %v3716 = vadd.f32 %v3603, %v3715
        %3717 = vmatmul.f32.gmra.mxu0 %v2121
        %v3718 = vpop.f32.mrf.mxu0
        %v3719 = vadd.f32 %v3606, %v3718
        %3720 = vmatmul.f32.gmra.mxu0 %v2129
        %v3721 = vpop.f32.mrf.mxu0
        %v3722 = vadd.f32 %v3609, %v3721
        %3723 = vmatmul.f32.gmra.mxu0 %v2137
        %v3724 = vpop.f32.mrf.mxu0
        %v3725 = vadd.f32 %v3612, %v3724
        %3726 = vmatmul.f32.gmra.mxu0 %v2145
        %v3727 = vpop.f32.mrf.mxu0
        %v3728 = vadd.f32 %v3615, %v3727
        %3729 = vdwg.mxu0
        %3730 = vmatpush.msra.mxu0 %v1825
        %3731 = vmatpush.msra.mxu0 %v1821
        %3732 = vmatpush.msra.mxu0 %v1817
        %3733 = vmatpush.msra.mxu0 %v1813
        %3734 = vmatpush.msra.mxu0 %v1809
        %3735 = vmatpush.msra.mxu0 %v1805
        %3736 = vmatpush.msra.mxu0 %v1801
        %3737 = vmatpush.msra.mxu0 %v1797
        %3738 = vmatpush.msra.mxu0 %v1793
        %3739 = vmatpush.msra.mxu0 %v1789
        %3740 = vmatpush.msra.mxu0 %v1785
        %3741 = vmatpush.msra.mxu0 %v1781
        %3742 = vmatpush.msra.mxu0 %v1777
        %3743 = vmatpush.msra.mxu0 %v1773
        %3744 = vmatpush.msra.mxu0 %v1769
        %3745 = vmatpush.msra.mxu0 %v1765
        %3746 = vmatmul.f32.gmra.mxu0 %v1898
        %v3747 = vpop.f32.mrf.mxu0
        %v3748 = vadd.f32 %v3635, %v3747
        %3749 = vmatmul.f32.gmra.mxu0 %v1906
        %v3750 = vpop.f32.mrf.mxu0
        %v3751 = vadd.f32 %v3638, %v3750
        %3752 = vmatmul.f32.gmra.mxu0 %v1914
        %v3753 = vpop.f32.mrf.mxu0
        %v3754 = vadd.f32 %v3641, %v3753
        %3755 = vmatmul.f32.gmra.mxu0 %v1922
        %v3756 = vpop.f32.mrf.mxu0
        %v3757 = vadd.f32 %v3644, %v3756
        %3758 = vmatmul.f32.gmra.mxu0 %v1930
        %v3759 = vpop.f32.mrf.mxu0
        %v3760 = vadd.f32 %v3647, %v3759
        %3761 = vmatmul.f32.gmra.mxu0 %v1938
        %v3762 = vpop.f32.mrf.mxu0
        %v3763 = vadd.f32 %v3650, %v3762
        %3764 = vmatmul.f32.gmra.mxu0 %v1946
        %v3765 = vpop.f32.mrf.mxu0
        %v3766 = vadd.f32 %v3653, %v3765
        %3767 = vmatmul.f32.gmra.mxu0 %v1954
        %v3768 = vpop.f32.mrf.mxu0
        %v3769 = vadd.f32 %v3656, %v3768
        %3770 = vmatmul.f32.gmra.mxu0 %v1962
        %v3771 = vpop.f32.mrf.mxu0
        %v3772 = vadd.f32 %v3659, %v3771
        %3773 = vmatmul.f32.gmra.mxu0 %v1970
        %v3774 = vpop.f32.mrf.mxu0
        %v3775 = vadd.f32 %v3662, %v3774
        %3776 = vmatmul.f32.gmra.mxu0 %v1978
        %v3777 = vpop.f32.mrf.mxu0
        %v3778 = vadd.f32 %v3665, %v3777
        %3779 = vmatmul.f32.gmra.mxu0 %v1986
        %v3780 = vpop.f32.mrf.mxu0
        %v3781 = vadd.f32 %v3668, %v3780
        %3782 = vmatmul.f32.gmra.mxu0 %v1994
        %v3783 = vpop.f32.mrf.mxu0
        %v3784 = vadd.f32 %v3671, %v3783
        %3785 = vmatmul.f32.gmra.mxu0 %v2002
        %v3786 = vpop.f32.mrf.mxu0
        %v3787 = vadd.f32 %v3674, %v3786
        %3788 = vmatmul.f32.gmra.mxu0 %v2010
        %v3789 = vpop.f32.mrf.mxu0
        %v3790 = vadd.f32 %v3677, %v3789
        %3791 = vmatmul.f32.gmra.mxu0 %v2018
        %v3792 = vpop.f32.mrf.mxu0
        %v3793 = vadd.f32 %v3680, %v3792
        %3794 = vmatmul.f32.gmra.mxu0 %v2026
        %v3795 = vpop.f32.mrf.mxu0
        %v3796 = vadd.f32 %v3683, %v3795
        %3797 = vmatmul.f32.gmra.mxu0 %v2034
        %v3798 = vpop.f32.mrf.mxu0
        %v3799 = vadd.f32 %v3686, %v3798
        %3800 = vmatmul.f32.gmra.mxu0 %v2042
        %v3801 = vpop.f32.mrf.mxu0
        %v3802 = vadd.f32 %v3689, %v3801
        %3803 = vmatmul.f32.gmra.mxu0 %v2050
        %v3804 = vpop.f32.mrf.mxu0
        %v3805 = vadd.f32 %v3692, %v3804
        %3806 = vmatmul.f32.gmra.mxu0 %v2058
        %v3807 = vpop.f32.mrf.mxu0
        %v3808 = vadd.f32 %v3695, %v3807
        %3809 = vmatmul.f32.gmra.mxu0 %v2066
        %v3810 = vpop.f32.mrf.mxu0
        %v3811 = vadd.f32 %v3698, %v3810
        %3812 = vmatmul.f32.gmra.mxu0 %v2074
        %v3813 = vpop.f32.mrf.mxu0
        %v3814 = vadd.f32 %v3701, %v3813
        %3815 = vmatmul.f32.gmra.mxu0 %v2082
        %v3816 = vpop.f32.mrf.mxu0
        %v3817 = vadd.f32 %v3704, %v3816
        %3818 = vmatmul.f32.gmra.mxu0 %v2090
        %v3819 = vpop.f32.mrf.mxu0
        %v3820 = vadd.f32 %v3707, %v3819
        %3821 = vmatmul.f32.gmra.mxu0 %v2098
        %v3822 = vpop.f32.mrf.mxu0
        %v3823 = vadd.f32 %v3710, %v3822
        %3824 = vmatmul.f32.gmra.mxu0 %v2106
        %v3825 = vpop.f32.mrf.mxu0
        %v3826 = vadd.f32 %v3713, %v3825
        %3827 = vmatmul.f32.gmra.mxu0 %v2114
        %v3828 = vpop.f32.mrf.mxu0
        %v3829 = vadd.f32 %v3716, %v3828
        %3830 = vmatmul.f32.gmra.mxu0 %v2122
        %v3831 = vpop.f32.mrf.mxu0
        %v3832 = vadd.f32 %v3719, %v3831
        %3833 = vmatmul.f32.gmra.mxu0 %v2130
        %v3834 = vpop.f32.mrf.mxu0
        %v3835 = vadd.f32 %v3722, %v3834
        %3836 = vmatmul.f32.gmra.mxu0 %v2138
        %v3837 = vpop.f32.mrf.mxu0
        %v3838 = vadd.f32 %v3725, %v3837
        %3839 = vmatmul.f32.gmra.mxu0 %v2146
        %v3840 = vpop.f32.mrf.mxu0
        %v3841 = vadd.f32 %v3728, %v3840
        %3842 = vdwg.mxu0
        %3843 = vmatpush.msra.mxu0 %v1889
        %3844 = vmatpush.msra.mxu0 %v1885
        %3845 = vmatpush.msra.mxu0 %v1881
        %3846 = vmatpush.msra.mxu0 %v1877
        %3847 = vmatpush.msra.mxu0 %v1873
        %3848 = vmatpush.msra.mxu0 %v1869
        %3849 = vmatpush.msra.mxu0 %v1865
        %3850 = vmatpush.msra.mxu0 %v1861
        %3851 = vmatpush.msra.mxu0 %v1857
        %3852 = vmatpush.msra.mxu0 %v1853
        %3853 = vmatpush.msra.mxu0 %v1849
        %3854 = vmatpush.msra.mxu0 %v1845
        %3855 = vmatpush.msra.mxu0 %v1841
        %3856 = vmatpush.msra.mxu0 %v1837
        %3857 = vmatpush.msra.mxu0 %v1833
        %3858 = vmatpush.msra.mxu0 %v1829
        %3859 = vmatmul.f32.gmra.mxu0 %v1899
        %v3860 = vpop.f32.mrf.mxu0
        %v3861 = vadd.f32 %v3748, %v3860
        %3862 = vmatmul.f32.gmra.mxu0 %v1907
        %v3863 = vpop.f32.mrf.mxu0
        %v3864 = vadd.f32 %v3751, %v3863
        %3865 = vmatmul.f32.gmra.mxu0 %v1915
        %v3866 = vpop.f32.mrf.mxu0
        %v3867 = vadd.f32 %v3754, %v3866
        %3868 = vmatmul.f32.gmra.mxu0 %v1923
        %v3869 = vpop.f32.mrf.mxu0
        %v3870 = vadd.f32 %v3757, %v3869
        %3871 = vmatmul.f32.gmra.mxu0 %v1931
        %v3872 = vpop.f32.mrf.mxu0
        %v3873 = vadd.f32 %v3760, %v3872
        %3874 = vmatmul.f32.gmra.mxu0 %v1939
        %v3875 = vpop.f32.mrf.mxu0
        %v3876 = vadd.f32 %v3763, %v3875
        %3877 = vmatmul.f32.gmra.mxu0 %v1947
        %v3878 = vpop.f32.mrf.mxu0
        %v3879 = vadd.f32 %v3766, %v3878
        %3880 = vmatmul.f32.gmra.mxu0 %v1955
        %v3881 = vpop.f32.mrf.mxu0
        %v3882 = vadd.f32 %v3769, %v3881
        %3883 = vmatmul.f32.gmra.mxu0 %v1963
        %v3884 = vpop.f32.mrf.mxu0
        %v3885 = vadd.f32 %v3772, %v3884
        %3886 = vmatmul.f32.gmra.mxu0 %v1971
        %v3887 = vpop.f32.mrf.mxu0
        %v3888 = vadd.f32 %v3775, %v3887
        %3889 = vmatmul.f32.gmra.mxu0 %v1979
        %v3890 = vpop.f32.mrf.mxu0
        %v3891 = vadd.f32 %v3778, %v3890
        %3892 = vmatmul.f32.gmra.mxu0 %v1987
        %v3893 = vpop.f32.mrf.mxu0
        %v3894 = vadd.f32 %v3781, %v3893
        %3895 = vmatmul.f32.gmra.mxu0 %v1995
        %v3896 = vpop.f32.mrf.mxu0
        %v3897 = vadd.f32 %v3784, %v3896
        %3898 = vmatmul.f32.gmra.mxu0 %v2003
        %v3899 = vpop.f32.mrf.mxu0
        %v3900 = vadd.f32 %v3787, %v3899
        %3901 = vmatmul.f32.gmra.mxu0 %v2011
        %v3902 = vpop.f32.mrf.mxu0
        %v3903 = vadd.f32 %v3790, %v3902
        %3904 = vmatmul.f32.gmra.mxu0 %v2019
        %v3905 = vpop.f32.mrf.mxu0
        %v3906 = vadd.f32 %v3793, %v3905
        %3907 = vmatmul.f32.gmra.mxu0 %v2027
        %v3908 = vpop.f32.mrf.mxu0
        %v3909 = vadd.f32 %v3796, %v3908
        %3910 = vmatmul.f32.gmra.mxu0 %v2035
        %v3911 = vpop.f32.mrf.mxu0
        %v3912 = vadd.f32 %v3799, %v3911
        %3913 = vmatmul.f32.gmra.mxu0 %v2043
        %v3914 = vpop.f32.mrf.mxu0
        %v3915 = vadd.f32 %v3802, %v3914
        %3916 = vmatmul.f32.gmra.mxu0 %v2051
        %v3917 = vpop.f32.mrf.mxu0
        %v3918 = vadd.f32 %v3805, %v3917
        %3919 = vmatmul.f32.gmra.mxu0 %v2059
        %v3920 = vpop.f32.mrf.mxu0
        %v3921 = vadd.f32 %v3808, %v3920
        %3922 = vmatmul.f32.gmra.mxu0 %v2067
        %v3923 = vpop.f32.mrf.mxu0
        %v3924 = vadd.f32 %v3811, %v3923
        %3925 = vmatmul.f32.gmra.mxu0 %v2075
        %v3926 = vpop.f32.mrf.mxu0
        %v3927 = vadd.f32 %v3814, %v3926
        %3928 = vmatmul.f32.gmra.mxu0 %v2083
        %v3929 = vpop.f32.mrf.mxu0
        %v3930 = vadd.f32 %v3817, %v3929
        %3931 = vmatmul.f32.gmra.mxu0 %v2091
        %v3932 = vpop.f32.mrf.mxu0
        %v3933 = vadd.f32 %v3820, %v3932
        %3934 = vmatmul.f32.gmra.mxu0 %v2099
        %v3935 = vpop.f32.mrf.mxu0
        %v3936 = vadd.f32 %v3823, %v3935
        %3937 = vmatmul.f32.gmra.mxu0 %v2107
        %v3938 = vpop.f32.mrf.mxu0
        %v3939 = vadd.f32 %v3826, %v3938
        %3940 = vmatmul.f32.gmra.mxu0 %v2115
        %v3941 = vpop.f32.mrf.mxu0
        %v3942 = vadd.f32 %v3829, %v3941
        %3943 = vmatmul.f32.gmra.mxu0 %v2123
        %v3944 = vpop.f32.mrf.mxu0
        %v3945 = vadd.f32 %v3832, %v3944
        %3946 = vmatmul.f32.gmra.mxu0 %v2131
        %v3947 = vpop.f32.mrf.mxu0
        %v3948 = vadd.f32 %v3835, %v3947
        %3949 = vmatmul.f32.gmra.mxu0 %v2139
        %v3950 = vpop.f32.mrf.mxu0
        %v3951 = vadd.f32 %v3838, %v3950
        %3952 = vmatmul.f32.gmra.mxu0 %v2147
        %v3953 = vpop.f32.mrf.mxu0
        %v3954 = vadd.f32 %v3841, %v3953
        %3955 = vdwg.mxu0
        %3956 = vmatpush.msra.mxu0 %v1442
        %3957 = vmatpush.msra.mxu0 %v1438
        %3958 = vmatpush.msra.mxu0 %v1434
        %3959 = vmatpush.msra.mxu0 %v1430
        %3960 = vmatpush.msra.mxu0 %v1426
        %3961 = vmatpush.msra.mxu0 %v1422
        %3962 = vmatpush.msra.mxu0 %v1418
        %3963 = vmatpush.msra.mxu0 %v1414
        %3964 = vmatpush.msra.mxu0 %v1410
        %3965 = vmatpush.msra.mxu0 %v1406
        %3966 = vmatpush.msra.mxu0 %v1402
        %3967 = vmatpush.msra.mxu0 %v1398
        %3968 = vmatpush.msra.mxu0 %v1394
        %3969 = vmatpush.msra.mxu0 %v1390
        %3970 = vmatpush.msra.mxu0 %v1386
        %3971 = vmatpush.msra.mxu0 %v1382
        %3972 = vmatmul.f32.gmra.mxu0 %v1892
        %v3973 = vpop.f32.mrf.mxu0
        %v3974 = vadd.f32 0.0, %v3973
        %3975 = vmatmul.f32.gmra.mxu0 %v1900
        %v3976 = vpop.f32.mrf.mxu0
        %v3977 = vadd.f32 0.0, %v3976
        %3978 = vmatmul.f32.gmra.mxu0 %v1908
        %v3979 = vpop.f32.mrf.mxu0
        %v3980 = vadd.f32 0.0, %v3979
        %3981 = vmatmul.f32.gmra.mxu0 %v1916
        %v3982 = vpop.f32.mrf.mxu0
        %v3983 = vadd.f32 0.0, %v3982
        %3984 = vmatmul.f32.gmra.mxu0 %v1924
        %v3985 = vpop.f32.mrf.mxu0
        %v3986 = vadd.f32 0.0, %v3985
        %3987 = vmatmul.f32.gmra.mxu0 %v1932
        %v3988 = vpop.f32.mrf.mxu0
        %v3989 = vadd.f32 0.0, %v3988
        %3990 = vmatmul.f32.gmra.mxu0 %v1940
        %v3991 = vpop.f32.mrf.mxu0
        %v3992 = vadd.f32 0.0, %v3991
        %3993 = vmatmul.f32.gmra.mxu0 %v1948
        %v3994 = vpop.f32.mrf.mxu0
        %v3995 = vadd.f32 0.0, %v3994
        %3996 = vmatmul.f32.gmra.mxu0 %v1956
        %v3997 = vpop.f32.mrf.mxu0
        %v3998 = vadd.f32 0.0, %v3997
        %3999 = vmatmul.f32.gmra.mxu0 %v1964
        %v4000 = vpop.f32.mrf.mxu0
        %v4001 = vadd.f32 0.0, %v4000
        %4002 = vmatmul.f32.gmra.mxu0 %v1972
        %v4003 = vpop.f32.mrf.mxu0
        %v4004 = vadd.f32 0.0, %v4003
        %4005 = vmatmul.f32.gmra.mxu0 %v1980
        %v4006 = vpop.f32.mrf.mxu0
        %v4007 = vadd.f32 0.0, %v4006
        %4008 = vmatmul.f32.gmra.mxu0 %v1988
        %v4009 = vpop.f32.mrf.mxu0
        %v4010 = vadd.f32 0.0, %v4009
        %4011 = vmatmul.f32.gmra.mxu0 %v1996
        %v4012 = vpop.f32.mrf.mxu0
        %v4013 = vadd.f32 0.0, %v4012
        %4014 = vmatmul.f32.gmra.mxu0 %v2004
        %v4015 = vpop.f32.mrf.mxu0
        %v4016 = vadd.f32 0.0, %v4015
        %4017 = vmatmul.f32.gmra.mxu0 %v2012
        %v4018 = vpop.f32.mrf.mxu0
        %v4019 = vadd.f32 0.0, %v4018
        %4020 = vmatmul.f32.gmra.mxu0 %v2020
        %v4021 = vpop.f32.mrf.mxu0
        %v4022 = vadd.f32 0.0, %v4021
        %4023 = vmatmul.f32.gmra.mxu0 %v2028
        %v4024 = vpop.f32.mrf.mxu0
        %v4025 = vadd.f32 0.0, %v4024
        %4026 = vmatmul.f32.gmra.mxu0 %v2036
        %v4027 = vpop.f32.mrf.mxu0
        %v4028 = vadd.f32 0.0, %v4027
        %4029 = vmatmul.f32.gmra.mxu0 %v2044
        %v4030 = vpop.f32.mrf.mxu0
        %v4031 = vadd.f32 0.0, %v4030
        %4032 = vmatmul.f32.gmra.mxu0 %v2052
        %v4033 = vpop.f32.mrf.mxu0
        %v4034 = vadd.f32 0.0, %v4033
        %4035 = vmatmul.f32.gmra.mxu0 %v2060
        %v4036 = vpop.f32.mrf.mxu0
        %v4037 = vadd.f32 0.0, %v4036
        %4038 = vmatmul.f32.gmra.mxu0 %v2068
        %v4039 = vpop.f32.mrf.mxu0
        %v4040 = vadd.f32 0.0, %v4039
        %4041 = vmatmul.f32.gmra.mxu0 %v2076
        %v4042 = vpop.f32.mrf.mxu0
        %v4043 = vadd.f32 0.0, %v4042
        %4044 = vmatmul.f32.gmra.mxu0 %v2084
        %v4045 = vpop.f32.mrf.mxu0
        %v4046 = vadd.f32 0.0, %v4045
        %4047 = vmatmul.f32.gmra.mxu0 %v2092
        %v4048 = vpop.f32.mrf.mxu0
        %v4049 = vadd.f32 0.0, %v4048
        %4050 = vmatmul.f32.gmra.mxu0 %v2100
        %v4051 = vpop.f32.mrf.mxu0
        %v4052 = vadd.f32 0.0, %v4051
        %4053 = vmatmul.f32.gmra.mxu0 %v2108
        %v4054 = vpop.f32.mrf.mxu0
        %v4055 = vadd.f32 0.0, %v4054
        %4056 = vmatmul.f32.gmra.mxu0 %v2116
        %v4057 = vpop.f32.mrf.mxu0
        %v4058 = vadd.f32 0.0, %v4057
        %4059 = vmatmul.f32.gmra.mxu0 %v2124
        %v4060 = vpop.f32.mrf.mxu0
        %v4061 = vadd.f32 0.0, %v4060
        %4062 = vmatmul.f32.gmra.mxu0 %v2132
        %v4063 = vpop.f32.mrf.mxu0
        %v4064 = vadd.f32 0.0, %v4063
        %4065 = vmatmul.f32.gmra.mxu0 %v2140
        %v4066 = vpop.f32.mrf.mxu0
        %v4067 = vadd.f32 0.0, %v4066
        %4068 = vdwg.mxu0
        %4069 = vmatpush.msra.mxu0 %v1506
        %4070 = vmatpush.msra.mxu0 %v1502
        %4071 = vmatpush.msra.mxu0 %v1498
        %4072 = vmatpush.msra.mxu0 %v1494
        %4073 = vmatpush.msra.mxu0 %v1490
        %4074 = vmatpush.msra.mxu0 %v1486
        %4075 = vmatpush.msra.mxu0 %v1482
        %4076 = vmatpush.msra.mxu0 %v1478
        %4077 = vmatpush.msra.mxu0 %v1474
        %4078 = vmatpush.msra.mxu0 %v1470
        %4079 = vmatpush.msra.mxu0 %v1466
        %4080 = vmatpush.msra.mxu0 %v1462
        %4081 = vmatpush.msra.mxu0 %v1458
        %4082 = vmatpush.msra.mxu0 %v1454
        %4083 = vmatpush.msra.mxu0 %v1450
        %4084 = vmatpush.msra.mxu0 %v1446
        %4085 = vmatmul.f32.gmra.mxu0 %v1893
        %v4086 = vpop.f32.mrf.mxu0
        %v4087 = vadd.f32 %v3974, %v4086
        %4088 = vmatmul.f32.gmra.mxu0 %v1901
        %v4089 = vpop.f32.mrf.mxu0
        %v4090 = vadd.f32 %v3977, %v4089
        %4091 = vmatmul.f32.gmra.mxu0 %v1909
        %v4092 = vpop.f32.mrf.mxu0
        %v4093 = vadd.f32 %v3980, %v4092
        %4094 = vmatmul.f32.gmra.mxu0 %v1917
        %v4095 = vpop.f32.mrf.mxu0
        %v4096 = vadd.f32 %v3983, %v4095
        %4097 = vmatmul.f32.gmra.mxu0 %v1925
        %v4098 = vpop.f32.mrf.mxu0
        %v4099 = vadd.f32 %v3986, %v4098
        %4100 = vmatmul.f32.gmra.mxu0 %v1933
        %v4101 = vpop.f32.mrf.mxu0
        %v4102 = vadd.f32 %v3989, %v4101
        %4103 = vmatmul.f32.gmra.mxu0 %v1941
        %v4104 = vpop.f32.mrf.mxu0
        %v4105 = vadd.f32 %v3992, %v4104
        %4106 = vmatmul.f32.gmra.mxu0 %v1949
        %v4107 = vpop.f32.mrf.mxu0
        %v4108 = vadd.f32 %v3995, %v4107
        %4109 = vmatmul.f32.gmra.mxu0 %v1957
        %v4110 = vpop.f32.mrf.mxu0
        %v4111 = vadd.f32 %v3998, %v4110
        %4112 = vmatmul.f32.gmra.mxu0 %v1965
        %v4113 = vpop.f32.mrf.mxu0
        %v4114 = vadd.f32 %v4001, %v4113
        %4115 = vmatmul.f32.gmra.mxu0 %v1973
        %v4116 = vpop.f32.mrf.mxu0
        %v4117 = vadd.f32 %v4004, %v4116
        %4118 = vmatmul.f32.gmra.mxu0 %v1981
        %v4119 = vpop.f32.mrf.mxu0
        %v4120 = vadd.f32 %v4007, %v4119
        %4121 = vmatmul.f32.gmra.mxu0 %v1989
        %v4122 = vpop.f32.mrf.mxu0
        %v4123 = vadd.f32 %v4010, %v4122
        %4124 = vmatmul.f32.gmra.mxu0 %v1997
        %v4125 = vpop.f32.mrf.mxu0
        %v4126 = vadd.f32 %v4013, %v4125
        %4127 = vmatmul.f32.gmra.mxu0 %v2005
        %v4128 = vpop.f32.mrf.mxu0
        %v4129 = vadd.f32 %v4016, %v4128
        %4130 = vmatmul.f32.gmra.mxu0 %v2013
        %v4131 = vpop.f32.mrf.mxu0
        %v4132 = vadd.f32 %v4019, %v4131
        %4133 = vmatmul.f32.gmra.mxu0 %v2021
        %v4134 = vpop.f32.mrf.mxu0
        %v4135 = vadd.f32 %v4022, %v4134
        %4136 = vmatmul.f32.gmra.mxu0 %v2029
        %v4137 = vpop.f32.mrf.mxu0
        %v4138 = vadd.f32 %v4025, %v4137
        %4139 = vmatmul.f32.gmra.mxu0 %v2037
        %v4140 = vpop.f32.mrf.mxu0
        %v4141 = vadd.f32 %v4028, %v4140
        %4142 = vmatmul.f32.gmra.mxu0 %v2045
        %v4143 = vpop.f32.mrf.mxu0
        %v4144 = vadd.f32 %v4031, %v4143
        %4145 = vmatmul.f32.gmra.mxu0 %v2053
        %v4146 = vpop.f32.mrf.mxu0
        %v4147 = vadd.f32 %v4034, %v4146
        %4148 = vmatmul.f32.gmra.mxu0 %v2061
        %v4149 = vpop.f32.mrf.mxu0
        %v4150 = vadd.f32 %v4037, %v4149
        %4151 = vmatmul.f32.gmra.mxu0 %v2069
        %v4152 = vpop.f32.mrf.mxu0
        %v4153 = vadd.f32 %v4040, %v4152
        %4154 = vmatmul.f32.gmra.mxu0 %v2077
        %v4155 = vpop.f32.mrf.mxu0
        %v4156 = vadd.f32 %v4043, %v4155
        %4157 = vmatmul.f32.gmra.mxu0 %v2085
        %v4158 = vpop.f32.mrf.mxu0
        %v4159 = vadd.f32 %v4046, %v4158
        %4160 = vmatmul.f32.gmra.mxu0 %v2093
        %v4161 = vpop.f32.mrf.mxu0
        %v4162 = vadd.f32 %v4049, %v4161
        %4163 = vmatmul.f32.gmra.mxu0 %v2101
        %v4164 = vpop.f32.mrf.mxu0
        %v4165 = vadd.f32 %v4052, %v4164
        %4166 = vmatmul.f32.gmra.mxu0 %v2109
        %v4167 = vpop.f32.mrf.mxu0
        %v4168 = vadd.f32 %v4055, %v4167
        %4169 = vmatmul.f32.gmra.mxu0 %v2117
        %v4170 = vpop.f32.mrf.mxu0
        %v4171 = vadd.f32 %v4058, %v4170
        %4172 = vmatmul.f32.gmra.mxu0 %v2125
        %v4173 = vpop.f32.mrf.mxu0
        %v4174 = vadd.f32 %v4061, %v4173
        %4175 = vmatmul.f32.gmra.mxu0 %v2133
        %v4176 = vpop.f32.mrf.mxu0
        %v4177 = vadd.f32 %v4064, %v4176
        %4178 = vmatmul.f32.gmra.mxu0 %v2141
        %v4179 = vpop.f32.mrf.mxu0
        %v4180 = vadd.f32 %v4067, %v4179
        %4181 = vdwg.mxu0
        %4182 = vmatpush.msra.mxu0 %v1570
        %4183 = vmatpush.msra.mxu0 %v1566
        %4184 = vmatpush.msra.mxu0 %v1562
        %4185 = vmatpush.msra.mxu0 %v1558
        %4186 = vmatpush.msra.mxu0 %v1554
        %4187 = vmatpush.msra.mxu0 %v1550
        %4188 = vmatpush.msra.mxu0 %v1546
        %4189 = vmatpush.msra.mxu0 %v1542
        %4190 = vmatpush.msra.mxu0 %v1538
        %4191 = vmatpush.msra.mxu0 %v1534
        %4192 = vmatpush.msra.mxu0 %v1530
        %4193 = vmatpush.msra.mxu0 %v1526
        %4194 = vmatpush.msra.mxu0 %v1522
        %4195 = vmatpush.msra.mxu0 %v1518
        %4196 = vmatpush.msra.mxu0 %v1514
        %4197 = vmatpush.msra.mxu0 %v1510
        %4198 = vmatmul.f32.gmra.mxu0 %v1894
        %v4199 = vpop.f32.mrf.mxu0
        %v4200 = vadd.f32 %v4087, %v4199
        %4201 = vmatmul.f32.gmra.mxu0 %v1902
        %v4202 = vpop.f32.mrf.mxu0
        %v4203 = vadd.f32 %v4090, %v4202
        %4204 = vmatmul.f32.gmra.mxu0 %v1910
        %v4205 = vpop.f32.mrf.mxu0
        %v4206 = vadd.f32 %v4093, %v4205
        %4207 = vmatmul.f32.gmra.mxu0 %v1918
        %v4208 = vpop.f32.mrf.mxu0
        %v4209 = vadd.f32 %v4096, %v4208
        %4210 = vmatmul.f32.gmra.mxu0 %v1926
        %v4211 = vpop.f32.mrf.mxu0
        %v4212 = vadd.f32 %v4099, %v4211
        %4213 = vmatmul.f32.gmra.mxu0 %v1934
        %v4214 = vpop.f32.mrf.mxu0
        %v4215 = vadd.f32 %v4102, %v4214
        %4216 = vmatmul.f32.gmra.mxu0 %v1942
        %v4217 = vpop.f32.mrf.mxu0
        %v4218 = vadd.f32 %v4105, %v4217
        %4219 = vmatmul.f32.gmra.mxu0 %v1950
        %v4220 = vpop.f32.mrf.mxu0
        %v4221 = vadd.f32 %v4108, %v4220
        %4222 = vmatmul.f32.gmra.mxu0 %v1958
        %v4223 = vpop.f32.mrf.mxu0
        %v4224 = vadd.f32 %v4111, %v4223
        %4225 = vmatmul.f32.gmra.mxu0 %v1966
        %v4226 = vpop.f32.mrf.mxu0
        %v4227 = vadd.f32 %v4114, %v4226
        %4228 = vmatmul.f32.gmra.mxu0 %v1974
        %v4229 = vpop.f32.mrf.mxu0
        %v4230 = vadd.f32 %v4117, %v4229
        %4231 = vmatmul.f32.gmra.mxu0 %v1982
        %v4232 = vpop.f32.mrf.mxu0
        %v4233 = vadd.f32 %v4120, %v4232
        %4234 = vmatmul.f32.gmra.mxu0 %v1990
        %v4235 = vpop.f32.mrf.mxu0
        %v4236 = vadd.f32 %v4123, %v4235
        %4237 = vmatmul.f32.gmra.mxu0 %v1998
        %v4238 = vpop.f32.mrf.mxu0
        %v4239 = vadd.f32 %v4126, %v4238
        %4240 = vmatmul.f32.gmra.mxu0 %v2006
        %v4241 = vpop.f32.mrf.mxu0
        %v4242 = vadd.f32 %v4129, %v4241
        %4243 = vmatmul.f32.gmra.mxu0 %v2014
        %v4244 = vpop.f32.mrf.mxu0
        %v4245 = vadd.f32 %v4132, %v4244
        %4246 = vmatmul.f32.gmra.mxu0 %v2022
        %v4247 = vpop.f32.mrf.mxu0
        %v4248 = vadd.f32 %v4135, %v4247
        %4249 = vmatmul.f32.gmra.mxu0 %v2030
        %v4250 = vpop.f32.mrf.mxu0
        %v4251 = vadd.f32 %v4138, %v4250
        %4252 = vmatmul.f32.gmra.mxu0 %v2038
        %v4253 = vpop.f32.mrf.mxu0
        %v4254 = vadd.f32 %v4141, %v4253
        %4255 = vmatmul.f32.gmra.mxu0 %v2046
        %v4256 = vpop.f32.mrf.mxu0
        %v4257 = vadd.f32 %v4144, %v4256
        %4258 = vmatmul.f32.gmra.mxu0 %v2054
        %v4259 = vpop.f32.mrf.mxu0
        %v4260 = vadd.f32 %v4147, %v4259
        %4261 = vmatmul.f32.gmra.mxu0 %v2062
        %v4262 = vpop.f32.mrf.mxu0
        %v4263 = vadd.f32 %v4150, %v4262
        %4264 = vmatmul.f32.gmra.mxu0 %v2070
        %v4265 = vpop.f32.mrf.mxu0
        %v4266 = vadd.f32 %v4153, %v4265
        %4267 = vmatmul.f32.gmra.mxu0 %v2078
        %v4268 = vpop.f32.mrf.mxu0
        %v4269 = vadd.f32 %v4156, %v4268
        %4270 = vmatmul.f32.gmra.mxu0 %v2086
        %v4271 = vpop.f32.mrf.mxu0
        %v4272 = vadd.f32 %v4159, %v4271
        %4273 = vmatmul.f32.gmra.mxu0 %v2094
        %v4274 = vpop.f32.mrf.mxu0
        %v4275 = vadd.f32 %v4162, %v4274
        %4276 = vmatmul.f32.gmra.mxu0 %v2102
        %v4277 = vpop.f32.mrf.mxu0
        %v4278 = vadd.f32 %v4165, %v4277
        %4279 = vmatmul.f32.gmra.mxu0 %v2110
        %v4280 = vpop.f32.mrf.mxu0
        %v4281 = vadd.f32 %v4168, %v4280
        %4282 = vmatmul.f32.gmra.mxu0 %v2118
        %v4283 = vpop.f32.mrf.mxu0
        %v4284 = vadd.f32 %v4171, %v4283
        %4285 = vmatmul.f32.gmra.mxu0 %v2126
        %v4286 = vpop.f32.mrf.mxu0
        %v4287 = vadd.f32 %v4174, %v4286
        %4288 = vmatmul.f32.gmra.mxu0 %v2134
        %v4289 = vpop.f32.mrf.mxu0
        %v4290 = vadd.f32 %v4177, %v4289
        %4291 = vmatmul.f32.gmra.mxu0 %v2142
        %v4292 = vpop.f32.mrf.mxu0
        %v4293 = vadd.f32 %v4180, %v4292
        %4294 = vdwg.mxu0
        %4295 = vmatpush.msra.mxu0 %v1634
        %4296 = vmatpush.msra.mxu0 %v1630
        %4297 = vmatpush.msra.mxu0 %v1626
        %4298 = vmatpush.msra.mxu0 %v1622
        %4299 = vmatpush.msra.mxu0 %v1618
        %4300 = vmatpush.msra.mxu0 %v1614
        %4301 = vmatpush.msra.mxu0 %v1610
        %4302 = vmatpush.msra.mxu0 %v1606
        %4303 = vmatpush.msra.mxu0 %v1602
        %4304 = vmatpush.msra.mxu0 %v1598
        %4305 = vmatpush.msra.mxu0 %v1594
        %4306 = vmatpush.msra.mxu0 %v1590
        %4307 = vmatpush.msra.mxu0 %v1586
        %4308 = vmatpush.msra.mxu0 %v1582
        %4309 = vmatpush.msra.mxu0 %v1578
        %4310 = vmatpush.msra.mxu0 %v1574
        %4311 = vmatmul.f32.gmra.mxu0 %v1895
        %v4312 = vpop.f32.mrf.mxu0
        %v4313 = vadd.f32 %v4200, %v4312
        %4314 = vmatmul.f32.gmra.mxu0 %v1903
        %v4315 = vpop.f32.mrf.mxu0
        %v4316 = vadd.f32 %v4203, %v4315
        %4317 = vmatmul.f32.gmra.mxu0 %v1911
        %v4318 = vpop.f32.mrf.mxu0
        %v4319 = vadd.f32 %v4206, %v4318
        %4320 = vmatmul.f32.gmra.mxu0 %v1919
        %v4321 = vpop.f32.mrf.mxu0
        %v4322 = vadd.f32 %v4209, %v4321
        %4323 = vmatmul.f32.gmra.mxu0 %v1927
        %v4324 = vpop.f32.mrf.mxu0
        %v4325 = vadd.f32 %v4212, %v4324
        %4326 = vmatmul.f32.gmra.mxu0 %v1935
        %v4327 = vpop.f32.mrf.mxu0
        %v4328 = vadd.f32 %v4215, %v4327
        %4329 = vmatmul.f32.gmra.mxu0 %v1943
        %v4330 = vpop.f32.mrf.mxu0
        %v4331 = vadd.f32 %v4218, %v4330
        %4332 = vmatmul.f32.gmra.mxu0 %v1951
        %v4333 = vpop.f32.mrf.mxu0
        %v4334 = vadd.f32 %v4221, %v4333
        %4335 = vmatmul.f32.gmra.mxu0 %v1959
        %v4336 = vpop.f32.mrf.mxu0
        %v4337 = vadd.f32 %v4224, %v4336
        %4338 = vmatmul.f32.gmra.mxu0 %v1967
        %v4339 = vpop.f32.mrf.mxu0
        %v4340 = vadd.f32 %v4227, %v4339
        %4341 = vmatmul.f32.gmra.mxu0 %v1975
        %v4342 = vpop.f32.mrf.mxu0
        %v4343 = vadd.f32 %v4230, %v4342
        %4344 = vmatmul.f32.gmra.mxu0 %v1983
        %v4345 = vpop.f32.mrf.mxu0
        %v4346 = vadd.f32 %v4233, %v4345
        %4347 = vmatmul.f32.gmra.mxu0 %v1991
        %v4348 = vpop.f32.mrf.mxu0
        %v4349 = vadd.f32 %v4236, %v4348
        %4350 = vmatmul.f32.gmra.mxu0 %v1999
        %v4351 = vpop.f32.mrf.mxu0
        %v4352 = vadd.f32 %v4239, %v4351
        %4353 = vmatmul.f32.gmra.mxu0 %v2007
        %v4354 = vpop.f32.mrf.mxu0
        %v4355 = vadd.f32 %v4242, %v4354
        %4356 = vmatmul.f32.gmra.mxu0 %v2015
        %v4357 = vpop.f32.mrf.mxu0
        %v4358 = vadd.f32 %v4245, %v4357
        %4359 = vmatmul.f32.gmra.mxu0 %v2023
        %v4360 = vpop.f32.mrf.mxu0
        %v4361 = vadd.f32 %v4248, %v4360
        %4362 = vmatmul.f32.gmra.mxu0 %v2031
        %v4363 = vpop.f32.mrf.mxu0
        %v4364 = vadd.f32 %v4251, %v4363
        %4365 = vmatmul.f32.gmra.mxu0 %v2039
        %v4366 = vpop.f32.mrf.mxu0
        %v4367 = vadd.f32 %v4254, %v4366
        %4368 = vmatmul.f32.gmra.mxu0 %v2047
        %v4369 = vpop.f32.mrf.mxu0
        %v4370 = vadd.f32 %v4257, %v4369
        %4371 = vmatmul.f32.gmra.mxu0 %v2055
        %v4372 = vpop.f32.mrf.mxu0
        %v4373 = vadd.f32 %v4260, %v4372
        %4374 = vmatmul.f32.gmra.mxu0 %v2063
        %v4375 = vpop.f32.mrf.mxu0
        %v4376 = vadd.f32 %v4263, %v4375
        %4377 = vmatmul.f32.gmra.mxu0 %v2071
        %v4378 = vpop.f32.mrf.mxu0
        %v4379 = vadd.f32 %v4266, %v4378
        %4380 = vmatmul.f32.gmra.mxu0 %v2079
        %v4381 = vpop.f32.mrf.mxu0
        %v4382 = vadd.f32 %v4269, %v4381
        %4383 = vmatmul.f32.gmra.mxu0 %v2087
        %v4384 = vpop.f32.mrf.mxu0
        %v4385 = vadd.f32 %v4272, %v4384
        %4386 = vmatmul.f32.gmra.mxu0 %v2095
        %v4387 = vpop.f32.mrf.mxu0
        %v4388 = vadd.f32 %v4275, %v4387
        %4389 = vmatmul.f32.gmra.mxu0 %v2103
        %v4390 = vpop.f32.mrf.mxu0
        %v4391 = vadd.f32 %v4278, %v4390
        %4392 = vmatmul.f32.gmra.mxu0 %v2111
        %v4393 = vpop.f32.mrf.mxu0
        %v4394 = vadd.f32 %v4281, %v4393
        %4395 = vmatmul.f32.gmra.mxu0 %v2119
        %v4396 = vpop.f32.mrf.mxu0
        %v4397 = vadd.f32 %v4284, %v4396
        %4398 = vmatmul.f32.gmra.mxu0 %v2127
        %v4399 = vpop.f32.mrf.mxu0
        %v4400 = vadd.f32 %v4287, %v4399
        %4401 = vmatmul.f32.gmra.mxu0 %v2135
        %v4402 = vpop.f32.mrf.mxu0
        %v4403 = vadd.f32 %v4290, %v4402
        %4404 = vmatmul.f32.gmra.mxu0 %v2143
        %v4405 = vpop.f32.mrf.mxu0
        %v4406 = vadd.f32 %v4293, %v4405
        %4407 = vdwg.mxu0
        %4408 = vmatpush.msra.mxu0 %v1698
        %4409 = vmatpush.msra.mxu0 %v1694
        %4410 = vmatpush.msra.mxu0 %v1690
        %4411 = vmatpush.msra.mxu0 %v1686
        %4412 = vmatpush.msra.mxu0 %v1682
        %4413 = vmatpush.msra.mxu0 %v1678
        %4414 = vmatpush.msra.mxu0 %v1674
        %4415 = vmatpush.msra.mxu0 %v1670
        %4416 = vmatpush.msra.mxu0 %v1666
        %4417 = vmatpush.msra.mxu0 %v1662
        %4418 = vmatpush.msra.mxu0 %v1658
        %4419 = vmatpush.msra.mxu0 %v1654
        %4420 = vmatpush.msra.mxu0 %v1650
        %4421 = vmatpush.msra.mxu0 %v1646
        %4422 = vmatpush.msra.mxu0 %v1642
        %4423 = vmatpush.msra.mxu0 %v1638
        %4424 = vmatmul.f32.gmra.mxu0 %v1896
        %v4425 = vpop.f32.mrf.mxu0
        %v4426 = vadd.f32 %v4313, %v4425
        %4427 = vmatmul.f32.gmra.mxu0 %v1904
        %v4428 = vpop.f32.mrf.mxu0
        %v4429 = vadd.f32 %v4316, %v4428
        %4430 = vmatmul.f32.gmra.mxu0 %v1912
        %v4431 = vpop.f32.mrf.mxu0
        %v4432 = vadd.f32 %v4319, %v4431
        %4433 = vmatmul.f32.gmra.mxu0 %v1920
        %v4434 = vpop.f32.mrf.mxu0
        %v4435 = vadd.f32 %v4322, %v4434
        %4436 = vmatmul.f32.gmra.mxu0 %v1928
        %v4437 = vpop.f32.mrf.mxu0
        %v4438 = vadd.f32 %v4325, %v4437
        %4439 = vmatmul.f32.gmra.mxu0 %v1936
        %v4440 = vpop.f32.mrf.mxu0
        %v4441 = vadd.f32 %v4328, %v4440
        %4442 = vmatmul.f32.gmra.mxu0 %v1944
        %v4443 = vpop.f32.mrf.mxu0
        %v4444 = vadd.f32 %v4331, %v4443
        %4445 = vmatmul.f32.gmra.mxu0 %v1952
        %v4446 = vpop.f32.mrf.mxu0
        %v4447 = vadd.f32 %v4334, %v4446
        %4448 = vmatmul.f32.gmra.mxu0 %v1960
        %v4449 = vpop.f32.mrf.mxu0
        %v4450 = vadd.f32 %v4337, %v4449
        %4451 = vmatmul.f32.gmra.mxu0 %v1968
        %v4452 = vpop.f32.mrf.mxu0
        %v4453 = vadd.f32 %v4340, %v4452
        %4454 = vmatmul.f32.gmra.mxu0 %v1976
        %v4455 = vpop.f32.mrf.mxu0
        %v4456 = vadd.f32 %v4343, %v4455
        %4457 = vmatmul.f32.gmra.mxu0 %v1984
        %v4458 = vpop.f32.mrf.mxu0
        %v4459 = vadd.f32 %v4346, %v4458
        %4460 = vmatmul.f32.gmra.mxu0 %v1992
        %v4461 = vpop.f32.mrf.mxu0
        %v4462 = vadd.f32 %v4349, %v4461
        %4463 = vmatmul.f32.gmra.mxu0 %v2000
        %v4464 = vpop.f32.mrf.mxu0
        %v4465 = vadd.f32 %v4352, %v4464
        %4466 = vmatmul.f32.gmra.mxu0 %v2008
        %v4467 = vpop.f32.mrf.mxu0
        %v4468 = vadd.f32 %v4355, %v4467
        %4469 = vmatmul.f32.gmra.mxu0 %v2016
        %v4470 = vpop.f32.mrf.mxu0
        %v4471 = vadd.f32 %v4358, %v4470
        %4472 = vmatmul.f32.gmra.mxu0 %v2024
        %v4473 = vpop.f32.mrf.mxu0
        %v4474 = vadd.f32 %v4361, %v4473
        %4475 = vmatmul.f32.gmra.mxu0 %v2032
        %v4476 = vpop.f32.mrf.mxu0
        %v4477 = vadd.f32 %v4364, %v4476
        %4478 = vmatmul.f32.gmra.mxu0 %v2040
        %v4479 = vpop.f32.mrf.mxu0
        %v4480 = vadd.f32 %v4367, %v4479
        %4481 = vmatmul.f32.gmra.mxu0 %v2048
        %v4482 = vpop.f32.mrf.mxu0
        %v4483 = vadd.f32 %v4370, %v4482
        %4484 = vmatmul.f32.gmra.mxu0 %v2056
        %v4485 = vpop.f32.mrf.mxu0
        %v4486 = vadd.f32 %v4373, %v4485
        %4487 = vmatmul.f32.gmra.mxu0 %v2064
        %v4488 = vpop.f32.mrf.mxu0
        %v4489 = vadd.f32 %v4376, %v4488
        %4490 = vmatmul.f32.gmra.mxu0 %v2072
        %v4491 = vpop.f32.mrf.mxu0
        %v4492 = vadd.f32 %v4379, %v4491
        %4493 = vmatmul.f32.gmra.mxu0 %v2080
        %v4494 = vpop.f32.mrf.mxu0
        %v4495 = vadd.f32 %v4382, %v4494
        %4496 = vmatmul.f32.gmra.mxu0 %v2088
        %v4497 = vpop.f32.mrf.mxu0
        %v4498 = vadd.f32 %v4385, %v4497
        %4499 = vmatmul.f32.gmra.mxu0 %v2096
        %v4500 = vpop.f32.mrf.mxu0
        %v4501 = vadd.f32 %v4388, %v4500
        %4502 = vmatmul.f32.gmra.mxu0 %v2104
        %v4503 = vpop.f32.mrf.mxu0
        %v4504 = vadd.f32 %v4391, %v4503
        %4505 = vmatmul.f32.gmra.mxu0 %v2112
        %v4506 = vpop.f32.mrf.mxu0
        %v4507 = vadd.f32 %v4394, %v4506
        %4508 = vmatmul.f32.gmra.mxu0 %v2120
        %v4509 = vpop.f32.mrf.mxu0
        %v4510 = vadd.f32 %v4397, %v4509
        %4511 = vmatmul.f32.gmra.mxu0 %v2128
        %v4512 = vpop.f32.mrf.mxu0
        %v4513 = vadd.f32 %v4400, %v4512
        %4514 = vmatmul.f32.gmra.mxu0 %v2136
        %v4515 = vpop.f32.mrf.mxu0
        %v4516 = vadd.f32 %v4403, %v4515
        %4517 = vmatmul.f32.gmra.mxu0 %v2144
        %v4518 = vpop.f32.mrf.mxu0
        %v4519 = vadd.f32 %v4406, %v4518
        %4520 = vdwg.mxu0
        %4521 = vmatpush.msra.mxu0 %v1762
        %4522 = vmatpush.msra.mxu0 %v1758
        %4523 = vmatpush.msra.mxu0 %v1754
        %4524 = vmatpush.msra.mxu0 %v1750
        %4525 = vmatpush.msra.mxu0 %v1746
        %4526 = vmatpush.msra.mxu0 %v1742
        %4527 = vmatpush.msra.mxu0 %v1738
        %4528 = vmatpush.msra.mxu0 %v1734
        %4529 = vmatpush.msra.mxu0 %v1730
        %4530 = vmatpush.msra.mxu0 %v1726
        %4531 = vmatpush.msra.mxu0 %v1722
        %4532 = vmatpush.msra.mxu0 %v1718
        %4533 = vmatpush.msra.mxu0 %v1714
        %4534 = vmatpush.msra.mxu0 %v1710
        %4535 = vmatpush.msra.mxu0 %v1706
        %4536 = vmatpush.msra.mxu0 %v1702
        %4537 = vmatmul.f32.gmra.mxu0 %v1897
        %v4538 = vpop.f32.mrf.mxu0
        %v4539 = vadd.f32 %v4426, %v4538
        %4540 = vmatmul.f32.gmra.mxu0 %v1905
        %v4541 = vpop.f32.mrf.mxu0
        %v4542 = vadd.f32 %v4429, %v4541
        %4543 = vmatmul.f32.gmra.mxu0 %v1913
        %v4544 = vpop.f32.mrf.mxu0
        %v4545 = vadd.f32 %v4432, %v4544
        %4546 = vmatmul.f32.gmra.mxu0 %v1921
        %v4547 = vpop.f32.mrf.mxu0
        %v4548 = vadd.f32 %v4435, %v4547
        %4549 = vmatmul.f32.gmra.mxu0 %v1929
        %v4550 = vpop.f32.mrf.mxu0
        %v4551 = vadd.f32 %v4438, %v4550
        %4552 = vmatmul.f32.gmra.mxu0 %v1937
        %v4553 = vpop.f32.mrf.mxu0
        %v4554 = vadd.f32 %v4441, %v4553
        %4555 = vmatmul.f32.gmra.mxu0 %v1945
        %v4556 = vpop.f32.mrf.mxu0
        %v4557 = vadd.f32 %v4444, %v4556
        %4558 = vmatmul.f32.gmra.mxu0 %v1953
        %v4559 = vpop.f32.mrf.mxu0
        %v4560 = vadd.f32 %v4447, %v4559
        %4561 = vmatmul.f32.gmra.mxu0 %v1961
        %v4562 = vpop.f32.mrf.mxu0
        %v4563 = vadd.f32 %v4450, %v4562
        %4564 = vmatmul.f32.gmra.mxu0 %v1969
        %v4565 = vpop.f32.mrf.mxu0
        %v4566 = vadd.f32 %v4453, %v4565
        %4567 = vmatmul.f32.gmra.mxu0 %v1977
        %v4568 = vpop.f32.mrf.mxu0
        %v4569 = vadd.f32 %v4456, %v4568
        %4570 = vmatmul.f32.gmra.mxu0 %v1985
        %v4571 = vpop.f32.mrf.mxu0
        %v4572 = vadd.f32 %v4459, %v4571
        %4573 = vmatmul.f32.gmra.mxu0 %v1993
        %v4574 = vpop.f32.mrf.mxu0
        %v4575 = vadd.f32 %v4462, %v4574
        %4576 = vmatmul.f32.gmra.mxu0 %v2001
        %v4577 = vpop.f32.mrf.mxu0
        %v4578 = vadd.f32 %v4465, %v4577
        %4579 = vmatmul.f32.gmra.mxu0 %v2009
        %v4580 = vpop.f32.mrf.mxu0
        %v4581 = vadd.f32 %v4468, %v4580
        %4582 = vmatmul.f32.gmra.mxu0 %v2017
        %v4583 = vpop.f32.mrf.mxu0
        %v4584 = vadd.f32 %v4471, %v4583
        %4585 = vmatmul.f32.gmra.mxu0 %v2025
        %v4586 = vpop.f32.mrf.mxu0
        %v4587 = vadd.f32 %v4474, %v4586
        %4588 = vmatmul.f32.gmra.mxu0 %v2033
        %v4589 = vpop.f32.mrf.mxu0
        %v4590 = vadd.f32 %v4477, %v4589
        %4591 = vmatmul.f32.gmra.mxu0 %v2041
        %v4592 = vpop.f32.mrf.mxu0
        %v4593 = vadd.f32 %v4480, %v4592
        %4594 = vmatmul.f32.gmra.mxu0 %v2049
        %v4595 = vpop.f32.mrf.mxu0
        %v4596 = vadd.f32 %v4483, %v4595
        %4597 = vmatmul.f32.gmra.mxu0 %v2057
        %v4598 = vpop.f32.mrf.mxu0
        %v4599 = vadd.f32 %v4486, %v4598
        %4600 = vmatmul.f32.gmra.mxu0 %v2065
        %v4601 = vpop.f32.mrf.mxu0
        %v4602 = vadd.f32 %v4489, %v4601
        %4603 = vmatmul.f32.gmra.mxu0 %v2073
        %v4604 = vpop.f32.mrf.mxu0
        %v4605 = vadd.f32 %v4492, %v4604
        %4606 = vmatmul.f32.gmra.mxu0 %v2081
        %v4607 = vpop.f32.mrf.mxu0
        %v4608 = vadd.f32 %v4495, %v4607
        %4609 = vmatmul.f32.gmra.mxu0 %v2089
        %v4610 = vpop.f32.mrf.mxu0
        %v4611 = vadd.f32 %v4498, %v4610
        %4612 = vmatmul.f32.gmra.mxu0 %v2097
        %v4613 = vpop.f32.mrf.mxu0
        %v4614 = vadd.f32 %v4501, %v4613
        %4615 = vmatmul.f32.gmra.mxu0 %v2105
        %v4616 = vpop.f32.mrf.mxu0
        %v4617 = vadd.f32 %v4504, %v4616
        %4618 = vmatmul.f32.gmra.mxu0 %v2113
        %v4619 = vpop.f32.mrf.mxu0
        %v4620 = vadd.f32 %v4507, %v4619
        %4621 = vmatmul.f32.gmra.mxu0 %v2121
        %v4622 = vpop.f32.mrf.mxu0
        %v4623 = vadd.f32 %v4510, %v4622
        %4624 = vmatmul.f32.gmra.mxu0 %v2129
        %v4625 = vpop.f32.mrf.mxu0
        %v4626 = vadd.f32 %v4513, %v4625
        %4627 = vmatmul.f32.gmra.mxu0 %v2137
        %v4628 = vpop.f32.mrf.mxu0
        %v4629 = vadd.f32 %v4516, %v4628
        %4630 = vmatmul.f32.gmra.mxu0 %v2145
        %v4631 = vpop.f32.mrf.mxu0
        %v4632 = vadd.f32 %v4519, %v4631
        %4633 = vdwg.mxu0
        %4634 = vmatpush.msra.mxu0 %v1826
        %4635 = vmatpush.msra.mxu0 %v1822
        %4636 = vmatpush.msra.mxu0 %v1818
        %4637 = vmatpush.msra.mxu0 %v1814
        %4638 = vmatpush.msra.mxu0 %v1810
        %4639 = vmatpush.msra.mxu0 %v1806
        %4640 = vmatpush.msra.mxu0 %v1802
        %4641 = vmatpush.msra.mxu0 %v1798
        %4642 = vmatpush.msra.mxu0 %v1794
        %4643 = vmatpush.msra.mxu0 %v1790
        %4644 = vmatpush.msra.mxu0 %v1786
        %4645 = vmatpush.msra.mxu0 %v1782
        %4646 = vmatpush.msra.mxu0 %v1778
        %4647 = vmatpush.msra.mxu0 %v1774
        %4648 = vmatpush.msra.mxu0 %v1770
        %4649 = vmatpush.msra.mxu0 %v1766
        %4650 = vmatmul.f32.gmra.mxu0 %v1898
        %v4651 = vpop.f32.mrf.mxu0
        %v4652 = vadd.f32 %v4539, %v4651
        %4653 = vmatmul.f32.gmra.mxu0 %v1906
        %v4654 = vpop.f32.mrf.mxu0
        %v4655 = vadd.f32 %v4542, %v4654
        %4656 = vmatmul.f32.gmra.mxu0 %v1914
        %v4657 = vpop.f32.mrf.mxu0
        %v4658 = vadd.f32 %v4545, %v4657
        %4659 = vmatmul.f32.gmra.mxu0 %v1922
        %v4660 = vpop.f32.mrf.mxu0
        %v4661 = vadd.f32 %v4548, %v4660
        %4662 = vmatmul.f32.gmra.mxu0 %v1930
        %v4663 = vpop.f32.mrf.mxu0
        %v4664 = vadd.f32 %v4551, %v4663
        %4665 = vmatmul.f32.gmra.mxu0 %v1938
        %v4666 = vpop.f32.mrf.mxu0
        %v4667 = vadd.f32 %v4554, %v4666
        %4668 = vmatmul.f32.gmra.mxu0 %v1946
        %v4669 = vpop.f32.mrf.mxu0
        %v4670 = vadd.f32 %v4557, %v4669
        %4671 = vmatmul.f32.gmra.mxu0 %v1954
        %v4672 = vpop.f32.mrf.mxu0
        %v4673 = vadd.f32 %v4560, %v4672
        %4674 = vmatmul.f32.gmra.mxu0 %v1962
        %v4675 = vpop.f32.mrf.mxu0
        %v4676 = vadd.f32 %v4563, %v4675
        %4677 = vmatmul.f32.gmra.mxu0 %v1970
        %v4678 = vpop.f32.mrf.mxu0
        %v4679 = vadd.f32 %v4566, %v4678
        %4680 = vmatmul.f32.gmra.mxu0 %v1978
        %v4681 = vpop.f32.mrf.mxu0
        %v4682 = vadd.f32 %v4569, %v4681
        %4683 = vmatmul.f32.gmra.mxu0 %v1986
        %v4684 = vpop.f32.mrf.mxu0
        %v4685 = vadd.f32 %v4572, %v4684
        %4686 = vmatmul.f32.gmra.mxu0 %v1994
        %v4687 = vpop.f32.mrf.mxu0
        %v4688 = vadd.f32 %v4575, %v4687
        %4689 = vmatmul.f32.gmra.mxu0 %v2002
        %v4690 = vpop.f32.mrf.mxu0
        %v4691 = vadd.f32 %v4578, %v4690
        %4692 = vmatmul.f32.gmra.mxu0 %v2010
        %v4693 = vpop.f32.mrf.mxu0
        %v4694 = vadd.f32 %v4581, %v4693
        %4695 = vmatmul.f32.gmra.mxu0 %v2018
        %v4696 = vpop.f32.mrf.mxu0
        %v4697 = vadd.f32 %v4584, %v4696
        %4698 = vmatmul.f32.gmra.mxu0 %v2026
        %v4699 = vpop.f32.mrf.mxu0
        %v4700 = vadd.f32 %v4587, %v4699
        %4701 = vmatmul.f32.gmra.mxu0 %v2034
        %v4702 = vpop.f32.mrf.mxu0
        %v4703 = vadd.f32 %v4590, %v4702
        %4704 = vmatmul.f32.gmra.mxu0 %v2042
        %v4705 = vpop.f32.mrf.mxu0
        %v4706 = vadd.f32 %v4593, %v4705
        %4707 = vmatmul.f32.gmra.mxu0 %v2050
        %v4708 = vpop.f32.mrf.mxu0
        %v4709 = vadd.f32 %v4596, %v4708
        %4710 = vmatmul.f32.gmra.mxu0 %v2058
        %v4711 = vpop.f32.mrf.mxu0
        %v4712 = vadd.f32 %v4599, %v4711
        %4713 = vmatmul.f32.gmra.mxu0 %v2066
        %v4714 = vpop.f32.mrf.mxu0
        %v4715 = vadd.f32 %v4602, %v4714
        %4716 = vmatmul.f32.gmra.mxu0 %v2074
        %v4717 = vpop.f32.mrf.mxu0
        %v4718 = vadd.f32 %v4605, %v4717
        %4719 = vmatmul.f32.gmra.mxu0 %v2082
        %v4720 = vpop.f32.mrf.mxu0
        %v4721 = vadd.f32 %v4608, %v4720
        %4722 = vmatmul.f32.gmra.mxu0 %v2090
        %v4723 = vpop.f32.mrf.mxu0
        %v4724 = vadd.f32 %v4611, %v4723
        %4725 = vmatmul.f32.gmra.mxu0 %v2098
        %v4726 = vpop.f32.mrf.mxu0
        %v4727 = vadd.f32 %v4614, %v4726
        %4728 = vmatmul.f32.gmra.mxu0 %v2106
        %v4729 = vpop.f32.mrf.mxu0
        %v4730 = vadd.f32 %v4617, %v4729
        %4731 = vmatmul.f32.gmra.mxu0 %v2114
        %v4732 = vpop.f32.mrf.mxu0
        %v4733 = vadd.f32 %v4620, %v4732
        %4734 = vmatmul.f32.gmra.mxu0 %v2122
        %v4735 = vpop.f32.mrf.mxu0
        %v4736 = vadd.f32 %v4623, %v4735
        %4737 = vmatmul.f32.gmra.mxu0 %v2130
        %v4738 = vpop.f32.mrf.mxu0
        %v4739 = vadd.f32 %v4626, %v4738
        %4740 = vmatmul.f32.gmra.mxu0 %v2138
        %v4741 = vpop.f32.mrf.mxu0
        %v4742 = vadd.f32 %v4629, %v4741
        %4743 = vmatmul.f32.gmra.mxu0 %v2146
        %v4744 = vpop.f32.mrf.mxu0
        %v4745 = vadd.f32 %v4632, %v4744
        %4746 = vdwg.mxu0
        %4747 = vmatpush.msra.mxu0 %v1890
        %4748 = vmatpush.msra.mxu0 %v1886
        %4749 = vmatpush.msra.mxu0 %v1882
        %4750 = vmatpush.msra.mxu0 %v1878
        %4751 = vmatpush.msra.mxu0 %v1874
        %4752 = vmatpush.msra.mxu0 %v1870
        %4753 = vmatpush.msra.mxu0 %v1866
        %4754 = vmatpush.msra.mxu0 %v1862
        %4755 = vmatpush.msra.mxu0 %v1858
        %4756 = vmatpush.msra.mxu0 %v1854
        %4757 = vmatpush.msra.mxu0 %v1850
        %4758 = vmatpush.msra.mxu0 %v1846
        %4759 = vmatpush.msra.mxu0 %v1842
        %4760 = vmatpush.msra.mxu0 %v1838
        %4761 = vmatpush.msra.mxu0 %v1834
        %4762 = vmatpush.msra.mxu0 %v1830
        %4763 = vmatmul.f32.gmra.mxu0 %v1899
        %v4764 = vpop.f32.mrf.mxu0
        %v4765 = vadd.f32 %v4652, %v4764
        %4766 = vmatmul.f32.gmra.mxu0 %v1907
        %v4767 = vpop.f32.mrf.mxu0
        %v4768 = vadd.f32 %v4655, %v4767
        %4769 = vmatmul.f32.gmra.mxu0 %v1915
        %v4770 = vpop.f32.mrf.mxu0
        %v4771 = vadd.f32 %v4658, %v4770
        %4772 = vmatmul.f32.gmra.mxu0 %v1923
        %v4773 = vpop.f32.mrf.mxu0
        %v4774 = vadd.f32 %v4661, %v4773
        %4775 = vmatmul.f32.gmra.mxu0 %v1931
        %v4776 = vpop.f32.mrf.mxu0
        %v4777 = vadd.f32 %v4664, %v4776
        %4778 = vmatmul.f32.gmra.mxu0 %v1939
        %v4779 = vpop.f32.mrf.mxu0
        %v4780 = vadd.f32 %v4667, %v4779
        %4781 = vmatmul.f32.gmra.mxu0 %v1947
        %v4782 = vpop.f32.mrf.mxu0
        %v4783 = vadd.f32 %v4670, %v4782
        %4784 = vmatmul.f32.gmra.mxu0 %v1955
        %v4785 = vpop.f32.mrf.mxu0
        %v4786 = vadd.f32 %v4673, %v4785
        %4787 = vmatmul.f32.gmra.mxu0 %v1963
        %v4788 = vpop.f32.mrf.mxu0
        %v4789 = vadd.f32 %v4676, %v4788
        %4790 = vmatmul.f32.gmra.mxu0 %v1971
        %v4791 = vpop.f32.mrf.mxu0
        %v4792 = vadd.f32 %v4679, %v4791
        %4793 = vmatmul.f32.gmra.mxu0 %v1979
        %v4794 = vpop.f32.mrf.mxu0
        %v4795 = vadd.f32 %v4682, %v4794
        %4796 = vmatmul.f32.gmra.mxu0 %v1987
        %v4797 = vpop.f32.mrf.mxu0
        %v4798 = vadd.f32 %v4685, %v4797
        %4799 = vmatmul.f32.gmra.mxu0 %v1995
        %v4800 = vpop.f32.mrf.mxu0
        %v4801 = vadd.f32 %v4688, %v4800
        %4802 = vmatmul.f32.gmra.mxu0 %v2003
        %v4803 = vpop.f32.mrf.mxu0
        %v4804 = vadd.f32 %v4691, %v4803
        %4805 = vmatmul.f32.gmra.mxu0 %v2011
        %v4806 = vpop.f32.mrf.mxu0
        %v4807 = vadd.f32 %v4694, %v4806
        %4808 = vmatmul.f32.gmra.mxu0 %v2019
        %v4809 = vpop.f32.mrf.mxu0
        %v4810 = vadd.f32 %v4697, %v4809
        %4811 = vmatmul.f32.gmra.mxu0 %v2027
        %v4812 = vpop.f32.mrf.mxu0
        %v4813 = vadd.f32 %v4700, %v4812
        %4814 = vmatmul.f32.gmra.mxu0 %v2035
        %v4815 = vpop.f32.mrf.mxu0
        %v4816 = vadd.f32 %v4703, %v4815
        %4817 = vmatmul.f32.gmra.mxu0 %v2043
        %v4818 = vpop.f32.mrf.mxu0
        %v4819 = vadd.f32 %v4706, %v4818
        %4820 = vmatmul.f32.gmra.mxu0 %v2051
        %v4821 = vpop.f32.mrf.mxu0
        %v4822 = vadd.f32 %v4709, %v4821
        %4823 = vmatmul.f32.gmra.mxu0 %v2059
        %v4824 = vpop.f32.mrf.mxu0
        %v4825 = vadd.f32 %v4712, %v4824
        %4826 = vmatmul.f32.gmra.mxu0 %v2067
        %v4827 = vpop.f32.mrf.mxu0
        %v4828 = vadd.f32 %v4715, %v4827
        %4829 = vmatmul.f32.gmra.mxu0 %v2075
        %v4830 = vpop.f32.mrf.mxu0
        %v4831 = vadd.f32 %v4718, %v4830
        %4832 = vmatmul.f32.gmra.mxu0 %v2083
        %v4833 = vpop.f32.mrf.mxu0
        %v4834 = vadd.f32 %v4721, %v4833
        %4835 = vmatmul.f32.gmra.mxu0 %v2091
        %v4836 = vpop.f32.mrf.mxu0
        %v4837 = vadd.f32 %v4724, %v4836
        %4838 = vmatmul.f32.gmra.mxu0 %v2099
        %v4839 = vpop.f32.mrf.mxu0
        %v4840 = vadd.f32 %v4727, %v4839
        %4841 = vmatmul.f32.gmra.mxu0 %v2107
        %v4842 = vpop.f32.mrf.mxu0
        %v4843 = vadd.f32 %v4730, %v4842
        %4844 = vmatmul.f32.gmra.mxu0 %v2115
        %v4845 = vpop.f32.mrf.mxu0
        %v4846 = vadd.f32 %v4733, %v4845
        %4847 = vmatmul.f32.gmra.mxu0 %v2123
        %v4848 = vpop.f32.mrf.mxu0
        %v4849 = vadd.f32 %v4736, %v4848
        %4850 = vmatmul.f32.gmra.mxu0 %v2131
        %v4851 = vpop.f32.mrf.mxu0
        %v4852 = vadd.f32 %v4739, %v4851
        %4853 = vmatmul.f32.gmra.mxu0 %v2139
        %v4854 = vpop.f32.mrf.mxu0
        %v4855 = vadd.f32 %v4742, %v4854
        %4856 = vmatmul.f32.gmra.mxu0 %v2147
        %v4857 = vpop.f32.mrf.mxu0
        %v4858 = vadd.f32 %v4745, %v4857
        %4859 = vdwg.mxu0
        %4860 = vmatpush.msra.mxu0 %v1443
        %4861 = vmatpush.msra.mxu0 %v1439
        %4862 = vmatpush.msra.mxu0 %v1435
        %4863 = vmatpush.msra.mxu0 %v1431
        %4864 = vmatpush.msra.mxu0 %v1427
        %4865 = vmatpush.msra.mxu0 %v1423
        %4866 = vmatpush.msra.mxu0 %v1419
        %4867 = vmatpush.msra.mxu0 %v1415
        %4868 = vmatpush.msra.mxu0 %v1411
        %4869 = vmatpush.msra.mxu0 %v1407
        %4870 = vmatpush.msra.mxu0 %v1403
        %4871 = vmatpush.msra.mxu0 %v1399
        %4872 = vmatpush.msra.mxu0 %v1395
        %4873 = vmatpush.msra.mxu0 %v1391
        %4874 = vmatpush.msra.mxu0 %v1387
        %4875 = vmatpush.msra.mxu0 %v1383
        %4876 = vmatmul.f32.gmra.mxu0 %v1892
        %v4877 = vpop.f32.mrf.mxu0
        %v4878 = vadd.f32 0.0, %v4877
        %4879 = vmatmul.f32.gmra.mxu0 %v1900
        %v4880 = vpop.f32.mrf.mxu0
        %v4881 = vadd.f32 0.0, %v4880
        %4882 = vmatmul.f32.gmra.mxu0 %v1908
        %v4883 = vpop.f32.mrf.mxu0
        %v4884 = vadd.f32 0.0, %v4883
        %4885 = vmatmul.f32.gmra.mxu0 %v1916
        %v4886 = vpop.f32.mrf.mxu0
        %v4887 = vadd.f32 0.0, %v4886
        %4888 = vmatmul.f32.gmra.mxu0 %v1924
        %v4889 = vpop.f32.mrf.mxu0
        %v4890 = vadd.f32 0.0, %v4889
        %4891 = vmatmul.f32.gmra.mxu0 %v1932
        %v4892 = vpop.f32.mrf.mxu0
        %v4893 = vadd.f32 0.0, %v4892
        %4894 = vmatmul.f32.gmra.mxu0 %v1940
        %v4895 = vpop.f32.mrf.mxu0
        %v4896 = vadd.f32 0.0, %v4895
        %4897 = vmatmul.f32.gmra.mxu0 %v1948
        %v4898 = vpop.f32.mrf.mxu0
        %v4899 = vadd.f32 0.0, %v4898
        %4900 = vmatmul.f32.gmra.mxu0 %v1956
        %v4901 = vpop.f32.mrf.mxu0
        %v4902 = vadd.f32 0.0, %v4901
        %4903 = vmatmul.f32.gmra.mxu0 %v1964
        %v4904 = vpop.f32.mrf.mxu0
        %v4905 = vadd.f32 0.0, %v4904
        %4906 = vmatmul.f32.gmra.mxu0 %v1972
        %v4907 = vpop.f32.mrf.mxu0
        %v4908 = vadd.f32 0.0, %v4907
        %4909 = vmatmul.f32.gmra.mxu0 %v1980
        %v4910 = vpop.f32.mrf.mxu0
        %v4911 = vadd.f32 0.0, %v4910
        %4912 = vmatmul.f32.gmra.mxu0 %v1988
        %v4913 = vpop.f32.mrf.mxu0
        %v4914 = vadd.f32 0.0, %v4913
        %4915 = vmatmul.f32.gmra.mxu0 %v1996
        %v4916 = vpop.f32.mrf.mxu0
        %v4917 = vadd.f32 0.0, %v4916
        %4918 = vmatmul.f32.gmra.mxu0 %v2004
        %v4919 = vpop.f32.mrf.mxu0
        %v4920 = vadd.f32 0.0, %v4919
        %4921 = vmatmul.f32.gmra.mxu0 %v2012
        %v4922 = vpop.f32.mrf.mxu0
        %v4923 = vadd.f32 0.0, %v4922
        %4924 = vmatmul.f32.gmra.mxu0 %v2020
        %v4925 = vpop.f32.mrf.mxu0
        %v4926 = vadd.f32 0.0, %v4925
        %4927 = vmatmul.f32.gmra.mxu0 %v2028
        %v4928 = vpop.f32.mrf.mxu0
        %v4929 = vadd.f32 0.0, %v4928
        %4930 = vmatmul.f32.gmra.mxu0 %v2036
        %v4931 = vpop.f32.mrf.mxu0
        %v4932 = vadd.f32 0.0, %v4931
        %4933 = vmatmul.f32.gmra.mxu0 %v2044
        %v4934 = vpop.f32.mrf.mxu0
        %v4935 = vadd.f32 0.0, %v4934
        %4936 = vmatmul.f32.gmra.mxu0 %v2052
        %v4937 = vpop.f32.mrf.mxu0
        %v4938 = vadd.f32 0.0, %v4937
        %4939 = vmatmul.f32.gmra.mxu0 %v2060
        %v4940 = vpop.f32.mrf.mxu0
        %v4941 = vadd.f32 0.0, %v4940
        %4942 = vmatmul.f32.gmra.mxu0 %v2068
        %v4943 = vpop.f32.mrf.mxu0
        %v4944 = vadd.f32 0.0, %v4943
        %4945 = vmatmul.f32.gmra.mxu0 %v2076
        %v4946 = vpop.f32.mrf.mxu0
        %v4947 = vadd.f32 0.0, %v4946
        %4948 = vmatmul.f32.gmra.mxu0 %v2084
        %v4949 = vpop.f32.mrf.mxu0
        %v4950 = vadd.f32 0.0, %v4949
        %4951 = vmatmul.f32.gmra.mxu0 %v2092
        %v4952 = vpop.f32.mrf.mxu0
        %v4953 = vadd.f32 0.0, %v4952
        %4954 = vmatmul.f32.gmra.mxu0 %v2100
        %v4955 = vpop.f32.mrf.mxu0
        %v4956 = vadd.f32 0.0, %v4955
        %4957 = vmatmul.f32.gmra.mxu0 %v2108
        %v4958 = vpop.f32.mrf.mxu0
        %v4959 = vadd.f32 0.0, %v4958
        %4960 = vmatmul.f32.gmra.mxu0 %v2116
        %v4961 = vpop.f32.mrf.mxu0
        %v4962 = vadd.f32 0.0, %v4961
        %4963 = vmatmul.f32.gmra.mxu0 %v2124
        %v4964 = vpop.f32.mrf.mxu0
        %v4965 = vadd.f32 0.0, %v4964
        %4966 = vmatmul.f32.gmra.mxu0 %v2132
        %v4967 = vpop.f32.mrf.mxu0
        %v4968 = vadd.f32 0.0, %v4967
        %4969 = vmatmul.f32.gmra.mxu0 %v2140
        %v4970 = vpop.f32.mrf.mxu0
        %v4971 = vadd.f32 0.0, %v4970
        %4972 = vdwg.mxu0
        %4973 = vmatpush.msra.mxu0 %v1507
        %4974 = vmatpush.msra.mxu0 %v1503
        %4975 = vmatpush.msra.mxu0 %v1499
        %4976 = vmatpush.msra.mxu0 %v1495
        %4977 = vmatpush.msra.mxu0 %v1491
        %4978 = vmatpush.msra.mxu0 %v1487
        %4979 = vmatpush.msra.mxu0 %v1483
        %4980 = vmatpush.msra.mxu0 %v1479
        %4981 = vmatpush.msra.mxu0 %v1475
        %4982 = vmatpush.msra.mxu0 %v1471
        %4983 = vmatpush.msra.mxu0 %v1467
        %4984 = vmatpush.msra.mxu0 %v1463
        %4985 = vmatpush.msra.mxu0 %v1459
        %4986 = vmatpush.msra.mxu0 %v1455
        %4987 = vmatpush.msra.mxu0 %v1451
        %4988 = vmatpush.msra.mxu0 %v1447
        %4989 = vmatmul.f32.gmra.mxu0 %v1893
        %v4990 = vpop.f32.mrf.mxu0
        %v4991 = vadd.f32 %v4878, %v4990
        %4992 = vmatmul.f32.gmra.mxu0 %v1901
        %v4993 = vpop.f32.mrf.mxu0
        %v4994 = vadd.f32 %v4881, %v4993
        %4995 = vmatmul.f32.gmra.mxu0 %v1909
        %v4996 = vpop.f32.mrf.mxu0
        %v4997 = vadd.f32 %v4884, %v4996
        %4998 = vmatmul.f32.gmra.mxu0 %v1917
        %v4999 = vpop.f32.mrf.mxu0
        %v5000 = vadd.f32 %v4887, %v4999
        %5001 = vmatmul.f32.gmra.mxu0 %v1925
        %v5002 = vpop.f32.mrf.mxu0
        %v5003 = vadd.f32 %v4890, %v5002
        %5004 = vmatmul.f32.gmra.mxu0 %v1933
        %v5005 = vpop.f32.mrf.mxu0
        %v5006 = vadd.f32 %v4893, %v5005
        %5007 = vmatmul.f32.gmra.mxu0 %v1941
        %v5008 = vpop.f32.mrf.mxu0
        %v5009 = vadd.f32 %v4896, %v5008
        %5010 = vmatmul.f32.gmra.mxu0 %v1949
        %v5011 = vpop.f32.mrf.mxu0
        %v5012 = vadd.f32 %v4899, %v5011
        %5013 = vmatmul.f32.gmra.mxu0 %v1957
        %v5014 = vpop.f32.mrf.mxu0
        %v5015 = vadd.f32 %v4902, %v5014
        %5016 = vmatmul.f32.gmra.mxu0 %v1965
        %v5017 = vpop.f32.mrf.mxu0
        %v5018 = vadd.f32 %v4905, %v5017
        %5019 = vmatmul.f32.gmra.mxu0 %v1973
        %v5020 = vpop.f32.mrf.mxu0
        %v5021 = vadd.f32 %v4908, %v5020
        %5022 = vmatmul.f32.gmra.mxu0 %v1981
        %v5023 = vpop.f32.mrf.mxu0
        %v5024 = vadd.f32 %v4911, %v5023
        %5025 = vmatmul.f32.gmra.mxu0 %v1989
        %v5026 = vpop.f32.mrf.mxu0
        %v5027 = vadd.f32 %v4914, %v5026
        %5028 = vmatmul.f32.gmra.mxu0 %v1997
        %v5029 = vpop.f32.mrf.mxu0
        %v5030 = vadd.f32 %v4917, %v5029
        %5031 = vmatmul.f32.gmra.mxu0 %v2005
        %v5032 = vpop.f32.mrf.mxu0
        %v5033 = vadd.f32 %v4920, %v5032
        %5034 = vmatmul.f32.gmra.mxu0 %v2013
        %v5035 = vpop.f32.mrf.mxu0
        %v5036 = vadd.f32 %v4923, %v5035
        %5037 = vmatmul.f32.gmra.mxu0 %v2021
        %v5038 = vpop.f32.mrf.mxu0
        %v5039 = vadd.f32 %v4926, %v5038
        %5040 = vmatmul.f32.gmra.mxu0 %v2029
        %v5041 = vpop.f32.mrf.mxu0
        %v5042 = vadd.f32 %v4929, %v5041
        %5043 = vmatmul.f32.gmra.mxu0 %v2037
        %v5044 = vpop.f32.mrf.mxu0
        %v5045 = vadd.f32 %v4932, %v5044
        %5046 = vmatmul.f32.gmra.mxu0 %v2045
        %v5047 = vpop.f32.mrf.mxu0
        %v5048 = vadd.f32 %v4935, %v5047
        %5049 = vmatmul.f32.gmra.mxu0 %v2053
        %v5050 = vpop.f32.mrf.mxu0
        %v5051 = vadd.f32 %v4938, %v5050
        %5052 = vmatmul.f32.gmra.mxu0 %v2061
        %v5053 = vpop.f32.mrf.mxu0
        %v5054 = vadd.f32 %v4941, %v5053
        %5055 = vmatmul.f32.gmra.mxu0 %v2069
        %v5056 = vpop.f32.mrf.mxu0
        %v5057 = vadd.f32 %v4944, %v5056
        %5058 = vmatmul.f32.gmra.mxu0 %v2077
        %v5059 = vpop.f32.mrf.mxu0
        %v5060 = vadd.f32 %v4947, %v5059
        %5061 = vmatmul.f32.gmra.mxu0 %v2085
        %v5062 = vpop.f32.mrf.mxu0
        %v5063 = vadd.f32 %v4950, %v5062
        %5064 = vmatmul.f32.gmra.mxu0 %v2093
        %v5065 = vpop.f32.mrf.mxu0
        %v5066 = vadd.f32 %v4953, %v5065
        %5067 = vmatmul.f32.gmra.mxu0 %v2101
        %v5068 = vpop.f32.mrf.mxu0
        %v5069 = vadd.f32 %v4956, %v5068
        %5070 = vmatmul.f32.gmra.mxu0 %v2109
        %v5071 = vpop.f32.mrf.mxu0
        %v5072 = vadd.f32 %v4959, %v5071
        %5073 = vmatmul.f32.gmra.mxu0 %v2117
        %v5074 = vpop.f32.mrf.mxu0
        %v5075 = vadd.f32 %v4962, %v5074
        %5076 = vmatmul.f32.gmra.mxu0 %v2125
        %v5077 = vpop.f32.mrf.mxu0
        %v5078 = vadd.f32 %v4965, %v5077
        %5079 = vmatmul.f32.gmra.mxu0 %v2133
        %v5080 = vpop.f32.mrf.mxu0
        %v5081 = vadd.f32 %v4968, %v5080
        %5082 = vmatmul.f32.gmra.mxu0 %v2141
        %v5083 = vpop.f32.mrf.mxu0
        %v5084 = vadd.f32 %v4971, %v5083
        %5085 = vdwg.mxu0
        %5086 = vmatpush.msra.mxu0 %v1571
        %5087 = vmatpush.msra.mxu0 %v1567
        %5088 = vmatpush.msra.mxu0 %v1563
        %5089 = vmatpush.msra.mxu0 %v1559
        %5090 = vmatpush.msra.mxu0 %v1555
        %5091 = vmatpush.msra.mxu0 %v1551
        %5092 = vmatpush.msra.mxu0 %v1547
        %5093 = vmatpush.msra.mxu0 %v1543
        %5094 = vmatpush.msra.mxu0 %v1539
        %5095 = vmatpush.msra.mxu0 %v1535
        %5096 = vmatpush.msra.mxu0 %v1531
        %5097 = vmatpush.msra.mxu0 %v1527
        %5098 = vmatpush.msra.mxu0 %v1523
        %5099 = vmatpush.msra.mxu0 %v1519
        %5100 = vmatpush.msra.mxu0 %v1515
        %5101 = vmatpush.msra.mxu0 %v1511
        %5102 = vmatmul.f32.gmra.mxu0 %v1894
        %v5103 = vpop.f32.mrf.mxu0
        %v5104 = vadd.f32 %v4991, %v5103
        %5105 = vmatmul.f32.gmra.mxu0 %v1902
        %v5106 = vpop.f32.mrf.mxu0
        %v5107 = vadd.f32 %v4994, %v5106
        %5108 = vmatmul.f32.gmra.mxu0 %v1910
        %v5109 = vpop.f32.mrf.mxu0
        %v5110 = vadd.f32 %v4997, %v5109
        %5111 = vmatmul.f32.gmra.mxu0 %v1918
        %v5112 = vpop.f32.mrf.mxu0
        %v5113 = vadd.f32 %v5000, %v5112
        %5114 = vmatmul.f32.gmra.mxu0 %v1926
        %v5115 = vpop.f32.mrf.mxu0
        %v5116 = vadd.f32 %v5003, %v5115
        %5117 = vmatmul.f32.gmra.mxu0 %v1934
        %v5118 = vpop.f32.mrf.mxu0
        %v5119 = vadd.f32 %v5006, %v5118
        %5120 = vmatmul.f32.gmra.mxu0 %v1942
        %v5121 = vpop.f32.mrf.mxu0
        %v5122 = vadd.f32 %v5009, %v5121
        %5123 = vmatmul.f32.gmra.mxu0 %v1950
        %v5124 = vpop.f32.mrf.mxu0
        %v5125 = vadd.f32 %v5012, %v5124
        %5126 = vmatmul.f32.gmra.mxu0 %v1958
        %v5127 = vpop.f32.mrf.mxu0
        %v5128 = vadd.f32 %v5015, %v5127
        %5129 = vmatmul.f32.gmra.mxu0 %v1966
        %v5130 = vpop.f32.mrf.mxu0
        %v5131 = vadd.f32 %v5018, %v5130
        %5132 = vmatmul.f32.gmra.mxu0 %v1974
        %v5133 = vpop.f32.mrf.mxu0
        %v5134 = vadd.f32 %v5021, %v5133
        %5135 = vmatmul.f32.gmra.mxu0 %v1982
        %v5136 = vpop.f32.mrf.mxu0
        %v5137 = vadd.f32 %v5024, %v5136
        %5138 = vmatmul.f32.gmra.mxu0 %v1990
        %v5139 = vpop.f32.mrf.mxu0
        %v5140 = vadd.f32 %v5027, %v5139
        %5141 = vmatmul.f32.gmra.mxu0 %v1998
        %v5142 = vpop.f32.mrf.mxu0
        %v5143 = vadd.f32 %v5030, %v5142
        %5144 = vmatmul.f32.gmra.mxu0 %v2006
        %v5145 = vpop.f32.mrf.mxu0
        %v5146 = vadd.f32 %v5033, %v5145
        %5147 = vmatmul.f32.gmra.mxu0 %v2014
        %v5148 = vpop.f32.mrf.mxu0
        %v5149 = vadd.f32 %v5036, %v5148
        %5150 = vmatmul.f32.gmra.mxu0 %v2022
        %v5151 = vpop.f32.mrf.mxu0
        %v5152 = vadd.f32 %v5039, %v5151
        %5153 = vmatmul.f32.gmra.mxu0 %v2030
        %v5154 = vpop.f32.mrf.mxu0
        %v5155 = vadd.f32 %v5042, %v5154
        %5156 = vmatmul.f32.gmra.mxu0 %v2038
        %v5157 = vpop.f32.mrf.mxu0
        %v5158 = vadd.f32 %v5045, %v5157
        %5159 = vmatmul.f32.gmra.mxu0 %v2046
        %v5160 = vpop.f32.mrf.mxu0
        %v5161 = vadd.f32 %v5048, %v5160
        %5162 = vmatmul.f32.gmra.mxu0 %v2054
        %v5163 = vpop.f32.mrf.mxu0
        %v5164 = vadd.f32 %v5051, %v5163
        %5165 = vmatmul.f32.gmra.mxu0 %v2062
        %v5166 = vpop.f32.mrf.mxu0
        %v5167 = vadd.f32 %v5054, %v5166
        %5168 = vmatmul.f32.gmra.mxu0 %v2070
        %v5169 = vpop.f32.mrf.mxu0
        %v5170 = vadd.f32 %v5057, %v5169
        %5171 = vmatmul.f32.gmra.mxu0 %v2078
        %v5172 = vpop.f32.mrf.mxu0
        %v5173 = vadd.f32 %v5060, %v5172
        %5174 = vmatmul.f32.gmra.mxu0 %v2086
        %v5175 = vpop.f32.mrf.mxu0
        %v5176 = vadd.f32 %v5063, %v5175
        %5177 = vmatmul.f32.gmra.mxu0 %v2094
        %v5178 = vpop.f32.mrf.mxu0
        %v5179 = vadd.f32 %v5066, %v5178
        %5180 = vmatmul.f32.gmra.mxu0 %v2102
        %v5181 = vpop.f32.mrf.mxu0
        %v5182 = vadd.f32 %v5069, %v5181
        %5183 = vmatmul.f32.gmra.mxu0 %v2110
        %v5184 = vpop.f32.mrf.mxu0
        %v5185 = vadd.f32 %v5072, %v5184
        %5186 = vmatmul.f32.gmra.mxu0 %v2118
        %v5187 = vpop.f32.mrf.mxu0
        %v5188 = vadd.f32 %v5075, %v5187
        %5189 = vmatmul.f32.gmra.mxu0 %v2126
        %v5190 = vpop.f32.mrf.mxu0
        %v5191 = vadd.f32 %v5078, %v5190
        %5192 = vmatmul.f32.gmra.mxu0 %v2134
        %v5193 = vpop.f32.mrf.mxu0
        %v5194 = vadd.f32 %v5081, %v5193
        %5195 = vmatmul.f32.gmra.mxu0 %v2142
        %v5196 = vpop.f32.mrf.mxu0
        %v5197 = vadd.f32 %v5084, %v5196
        %5198 = vdwg.mxu0
        %5199 = vmatpush.msra.mxu0 %v1635
        %5200 = vmatpush.msra.mxu0 %v1631
        %5201 = vmatpush.msra.mxu0 %v1627
        %5202 = vmatpush.msra.mxu0 %v1623
        %5203 = vmatpush.msra.mxu0 %v1619
        %5204 = vmatpush.msra.mxu0 %v1615
        %5205 = vmatpush.msra.mxu0 %v1611
        %5206 = vmatpush.msra.mxu0 %v1607
        %5207 = vmatpush.msra.mxu0 %v1603
        %5208 = vmatpush.msra.mxu0 %v1599
        %5209 = vmatpush.msra.mxu0 %v1595
        %5210 = vmatpush.msra.mxu0 %v1591
        %5211 = vmatpush.msra.mxu0 %v1587
        %5212 = vmatpush.msra.mxu0 %v1583
        %5213 = vmatpush.msra.mxu0 %v1579
        %5214 = vmatpush.msra.mxu0 %v1575
        %5215 = vmatmul.f32.gmra.mxu0 %v1895
        %v5216 = vpop.f32.mrf.mxu0
        %v5217 = vadd.f32 %v5104, %v5216
        %5218 = vmatmul.f32.gmra.mxu0 %v1903
        %v5219 = vpop.f32.mrf.mxu0
        %v5220 = vadd.f32 %v5107, %v5219
        %5221 = vmatmul.f32.gmra.mxu0 %v1911
        %v5222 = vpop.f32.mrf.mxu0
        %v5223 = vadd.f32 %v5110, %v5222
        %5224 = vmatmul.f32.gmra.mxu0 %v1919
        %v5225 = vpop.f32.mrf.mxu0
        %v5226 = vadd.f32 %v5113, %v5225
        %5227 = vmatmul.f32.gmra.mxu0 %v1927
        %v5228 = vpop.f32.mrf.mxu0
        %v5229 = vadd.f32 %v5116, %v5228
        %5230 = vmatmul.f32.gmra.mxu0 %v1935
        %v5231 = vpop.f32.mrf.mxu0
        %v5232 = vadd.f32 %v5119, %v5231
        %5233 = vmatmul.f32.gmra.mxu0 %v1943
        %v5234 = vpop.f32.mrf.mxu0
        %v5235 = vadd.f32 %v5122, %v5234
        %5236 = vmatmul.f32.gmra.mxu0 %v1951
        %v5237 = vpop.f32.mrf.mxu0
        %v5238 = vadd.f32 %v5125, %v5237
        %5239 = vmatmul.f32.gmra.mxu0 %v1959
        %v5240 = vpop.f32.mrf.mxu0
        %v5241 = vadd.f32 %v5128, %v5240
        %5242 = vmatmul.f32.gmra.mxu0 %v1967
        %v5243 = vpop.f32.mrf.mxu0
        %v5244 = vadd.f32 %v5131, %v5243
        %5245 = vmatmul.f32.gmra.mxu0 %v1975
        %v5246 = vpop.f32.mrf.mxu0
        %v5247 = vadd.f32 %v5134, %v5246
        %5248 = vmatmul.f32.gmra.mxu0 %v1983
        %v5249 = vpop.f32.mrf.mxu0
        %v5250 = vadd.f32 %v5137, %v5249
        %5251 = vmatmul.f32.gmra.mxu0 %v1991
        %v5252 = vpop.f32.mrf.mxu0
        %v5253 = vadd.f32 %v5140, %v5252
        %5254 = vmatmul.f32.gmra.mxu0 %v1999
        %v5255 = vpop.f32.mrf.mxu0
        %v5256 = vadd.f32 %v5143, %v5255
        %5257 = vmatmul.f32.gmra.mxu0 %v2007
        %v5258 = vpop.f32.mrf.mxu0
        %v5259 = vadd.f32 %v5146, %v5258
        %5260 = vmatmul.f32.gmra.mxu0 %v2015
        %v5261 = vpop.f32.mrf.mxu0
        %v5262 = vadd.f32 %v5149, %v5261
        %5263 = vmatmul.f32.gmra.mxu0 %v2023
        %v5264 = vpop.f32.mrf.mxu0
        %v5265 = vadd.f32 %v5152, %v5264
        %5266 = vmatmul.f32.gmra.mxu0 %v2031
        %v5267 = vpop.f32.mrf.mxu0
        %v5268 = vadd.f32 %v5155, %v5267
        %5269 = vmatmul.f32.gmra.mxu0 %v2039
        %v5270 = vpop.f32.mrf.mxu0
        %v5271 = vadd.f32 %v5158, %v5270
        %5272 = vmatmul.f32.gmra.mxu0 %v2047
        %v5273 = vpop.f32.mrf.mxu0
        %v5274 = vadd.f32 %v5161, %v5273
        %5275 = vmatmul.f32.gmra.mxu0 %v2055
        %v5276 = vpop.f32.mrf.mxu0
        %v5277 = vadd.f32 %v5164, %v5276
        %5278 = vmatmul.f32.gmra.mxu0 %v2063
        %v5279 = vpop.f32.mrf.mxu0
        %v5280 = vadd.f32 %v5167, %v5279
        %5281 = vmatmul.f32.gmra.mxu0 %v2071
        %v5282 = vpop.f32.mrf.mxu0
        %v5283 = vadd.f32 %v5170, %v5282
        %5284 = vmatmul.f32.gmra.mxu0 %v2079
        %v5285 = vpop.f32.mrf.mxu0
        %v5286 = vadd.f32 %v5173, %v5285
        %5287 = vmatmul.f32.gmra.mxu0 %v2087
        %v5288 = vpop.f32.mrf.mxu0
        %v5289 = vadd.f32 %v5176, %v5288
        %5290 = vmatmul.f32.gmra.mxu0 %v2095
        %v5291 = vpop.f32.mrf.mxu0
        %v5292 = vadd.f32 %v5179, %v5291
        %5293 = vmatmul.f32.gmra.mxu0 %v2103
        %v5294 = vpop.f32.mrf.mxu0
        %v5295 = vadd.f32 %v5182, %v5294
        %5296 = vmatmul.f32.gmra.mxu0 %v2111
        %v5297 = vpop.f32.mrf.mxu0
        %v5298 = vadd.f32 %v5185, %v5297
        %5299 = vmatmul.f32.gmra.mxu0 %v2119
        %v5300 = vpop.f32.mrf.mxu0
        %v5301 = vadd.f32 %v5188, %v5300
        %5302 = vmatmul.f32.gmra.mxu0 %v2127
        %v5303 = vpop.f32.mrf.mxu0
        %v5304 = vadd.f32 %v5191, %v5303
        %5305 = vmatmul.f32.gmra.mxu0 %v2135
        %v5306 = vpop.f32.mrf.mxu0
        %v5307 = vadd.f32 %v5194, %v5306
        %5308 = vmatmul.f32.gmra.mxu0 %v2143
        %v5309 = vpop.f32.mrf.mxu0
        %v5310 = vadd.f32 %v5197, %v5309
        %5311 = vdwg.mxu0
        %5312 = vmatpush.msra.mxu0 %v1699
        %5313 = vmatpush.msra.mxu0 %v1695
        %5314 = vmatpush.msra.mxu0 %v1691
        %5315 = vmatpush.msra.mxu0 %v1687
        %5316 = vmatpush.msra.mxu0 %v1683
        %5317 = vmatpush.msra.mxu0 %v1679
        %5318 = vmatpush.msra.mxu0 %v1675
        %5319 = vmatpush.msra.mxu0 %v1671
        %5320 = vmatpush.msra.mxu0 %v1667
        %5321 = vmatpush.msra.mxu0 %v1663
        %5322 = vmatpush.msra.mxu0 %v1659
        %5323 = vmatpush.msra.mxu0 %v1655
        %5324 = vmatpush.msra.mxu0 %v1651
        %5325 = vmatpush.msra.mxu0 %v1647
        %5326 = vmatpush.msra.mxu0 %v1643
        %5327 = vmatpush.msra.mxu0 %v1639
        %5328 = vmatmul.f32.gmra.mxu0 %v1896
        %v5329 = vpop.f32.mrf.mxu0
        %v5330 = vadd.f32 %v5217, %v5329
        %5331 = vmatmul.f32.gmra.mxu0 %v1904
        %v5332 = vpop.f32.mrf.mxu0
        %v5333 = vadd.f32 %v5220, %v5332
        %5334 = vmatmul.f32.gmra.mxu0 %v1912
        %v5335 = vpop.f32.mrf.mxu0
        %v5336 = vadd.f32 %v5223, %v5335
        %5337 = vmatmul.f32.gmra.mxu0 %v1920
        %v5338 = vpop.f32.mrf.mxu0
        %v5339 = vadd.f32 %v5226, %v5338
        %5340 = vmatmul.f32.gmra.mxu0 %v1928
        %v5341 = vpop.f32.mrf.mxu0
        %v5342 = vadd.f32 %v5229, %v5341
        %5343 = vmatmul.f32.gmra.mxu0 %v1936
        %v5344 = vpop.f32.mrf.mxu0
        %v5345 = vadd.f32 %v5232, %v5344
        %5346 = vmatmul.f32.gmra.mxu0 %v1944
        %v5347 = vpop.f32.mrf.mxu0
        %v5348 = vadd.f32 %v5235, %v5347
        %5349 = vmatmul.f32.gmra.mxu0 %v1952
        %v5350 = vpop.f32.mrf.mxu0
        %v5351 = vadd.f32 %v5238, %v5350
        %5352 = vmatmul.f32.gmra.mxu0 %v1960
        %v5353 = vpop.f32.mrf.mxu0
        %v5354 = vadd.f32 %v5241, %v5353
        %5355 = vmatmul.f32.gmra.mxu0 %v1968
        %v5356 = vpop.f32.mrf.mxu0
        %v5357 = vadd.f32 %v5244, %v5356
        %5358 = vmatmul.f32.gmra.mxu0 %v1976
        %v5359 = vpop.f32.mrf.mxu0
        %v5360 = vadd.f32 %v5247, %v5359
        %5361 = vmatmul.f32.gmra.mxu0 %v1984
        %v5362 = vpop.f32.mrf.mxu0
        %v5363 = vadd.f32 %v5250, %v5362
        %5364 = vmatmul.f32.gmra.mxu0 %v1992
        %v5365 = vpop.f32.mrf.mxu0
        %v5366 = vadd.f32 %v5253, %v5365
        %5367 = vmatmul.f32.gmra.mxu0 %v2000
        %v5368 = vpop.f32.mrf.mxu0
        %v5369 = vadd.f32 %v5256, %v5368
        %5370 = vmatmul.f32.gmra.mxu0 %v2008
        %v5371 = vpop.f32.mrf.mxu0
        %v5372 = vadd.f32 %v5259, %v5371
        %5373 = vmatmul.f32.gmra.mxu0 %v2016
        %v5374 = vpop.f32.mrf.mxu0
        %v5375 = vadd.f32 %v5262, %v5374
        %5376 = vmatmul.f32.gmra.mxu0 %v2024
        %v5377 = vpop.f32.mrf.mxu0
        %v5378 = vadd.f32 %v5265, %v5377
        %5379 = vmatmul.f32.gmra.mxu0 %v2032
        %v5380 = vpop.f32.mrf.mxu0
        %v5381 = vadd.f32 %v5268, %v5380
        %5382 = vmatmul.f32.gmra.mxu0 %v2040
        %v5383 = vpop.f32.mrf.mxu0
        %v5384 = vadd.f32 %v5271, %v5383
        %5385 = vmatmul.f32.gmra.mxu0 %v2048
        %v5386 = vpop.f32.mrf.mxu0
        %v5387 = vadd.f32 %v5274, %v5386
        %5388 = vmatmul.f32.gmra.mxu0 %v2056
        %v5389 = vpop.f32.mrf.mxu0
        %v5390 = vadd.f32 %v5277, %v5389
        %5391 = vmatmul.f32.gmra.mxu0 %v2064
        %v5392 = vpop.f32.mrf.mxu0
        %v5393 = vadd.f32 %v5280, %v5392
        %5394 = vmatmul.f32.gmra.mxu0 %v2072
        %v5395 = vpop.f32.mrf.mxu0
        %v5396 = vadd.f32 %v5283, %v5395
        %5397 = vmatmul.f32.gmra.mxu0 %v2080
        %v5398 = vpop.f32.mrf.mxu0
        %v5399 = vadd.f32 %v5286, %v5398
        %5400 = vmatmul.f32.gmra.mxu0 %v2088
        %v5401 = vpop.f32.mrf.mxu0
        %v5402 = vadd.f32 %v5289, %v5401
        %5403 = vmatmul.f32.gmra.mxu0 %v2096
        %v5404 = vpop.f32.mrf.mxu0
        %v5405 = vadd.f32 %v5292, %v5404
        %5406 = vmatmul.f32.gmra.mxu0 %v2104
        %v5407 = vpop.f32.mrf.mxu0
        %v5408 = vadd.f32 %v5295, %v5407
        %5409 = vmatmul.f32.gmra.mxu0 %v2112
        %v5410 = vpop.f32.mrf.mxu0
        %v5411 = vadd.f32 %v5298, %v5410
        %5412 = vmatmul.f32.gmra.mxu0 %v2120
        %v5413 = vpop.f32.mrf.mxu0
        %v5414 = vadd.f32 %v5301, %v5413
        %5415 = vmatmul.f32.gmra.mxu0 %v2128
        %v5416 = vpop.f32.mrf.mxu0
        %v5417 = vadd.f32 %v5304, %v5416
        %5418 = vmatmul.f32.gmra.mxu0 %v2136
        %v5419 = vpop.f32.mrf.mxu0
        %v5420 = vadd.f32 %v5307, %v5419
        %5421 = vmatmul.f32.gmra.mxu0 %v2144
        %v5422 = vpop.f32.mrf.mxu0
        %v5423 = vadd.f32 %v5310, %v5422
        %5424 = vdwg.mxu0
        %5425 = vmatpush.msra.mxu0 %v1763
        %5426 = vmatpush.msra.mxu0 %v1759
        %5427 = vmatpush.msra.mxu0 %v1755
        %5428 = vmatpush.msra.mxu0 %v1751
        %5429 = vmatpush.msra.mxu0 %v1747
        %5430 = vmatpush.msra.mxu0 %v1743
        %5431 = vmatpush.msra.mxu0 %v1739
        %5432 = vmatpush.msra.mxu0 %v1735
        %5433 = vmatpush.msra.mxu0 %v1731
        %5434 = vmatpush.msra.mxu0 %v1727
        %5435 = vmatpush.msra.mxu0 %v1723
        %5436 = vmatpush.msra.mxu0 %v1719
        %5437 = vmatpush.msra.mxu0 %v1715
        %5438 = vmatpush.msra.mxu0 %v1711
        %5439 = vmatpush.msra.mxu0 %v1707
        %5440 = vmatpush.msra.mxu0 %v1703
        %5441 = vmatmul.f32.gmra.mxu0 %v1897
        %v5442 = vpop.f32.mrf.mxu0
        %v5443 = vadd.f32 %v5330, %v5442
        %5444 = vmatmul.f32.gmra.mxu0 %v1905
        %v5445 = vpop.f32.mrf.mxu0
        %v5446 = vadd.f32 %v5333, %v5445
        %5447 = vmatmul.f32.gmra.mxu0 %v1913
        %v5448 = vpop.f32.mrf.mxu0
        %v5449 = vadd.f32 %v5336, %v5448
        %5450 = vmatmul.f32.gmra.mxu0 %v1921
        %v5451 = vpop.f32.mrf.mxu0
        %v5452 = vadd.f32 %v5339, %v5451
        %5453 = vmatmul.f32.gmra.mxu0 %v1929
        %v5454 = vpop.f32.mrf.mxu0
        %v5455 = vadd.f32 %v5342, %v5454
        %5456 = vmatmul.f32.gmra.mxu0 %v1937
        %v5457 = vpop.f32.mrf.mxu0
        %v5458 = vadd.f32 %v5345, %v5457
        %5459 = vmatmul.f32.gmra.mxu0 %v1945
        %v5460 = vpop.f32.mrf.mxu0
        %v5461 = vadd.f32 %v5348, %v5460
        %5462 = vmatmul.f32.gmra.mxu0 %v1953
        %v5463 = vpop.f32.mrf.mxu0
        %v5464 = vadd.f32 %v5351, %v5463
        %5465 = vmatmul.f32.gmra.mxu0 %v1961
        %v5466 = vpop.f32.mrf.mxu0
        %v5467 = vadd.f32 %v5354, %v5466
        %5468 = vmatmul.f32.gmra.mxu0 %v1969
        %v5469 = vpop.f32.mrf.mxu0
        %v5470 = vadd.f32 %v5357, %v5469
        %5471 = vmatmul.f32.gmra.mxu0 %v1977
        %v5472 = vpop.f32.mrf.mxu0
        %v5473 = vadd.f32 %v5360, %v5472
        %5474 = vmatmul.f32.gmra.mxu0 %v1985
        %v5475 = vpop.f32.mrf.mxu0
        %v5476 = vadd.f32 %v5363, %v5475
        %5477 = vmatmul.f32.gmra.mxu0 %v1993
        %v5478 = vpop.f32.mrf.mxu0
        %v5479 = vadd.f32 %v5366, %v5478
        %5480 = vmatmul.f32.gmra.mxu0 %v2001
        %v5481 = vpop.f32.mrf.mxu0
        %v5482 = vadd.f32 %v5369, %v5481
        %5483 = vmatmul.f32.gmra.mxu0 %v2009
        %v5484 = vpop.f32.mrf.mxu0
        %v5485 = vadd.f32 %v5372, %v5484
        %5486 = vmatmul.f32.gmra.mxu0 %v2017
        %v5487 = vpop.f32.mrf.mxu0
        %v5488 = vadd.f32 %v5375, %v5487
        %5489 = vmatmul.f32.gmra.mxu0 %v2025
        %v5490 = vpop.f32.mrf.mxu0
        %v5491 = vadd.f32 %v5378, %v5490
        %5492 = vmatmul.f32.gmra.mxu0 %v2033
        %v5493 = vpop.f32.mrf.mxu0
        %v5494 = vadd.f32 %v5381, %v5493
        %5495 = vmatmul.f32.gmra.mxu0 %v2041
        %v5496 = vpop.f32.mrf.mxu0
        %v5497 = vadd.f32 %v5384, %v5496
        %5498 = vmatmul.f32.gmra.mxu0 %v2049
        %v5499 = vpop.f32.mrf.mxu0
        %v5500 = vadd.f32 %v5387, %v5499
        %5501 = vmatmul.f32.gmra.mxu0 %v2057
        %v5502 = vpop.f32.mrf.mxu0
        %v5503 = vadd.f32 %v5390, %v5502
        %5504 = vmatmul.f32.gmra.mxu0 %v2065
        %v5505 = vpop.f32.mrf.mxu0
        %v5506 = vadd.f32 %v5393, %v5505
        %5507 = vmatmul.f32.gmra.mxu0 %v2073
        %v5508 = vpop.f32.mrf.mxu0
        %v5509 = vadd.f32 %v5396, %v5508
        %5510 = vmatmul.f32.gmra.mxu0 %v2081
        %v5511 = vpop.f32.mrf.mxu0
        %v5512 = vadd.f32 %v5399, %v5511
        %5513 = vmatmul.f32.gmra.mxu0 %v2089
        %v5514 = vpop.f32.mrf.mxu0
        %v5515 = vadd.f32 %v5402, %v5514
        %5516 = vmatmul.f32.gmra.mxu0 %v2097
        %v5517 = vpop.f32.mrf.mxu0
        %v5518 = vadd.f32 %v5405, %v5517
        %5519 = vmatmul.f32.gmra.mxu0 %v2105
        %v5520 = vpop.f32.mrf.mxu0
        %v5521 = vadd.f32 %v5408, %v5520
        %5522 = vmatmul.f32.gmra.mxu0 %v2113
        %v5523 = vpop.f32.mrf.mxu0
        %v5524 = vadd.f32 %v5411, %v5523
        %5525 = vmatmul.f32.gmra.mxu0 %v2121
        %v5526 = vpop.f32.mrf.mxu0
        %v5527 = vadd.f32 %v5414, %v5526
        %5528 = vmatmul.f32.gmra.mxu0 %v2129
        %v5529 = vpop.f32.mrf.mxu0
        %v5530 = vadd.f32 %v5417, %v5529
        %5531 = vmatmul.f32.gmra.mxu0 %v2137
        %v5532 = vpop.f32.mrf.mxu0
        %v5533 = vadd.f32 %v5420, %v5532
        %5534 = vmatmul.f32.gmra.mxu0 %v2145
        %v5535 = vpop.f32.mrf.mxu0
        %v5536 = vadd.f32 %v5423, %v5535
        %5537 = vdwg.mxu0
        %5538 = vmatpush.msra.mxu0 %v1827
        %5539 = vmatpush.msra.mxu0 %v1823
        %5540 = vmatpush.msra.mxu0 %v1819
        %5541 = vmatpush.msra.mxu0 %v1815
        %5542 = vmatpush.msra.mxu0 %v1811
        %5543 = vmatpush.msra.mxu0 %v1807
        %5544 = vmatpush.msra.mxu0 %v1803
        %5545 = vmatpush.msra.mxu0 %v1799
        %5546 = vmatpush.msra.mxu0 %v1795
        %5547 = vmatpush.msra.mxu0 %v1791
        %5548 = vmatpush.msra.mxu0 %v1787
        %5549 = vmatpush.msra.mxu0 %v1783
        %5550 = vmatpush.msra.mxu0 %v1779
        %5551 = vmatpush.msra.mxu0 %v1775
        %5552 = vmatpush.msra.mxu0 %v1771
        %5553 = vmatpush.msra.mxu0 %v1767
        %5554 = vmatmul.f32.gmra.mxu0 %v1898
        %v5555 = vpop.f32.mrf.mxu0
        %v5556 = vadd.f32 %v5443, %v5555
        %5557 = vmatmul.f32.gmra.mxu0 %v1906
        %v5558 = vpop.f32.mrf.mxu0
        %v5559 = vadd.f32 %v5446, %v5558
        %5560 = vmatmul.f32.gmra.mxu0 %v1914
        %v5561 = vpop.f32.mrf.mxu0
        %v5562 = vadd.f32 %v5449, %v5561
        %5563 = vmatmul.f32.gmra.mxu0 %v1922
        %v5564 = vpop.f32.mrf.mxu0
        %v5565 = vadd.f32 %v5452, %v5564
        %5566 = vmatmul.f32.gmra.mxu0 %v1930
        %v5567 = vpop.f32.mrf.mxu0
        %v5568 = vadd.f32 %v5455, %v5567
        %5569 = vmatmul.f32.gmra.mxu0 %v1938
        %v5570 = vpop.f32.mrf.mxu0
        %v5571 = vadd.f32 %v5458, %v5570
        %5572 = vmatmul.f32.gmra.mxu0 %v1946
        %v5573 = vpop.f32.mrf.mxu0
        %v5574 = vadd.f32 %v5461, %v5573
        %5575 = vmatmul.f32.gmra.mxu0 %v1954
        %v5576 = vpop.f32.mrf.mxu0
        %v5577 = vadd.f32 %v5464, %v5576
        %5578 = vmatmul.f32.gmra.mxu0 %v1962
        %v5579 = vpop.f32.mrf.mxu0
        %v5580 = vadd.f32 %v5467, %v5579
        %5581 = vmatmul.f32.gmra.mxu0 %v1970
        %v5582 = vpop.f32.mrf.mxu0
        %v5583 = vadd.f32 %v5470, %v5582
        %5584 = vmatmul.f32.gmra.mxu0 %v1978
        %v5585 = vpop.f32.mrf.mxu0
        %v5586 = vadd.f32 %v5473, %v5585
        %5587 = vmatmul.f32.gmra.mxu0 %v1986
        %v5588 = vpop.f32.mrf.mxu0
        %v5589 = vadd.f32 %v5476, %v5588
        %5590 = vmatmul.f32.gmra.mxu0 %v1994
        %v5591 = vpop.f32.mrf.mxu0
        %v5592 = vadd.f32 %v5479, %v5591
        %5593 = vmatmul.f32.gmra.mxu0 %v2002
        %v5594 = vpop.f32.mrf.mxu0
        %v5595 = vadd.f32 %v5482, %v5594
        %5596 = vmatmul.f32.gmra.mxu0 %v2010
        %v5597 = vpop.f32.mrf.mxu0
        %v5598 = vadd.f32 %v5485, %v5597
        %5599 = vmatmul.f32.gmra.mxu0 %v2018
        %v5600 = vpop.f32.mrf.mxu0
        %v5601 = vadd.f32 %v5488, %v5600
        %5602 = vmatmul.f32.gmra.mxu0 %v2026
        %v5603 = vpop.f32.mrf.mxu0
        %v5604 = vadd.f32 %v5491, %v5603
        %5605 = vmatmul.f32.gmra.mxu0 %v2034
        %v5606 = vpop.f32.mrf.mxu0
        %v5607 = vadd.f32 %v5494, %v5606
        %5608 = vmatmul.f32.gmra.mxu0 %v2042
        %v5609 = vpop.f32.mrf.mxu0
        %v5610 = vadd.f32 %v5497, %v5609
        %5611 = vmatmul.f32.gmra.mxu0 %v2050
        %v5612 = vpop.f32.mrf.mxu0
        %v5613 = vadd.f32 %v5500, %v5612
        %5614 = vmatmul.f32.gmra.mxu0 %v2058
        %v5615 = vpop.f32.mrf.mxu0
        %v5616 = vadd.f32 %v5503, %v5615
        %5617 = vmatmul.f32.gmra.mxu0 %v2066
        %v5618 = vpop.f32.mrf.mxu0
        %v5619 = vadd.f32 %v5506, %v5618
        %5620 = vmatmul.f32.gmra.mxu0 %v2074
        %v5621 = vpop.f32.mrf.mxu0
        %v5622 = vadd.f32 %v5509, %v5621
        %5623 = vmatmul.f32.gmra.mxu0 %v2082
        %v5624 = vpop.f32.mrf.mxu0
        %v5625 = vadd.f32 %v5512, %v5624
        %5626 = vmatmul.f32.gmra.mxu0 %v2090
        %v5627 = vpop.f32.mrf.mxu0
        %v5628 = vadd.f32 %v5515, %v5627
        %5629 = vmatmul.f32.gmra.mxu0 %v2098
        %v5630 = vpop.f32.mrf.mxu0
        %v5631 = vadd.f32 %v5518, %v5630
        %5632 = vmatmul.f32.gmra.mxu0 %v2106
        %v5633 = vpop.f32.mrf.mxu0
        %v5634 = vadd.f32 %v5521, %v5633
        %5635 = vmatmul.f32.gmra.mxu0 %v2114
        %v5636 = vpop.f32.mrf.mxu0
        %v5637 = vadd.f32 %v5524, %v5636
        %5638 = vmatmul.f32.gmra.mxu0 %v2122
        %v5639 = vpop.f32.mrf.mxu0
        %v5640 = vadd.f32 %v5527, %v5639
        %5641 = vmatmul.f32.gmra.mxu0 %v2130
        %v5642 = vpop.f32.mrf.mxu0
        %v5643 = vadd.f32 %v5530, %v5642
        %5644 = vmatmul.f32.gmra.mxu0 %v2138
        %v5645 = vpop.f32.mrf.mxu0
        %v5646 = vadd.f32 %v5533, %v5645
        %5647 = vmatmul.f32.gmra.mxu0 %v2146
        %v5648 = vpop.f32.mrf.mxu0
        %v5649 = vadd.f32 %v5536, %v5648
        %5650 = vdwg.mxu0
        %5651 = vmatpush.msra.mxu0 %v1891
        %5652 = vmatpush.msra.mxu0 %v1887
        %5653 = vmatpush.msra.mxu0 %v1883
        %5654 = vmatpush.msra.mxu0 %v1879
        %5655 = vmatpush.msra.mxu0 %v1875
        %5656 = vmatpush.msra.mxu0 %v1871
        %5657 = vmatpush.msra.mxu0 %v1867
        %5658 = vmatpush.msra.mxu0 %v1863
        %5659 = vmatpush.msra.mxu0 %v1859
        %5660 = vmatpush.msra.mxu0 %v1855
        %5661 = vmatpush.msra.mxu0 %v1851
        %5662 = vmatpush.msra.mxu0 %v1847
        %5663 = vmatpush.msra.mxu0 %v1843
        %5664 = vmatpush.msra.mxu0 %v1839
        %5665 = vmatpush.msra.mxu0 %v1835
        %5666 = vmatpush.msra.mxu0 %v1831
        %5667 = vmatmul.f32.gmra.mxu0 %v1899
        %v5668 = vpop.f32.mrf.mxu0
        %v5669 = vadd.f32 %v5556, %v5668
        %5670 = vmatmul.f32.gmra.mxu0 %v1907
        %v5671 = vpop.f32.mrf.mxu0
        %v5672 = vadd.f32 %v5559, %v5671
        %5673 = vmatmul.f32.gmra.mxu0 %v1915
        %v5674 = vpop.f32.mrf.mxu0
        %v5675 = vadd.f32 %v5562, %v5674
        %5676 = vmatmul.f32.gmra.mxu0 %v1923
        %v5677 = vpop.f32.mrf.mxu0
        %v5678 = vadd.f32 %v5565, %v5677
        %5679 = vmatmul.f32.gmra.mxu0 %v1931
        %v5680 = vpop.f32.mrf.mxu0
        %v5681 = vadd.f32 %v5568, %v5680
        %5682 = vmatmul.f32.gmra.mxu0 %v1939
        %v5683 = vpop.f32.mrf.mxu0
        %v5684 = vadd.f32 %v5571, %v5683
        %5685 = vmatmul.f32.gmra.mxu0 %v1947
        %v5686 = vpop.f32.mrf.mxu0
        %v5687 = vadd.f32 %v5574, %v5686
        %5688 = vmatmul.f32.gmra.mxu0 %v1955
        %v5689 = vpop.f32.mrf.mxu0
        %v5690 = vadd.f32 %v5577, %v5689
        %5691 = vmatmul.f32.gmra.mxu0 %v1963
        %v5692 = vpop.f32.mrf.mxu0
        %v5693 = vadd.f32 %v5580, %v5692
        %5694 = vmatmul.f32.gmra.mxu0 %v1971
        %v5695 = vpop.f32.mrf.mxu0
        %v5696 = vadd.f32 %v5583, %v5695
        %5697 = vmatmul.f32.gmra.mxu0 %v1979
        %v5698 = vpop.f32.mrf.mxu0
        %v5699 = vadd.f32 %v5586, %v5698
        %5700 = vmatmul.f32.gmra.mxu0 %v1987
        %v5701 = vpop.f32.mrf.mxu0
        %v5702 = vadd.f32 %v5589, %v5701
        %5703 = vmatmul.f32.gmra.mxu0 %v1995
        %v5704 = vpop.f32.mrf.mxu0
        %v5705 = vadd.f32 %v5592, %v5704
        %5706 = vmatmul.f32.gmra.mxu0 %v2003
        %v5707 = vpop.f32.mrf.mxu0
        %v5708 = vadd.f32 %v5595, %v5707
        %5709 = vmatmul.f32.gmra.mxu0 %v2011
        %v5710 = vpop.f32.mrf.mxu0
        %v5711 = vadd.f32 %v5598, %v5710
        %5712 = vmatmul.f32.gmra.mxu0 %v2019
        %v5713 = vpop.f32.mrf.mxu0
        %v5714 = vadd.f32 %v5601, %v5713
        %5715 = vmatmul.f32.gmra.mxu0 %v2027
        %v5716 = vpop.f32.mrf.mxu0
        %v5717 = vadd.f32 %v5604, %v5716
        %5718 = vmatmul.f32.gmra.mxu0 %v2035
        %v5719 = vpop.f32.mrf.mxu0
        %v5720 = vadd.f32 %v5607, %v5719
        %5721 = vmatmul.f32.gmra.mxu0 %v2043
        %v5722 = vpop.f32.mrf.mxu0
        %v5723 = vadd.f32 %v5610, %v5722
        %5724 = vmatmul.f32.gmra.mxu0 %v2051
        %v5725 = vpop.f32.mrf.mxu0
        %v5726 = vadd.f32 %v5613, %v5725
        %5727 = vmatmul.f32.gmra.mxu0 %v2059
        %v5728 = vpop.f32.mrf.mxu0
        %v5729 = vadd.f32 %v5616, %v5728
        %5730 = vmatmul.f32.gmra.mxu0 %v2067
        %v5731 = vpop.f32.mrf.mxu0
        %v5732 = vadd.f32 %v5619, %v5731
        %5733 = vmatmul.f32.gmra.mxu0 %v2075
        %v5734 = vpop.f32.mrf.mxu0
        %v5735 = vadd.f32 %v5622, %v5734
        %5736 = vmatmul.f32.gmra.mxu0 %v2083
        %v5737 = vpop.f32.mrf.mxu0
        %v5738 = vadd.f32 %v5625, %v5737
        %5739 = vmatmul.f32.gmra.mxu0 %v2091
        %v5740 = vpop.f32.mrf.mxu0
        %v5741 = vadd.f32 %v5628, %v5740
        %5742 = vmatmul.f32.gmra.mxu0 %v2099
        %v5743 = vpop.f32.mrf.mxu0
        %v5744 = vadd.f32 %v5631, %v5743
        %5745 = vmatmul.f32.gmra.mxu0 %v2107
        %v5746 = vpop.f32.mrf.mxu0
        %v5747 = vadd.f32 %v5634, %v5746
        %5748 = vmatmul.f32.gmra.mxu0 %v2115
        %v5749 = vpop.f32.mrf.mxu0
        %v5750 = vadd.f32 %v5637, %v5749
        %5751 = vmatmul.f32.gmra.mxu0 %v2123
        %v5752 = vpop.f32.mrf.mxu0
        %v5753 = vadd.f32 %v5640, %v5752
        %5754 = vmatmul.f32.gmra.mxu0 %v2131
        %v5755 = vpop.f32.mrf.mxu0
        %v5756 = vadd.f32 %v5643, %v5755
        %5757 = vmatmul.f32.gmra.mxu0 %v2139
        %v5758 = vpop.f32.mrf.mxu0
        %v5759 = vadd.f32 %v5646, %v5758
        %5760 = vmatmul.f32.gmra.mxu0 %v2147
        %v5761 = vpop.f32.mrf.mxu0
        %v5762 = vadd.f32 %v5649, %v5761
        %5763 = vdwg.mxu0
        %5764 = vst [vmem:[%s217] sm:$0xff] %v2957
        %5765 = vst [vmem:[%s217 + $0x8] sm:$0xff] %v3861
        %5766 = vst [vmem:[%s217 + $0x10] sm:$0xff] %v4765
        %5767 = vst [vmem:[%s217 + $0x18] sm:$0xff] %v5669
        %5768 = vst [vmem:[%s217 + $0x20] sm:$0xff] %v2960
        %5769 = vst [vmem:[%s217 + $0x28] sm:$0xff] %v3864
        %5770 = vst [vmem:[%s217 + $0x30] sm:$0xff] %v4768
        %5771 = vst [vmem:[%s217 + $0x38] sm:$0xff] %v5672
        %5772 = vst [vmem:[%s217 + $0x40] sm:$0xff] %v2963
        %5773 = vst [vmem:[%s217 + $0x48] sm:$0xff] %v3867
        %5774 = vst [vmem:[%s217 + $0x50] sm:$0xff] %v4771
        %5775 = vst [vmem:[%s217 + $0x58] sm:$0xff] %v5675
        %5776 = vst [vmem:[%s217 + $0x60] sm:$0xff] %v2966
        %5777 = vst [vmem:[%s217 + $0x68] sm:$0xff] %v3870
        %5778 = vst [vmem:[%s217 + $0x70] sm:$0xff] %v4774
        %5779 = vst [vmem:[%s217 + $0x78] sm:$0xff] %v5678
        %5780 = vst [vmem:[%s217 + $0x80] sm:$0xff] %v2969
        %5781 = vst [vmem:[%s217 + $0x88] sm:$0xff] %v3873
        %5782 = vst [vmem:[%s217 + $0x90] sm:$0xff] %v4777
        %5783 = vst [vmem:[%s217 + $0x98] sm:$0xff] %v5681
        %5784 = vst [vmem:[%s217 + $0xa0] sm:$0xff] %v2972
        %5785 = vst [vmem:[%s217 + $0xa8] sm:$0xff] %v3876
        %5786 = vst [vmem:[%s217 + $0xb0] sm:$0xff] %v4780
        %5787 = vst [vmem:[%s217 + $0xb8] sm:$0xff] %v5684
        %5788 = vst [vmem:[%s217 + $0xc0] sm:$0xff] %v2975
        %5789 = vst [vmem:[%s217 + $0xc8] sm:$0xff] %v3879
        %5790 = vst [vmem:[%s217 + $0xd0] sm:$0xff] %v4783
        %5791 = vst [vmem:[%s217 + $0xd8] sm:$0xff] %v5687
        %5792 = vst [vmem:[%s217 + $0xe0] sm:$0xff] %v2978
        %5793 = vst [vmem:[%s217 + $0xe8] sm:$0xff] %v3882
        %5794 = vst [vmem:[%s217 + $0xf0] sm:$0xff] %v4786
        %5795 = vst [vmem:[%s217 + $0xf8] sm:$0xff] %v5690
        %5796 = vst [vmem:[%s217 + $0x100] sm:$0xff] %v2981
        %5797 = vst [vmem:[%s217 + $0x108] sm:$0xff] %v3885
        %5798 = vst [vmem:[%s217 + $0x110] sm:$0xff] %v4789
        %5799 = vst [vmem:[%s217 + $0x118] sm:$0xff] %v5693
        %5800 = vst [vmem:[%s217 + $0x120] sm:$0xff] %v2984
        %5801 = vst [vmem:[%s217 + $0x128] sm:$0xff] %v3888
        %5802 = vst [vmem:[%s217 + $0x130] sm:$0xff] %v4792
        %5803 = vst [vmem:[%s217 + $0x138] sm:$0xff] %v5696
        %5804 = vst [vmem:[%s217 + $0x140] sm:$0xff] %v2987
        %5805 = vst [vmem:[%s217 + $0x148] sm:$0xff] %v3891
        %5806 = vst [vmem:[%s217 + $0x150] sm:$0xff] %v4795
        %5807 = vst [vmem:[%s217 + $0x158] sm:$0xff] %v5699
        %5808 = vst [vmem:[%s217 + $0x160] sm:$0xff] %v2990
        %5809 = vst [vmem:[%s217 + $0x168] sm:$0xff] %v3894
        %5810 = vst [vmem:[%s217 + $0x170] sm:$0xff] %v4798
        %5811 = vst [vmem:[%s217 + $0x178] sm:$0xff] %v5702
        %5812 = vst [vmem:[%s217 + $0x180] sm:$0xff] %v2993
        %5813 = vst [vmem:[%s217 + $0x188] sm:$0xff] %v3897
        %5814 = vst [vmem:[%s217 + $0x190] sm:$0xff] %v4801
        %5815 = vst [vmem:[%s217 + $0x198] sm:$0xff] %v5705
        %5816 = vst [vmem:[%s217 + $0x1a0] sm:$0xff] %v2996
        %5817 = vst [vmem:[%s217 + $0x1a8] sm:$0xff] %v3900
        %5818 = vst [vmem:[%s217 + $0x1b0] sm:$0xff] %v4804
        %5819 = vst [vmem:[%s217 + $0x1b8] sm:$0xff] %v5708
        %5820 = vst [vmem:[%s217 + $0x1c0] sm:$0xff] %v2999
        %5821 = vst [vmem:[%s217 + $0x1c8] sm:$0xff] %v3903
        %5822 = vst [vmem:[%s217 + $0x1d0] sm:$0xff] %v4807
        %5823 = vst [vmem:[%s217 + $0x1d8] sm:$0xff] %v5711
        %5824 = vst [vmem:[%s217 + $0x1e0] sm:$0xff] %v3002
        %5825 = vst [vmem:[%s217 + $0x1e8] sm:$0xff] %v3906
        %5826 = vst [vmem:[%s217 + $0x1f0] sm:$0xff] %v4810
        %5827 = vst [vmem:[%s217 + $0x1f8] sm:$0xff] %v5714
        %5828 = vst [vmem:[%s217 + $0x200] sm:$0xff] %v3005
        %5829 = vst [vmem:[%s217 + $0x208] sm:$0xff] %v3909
        %5830 = vst [vmem:[%s217 + $0x210] sm:$0xff] %v4813
        %5831 = vst [vmem:[%s217 + $0x218] sm:$0xff] %v5717
        %5832 = vst [vmem:[%s217 + $0x220] sm:$0xff] %v3008
        %5833 = vst [vmem:[%s217 + $0x228] sm:$0xff] %v3912
        %5834 = vst [vmem:[%s217 + $0x230] sm:$0xff] %v4816
        %5835 = vst [vmem:[%s217 + $0x238] sm:$0xff] %v5720
        %5836 = vst [vmem:[%s217 + $0x240] sm:$0xff] %v3011
        %5837 = vst [vmem:[%s217 + $0x248] sm:$0xff] %v3915
        %5838 = vst [vmem:[%s217 + $0x250] sm:$0xff] %v4819
        %5839 = vst [vmem:[%s217 + $0x258] sm:$0xff] %v5723
        %5840 = vst [vmem:[%s217 + $0x260] sm:$0xff] %v3014
        %5841 = vst [vmem:[%s217 + $0x268] sm:$0xff] %v3918
        %5842 = vst [vmem:[%s217 + $0x270] sm:$0xff] %v4822
        %5843 = vst [vmem:[%s217 + $0x278] sm:$0xff] %v5726
        %5844 = vst [vmem:[%s217 + $0x280] sm:$0xff] %v3017
        %5845 = vst [vmem:[%s217 + $0x288] sm:$0xff] %v3921
        %5846 = vst [vmem:[%s217 + $0x290] sm:$0xff] %v4825
        %5847 = vst [vmem:[%s217 + $0x298] sm:$0xff] %v5729
        %5848 = vst [vmem:[%s217 + $0x2a0] sm:$0xff] %v3020
        %5849 = vst [vmem:[%s217 + $0x2a8] sm:$0xff] %v3924
        %5850 = vst [vmem:[%s217 + $0x2b0] sm:$0xff] %v4828
        %5851 = vst [vmem:[%s217 + $0x2b8] sm:$0xff] %v5732
        %5852 = vst [vmem:[%s217 + $0x2c0] sm:$0xff] %v3023
        %5853 = vst [vmem:[%s217 + $0x2c8] sm:$0xff] %v3927
        %5854 = vst [vmem:[%s217 + $0x2d0] sm:$0xff] %v4831
        %5855 = vst [vmem:[%s217 + $0x2d8] sm:$0xff] %v5735
        %5856 = vst [vmem:[%s217 + $0x2e0] sm:$0xff] %v3026
        %5857 = vst [vmem:[%s217 + $0x2e8] sm:$0xff] %v3930
        %5858 = vst [vmem:[%s217 + $0x2f0] sm:$0xff] %v4834
        %5859 = vst [vmem:[%s217 + $0x2f8] sm:$0xff] %v5738
        %5860 = vst [vmem:[%s217 + $0x300] sm:$0xff] %v3029
        %5861 = vst [vmem:[%s217 + $0x308] sm:$0xff] %v3933
        %5862 = vst [vmem:[%s217 + $0x310] sm:$0xff] %v4837
        %5863 = vst [vmem:[%s217 + $0x318] sm:$0xff] %v5741
        %5864 = vst [vmem:[%s217 + $0x320] sm:$0xff] %v3032
        %5865 = vst [vmem:[%s217 + $0x328] sm:$0xff] %v3936
        %5866 = vst [vmem:[%s217 + $0x330] sm:$0xff] %v4840
        %5867 = vst [vmem:[%s217 + $0x338] sm:$0xff] %v5744
        %5868 = vst [vmem:[%s217 + $0x340] sm:$0xff] %v3035
        %5869 = vst [vmem:[%s217 + $0x348] sm:$0xff] %v3939
        %5870 = vst [vmem:[%s217 + $0x350] sm:$0xff] %v4843
        %5871 = vst [vmem:[%s217 + $0x358] sm:$0xff] %v5747
        %5872 = vst [vmem:[%s217 + $0x360] sm:$0xff] %v3038
        %5873 = vst [vmem:[%s217 + $0x368] sm:$0xff] %v3942
        %5874 = vst [vmem:[%s217 + $0x370] sm:$0xff] %v4846
        %5875 = vst [vmem:[%s217 + $0x378] sm:$0xff] %v5750
        %5876 = vst [vmem:[%s217 + $0x380] sm:$0xff] %v3041
        %5877 = vst [vmem:[%s217 + $0x388] sm:$0xff] %v3945
        %5878 = vst [vmem:[%s217 + $0x390] sm:$0xff] %v4849
        %5879 = vst [vmem:[%s217 + $0x398] sm:$0xff] %v5753
        %5880 = vst [vmem:[%s217 + $0x3a0] sm:$0xff] %v3044
        %5881 = vst [vmem:[%s217 + $0x3a8] sm:$0xff] %v3948
        %5882 = vst [vmem:[%s217 + $0x3b0] sm:$0xff] %v4852
        %5883 = vst [vmem:[%s217 + $0x3b8] sm:$0xff] %v5756
        %5884 = vst [vmem:[%s217 + $0x3c0] sm:$0xff] %v3047
        %5885 = vst [vmem:[%s217 + $0x3c8] sm:$0xff] %v3951
        %5886 = vst [vmem:[%s217 + $0x3d0] sm:$0xff] %v4855
        %5887 = vst [vmem:[%s217 + $0x3d8] sm:$0xff] %v5759
        %5888 = vst [vmem:[%s217 + $0x3e0] sm:$0xff] %v3050
        %5889 = vst [vmem:[%s217 + $0x3e8] sm:$0xff] %v3954
        %5890 = vst [vmem:[%s217 + $0x3f0] sm:$0xff] %v4858
        %5891 = vst [vmem:[%s217 + $0x3f8] sm:$0xff] %v5762
        %s5892 = sand.u32 %s96, 1
        %s5893 = scalar_lea.sflag [#allocation4], %s5892
        %s5894 = sand.u32 %s96, 1
        %s5895 = smul.addr %s5894, 1024
        %s5896 = scalar_lea.vmem [#allocation7], %s5895
        // Predicated region
        $region37: #{tpu_custom_call.1} parent=27 // pred_check
          %p5897 = pneg %p106
        $region38: #{tpu_custom_call.1} parent=27 // pred_check_branch
          %5899 = sbr.rel (%p5897) target = $region40
        $region39: #{tpu_custom_call.1} parent=27 // pred_region
          %s5900 = smul.u32 32, %s26
          %s5901 = smul.u32 4, %s27
          %5903 = vsyncadd %s5893, 0
          %s5904 = smul.addr %s5900, 8
          %s5905 = sadd.s32 %s5901, %s5904
          %s5906 = smul.addr %s5905, 8
          %s5907 = scalar_lea.hbm %s2, %s5906
          %s5908 = sshll.u32 %s5896, 4
          %s5909 = int_to_ptr.vmem [resolvable:$true] %s5908
          %s5910 = sshll.u32 %s5907, 4
          %s5911 = int_to_ptr.hbm [resolvable:$true] %s5910
          %5916 = dma.vmem_to_hbm [thread:$0]  %s5909, 16384, %s5911, %s5893, 512, 1024, 32
        $region40: #{tpu_custom_call.1} parent=27 // pred_fallthru
          _
      $region28: #{tpu_custom_call.1} parent=5 // pred_fallthru
        _
      %p5917 = scmp.le.s32.totalorder 2, %s17
      // Predicated region
      $region41: #{tpu_custom_call.1} parent=5 // pred_check
        %p5918 = pneg %p5917
      $region42: #{tpu_custom_call.1} parent=5 // pred_check_branch
        %5920 = sbr.rel (%p5918) target = $region44
      $region43: #{tpu_custom_call.1} parent=5 // pred_region
        %s5921 = ssub.s32 %s17, 2
        // Predicated region
        $region45: #{tpu_custom_call.1} parent=43 // pred_check
          %p5922 = pneg %p112
        $region46: #{tpu_custom_call.1} parent=43 // pred_check_branch
          %5924 = sbr.rel (%p5922) target = $region48
        $region47: #{tpu_custom_call.1} parent=43 // pred_region
          %s5925 = sand.u32 %s97, 1
          %s5926 = scalar_lea.sflag [#allocation4], %s5925
          %s5927 = sand.u32 %s97, 1
          %s5928 = smul.addr %s5927, 1024
          %s5929 = scalar_lea.vmem [#allocation7], %s5928
          %5931 = dma.done %s5926, 16384
        $region48: #{tpu_custom_call.1} parent=43 // pred_fallthru
          _
      $region44: #{tpu_custom_call.1} parent=5 // pred_fallthru
        _
    $region6: #{tpu_custom_call.1} parent=1 // loop_footer
      %s21 = sadd.s32 1, %s17
    $region7: #{tpu_custom_call.1} parent=1 // loop_footer_branch
      %16 = sbr.rel target = $region3
    $region8: #{tpu_custom_call.1} parent=1 // loop_exit
      _
    %5932 = vsyncpa [#allocation3], 1
    %s5933 = scalar_lea.sflag [#allocation3], 1
    %5934 = vsyncpa %s5933, 1
    %5935 = vsyncpa [#allocation6], 1
    %s5936 = scalar_lea.sflag [#allocation6], 1
    %5937 = vsyncpa %s5936, 1
    %5938 = vsyncpa [#allocation4], 1
    %s5939 = scalar_lea.sflag [#allocation4], 1
    %5940 = vsyncpa %s5939, 1

</llo_original>
